<compile_context>
chip_gen: v6e
topology: v6e:2x2x1
jax: 0.10.0
libtpu: 0.0.40
codegen_flags: <defaults>
</compile_context>

<pallas_src>
import functools
import math

import jax
import jax.numpy as jnp
from jax.experimental import pallas as pl
from jax.experimental.pallas import tpu as pltpu


MXU_DTYPE = jnp.bfloat16          # MXU operand dtype (f32 accumulation)
_VMEM_LIMIT = 32 * 1024 * 1024    # explicit scoped-VMEM budget (safe on v5e/v6e/v7x)

_COMPILER_PARAMS = pltpu.CompilerParams(
    dimension_semantics=("parallel",),
    vmem_limit_bytes=_VMEM_LIMIT,
)


def _pick_row_tile(M, target=256):
    """Largest row tile <= target that divides M (multiple of 8 when possible)."""
    if M <= target:
        return M
    t = target
    while t >= 8:
        if M % t == 0:
            return t
        t -= 8
    return M


# ----------------------------- Pallas kernels ------------------------------


def _mha_ln_kernel(xq_ref, xkv_ref, kpad_ref, wqkv_ref, bqkv_ref, wo_ref, bo_ref,
                   g_ref, bta_ref, o_ref, *, heads_num, scale, causal, eps):
    """Fused MHA + output projection + residual + LayerNorm for one batch element."""
    D = wo_ref.shape[0]
    dk = D // heads_num

    xq = xq_ref[0]                         # (Lq, D) f32
    xkv = xkv_ref[0]                       # (Lk, D) f32
    Lq = xq.shape[0]
    Lk = xkv.shape[0]

    w = wqkv_ref[...]                      # (D, 3D) f32
    b = bqkv_ref[...]                      # (1, 3D) f32
    xq16 = xq.astype(MXU_DTYPE)
    xkv16 = xkv.astype(MXU_DTYPE)

    q = jnp.dot(xq16, w[:, :D].astype(MXU_DTYPE),
                preferred_element_type=jnp.float32) + b[:, :D]
    k = jnp.dot(xkv16, w[:, D:2 * D].astype(MXU_DTYPE),
                preferred_element_type=jnp.float32) + b[:, D:2 * D]
    v = jnp.dot(xkv16, w[:, 2 * D:].astype(MXU_DTYPE),
                preferred_element_type=jnp.float32) + b[:, 2 * D:]
    q = q * jnp.float32(scale)             # fold 1/sqrt(dk) into q (smaller tensor)

    # Rebuild the mask in-kernel from the (1, Lk) key-pad vector (+ causal iota).
    kpad = kpad_ref[0]                     # (1, Lk) int32, nonzero == pad token
    mask = jnp.broadcast_to(kpad != 0, (Lq, Lk))
    if causal:
        qi = jax.lax.broadcasted_iota(jnp.int32, (Lq, Lk), 0)
        ki = jax.lax.broadcasted_iota(jnp.int32, (Lq, Lk), 1)
        mask = jnp.logical_or(mask, ki > qi)

    heads = []
    for h in range(heads_num):             # static unroll over heads (kept in VMEM)
        sl = slice(h * dk, (h + 1) * dk)
        qh = q[:, sl].astype(MXU_DTYPE)
        kh = k[:, sl].astype(MXU_DTYPE)
        vh = v[:, sl].astype(MXU_DTYPE)
        s = jax.lax.dot_general(qh, kh, (((1,), (1,)), ((), ())),
                                preferred_element_type=jnp.float32)   # (Lq, Lk)
        s = jnp.where(mask, jnp.float32(-1e9), s)
        s = s - jnp.max(s, axis=-1, keepdims=True)
        p = jnp.exp(s)
        p = p * pl.reciprocal(jnp.sum(p, axis=-1, keepdims=True), approx=True)
        heads.append(jnp.dot(p.astype(MXU_DTYPE), vh,
                             preferred_element_type=jnp.float32))
    attn = jnp.concatenate(heads, axis=-1)          # (Lq, D) lane-dense slab

    out = jnp.dot(attn.astype(MXU_DTYPE), wo_ref[...].astype(MXU_DTYPE),
                  preferred_element_type=jnp.float32) + bo_ref[...]

    r = xq + out                                    # residual (post-LN)
    mu = jnp.mean(r, axis=-1, keepdims=True)
    var = jnp.mean((r - mu) ** 2, axis=-1, keepdims=True)
    o_ref[0] = (r - mu) * jax.lax.rsqrt(var + eps) * g_ref[...] + bta_ref[...]


def _ffn_ln_kernel(x_ref, w1_ref, b1_ref, w2_ref, b2_ref, g_ref, bta_ref, o_ref,
                   *, eps):
    """Fused FFN (Linear -> ReLU -> Linear) + residual + LayerNorm over a row tile."""
    x = x_ref[...]                                   # (tm, D) f32
    h = jnp.dot(x.astype(MXU_DTYPE), w1_ref[...].astype(MXU_DTYPE),
                preferred_element_type=jnp.float32) + b1_ref[...]
    h = jnp.maximum(h, 0.0)
    y = jnp.dot(h.astype(MXU_DTYPE), w2_ref[...].astype(MXU_DTYPE),
                preferred_element_type=jnp.float32) + b2_ref[...]
    r = x + y
    mu = jnp.mean(r, axis=-1, keepdims=True)
    var = jnp.mean((r - mu) ** 2, axis=-1, keepdims=True)
    o_ref[...] = (r - mu) * jax.lax.rsqrt(var + eps) * g_ref[...] + bta_ref[...]


def _linear_kernel(x_ref, w_ref, b_ref, o_ref):
    """Row-tiled matmul + bias (used for the final vocab projection)."""
    y = jnp.dot(x_ref[...].astype(MXU_DTYPE), w_ref[...].astype(MXU_DTYPE),
                preferred_element_type=jnp.float32)
    o_ref[...] = y + b_ref[...]


# ----------------------------- kernel wrappers ------------------------------


def pallas_mha_block(x_q, x_kv, kpad, p, heads_num, eps, causal):
    """x_q: (B, Lq, D), x_kv: (B, Lk, D), kpad: (B, 1, Lk) int32 (nonzero == pad)."""
    B, Lq, D = x_q.shape
    Lk = x_kv.shape[1]
    dk = D // heads_num

    kernel = functools.partial(
        _mha_ln_kernel, heads_num=heads_num, scale=1.0 / math.sqrt(dk),
        causal=causal, eps=eps)

    cost = pl.CostEstimate(
        flops=int(B * (2 * Lq * D * D + 2 * Lk * D * 2 * D
                       + 4 * heads_num * Lq * Lk * dk + 2 * Lq * D * D)),
        transcendentals=int(B * heads_num * Lq * Lk),
        bytes_accessed=int(4 * (2 * B * Lq * D + B * Lk * D + B * Lk
                                + 3 * D * D + 3 * D + D * D + 3 * D)),
    )

    return pl.pallas_call(
        kernel,
        out_shape=jax.ShapeDtypeStruct((B, Lq, D), jnp.float32),
        grid=(B,),
        in_specs=[
            pl.BlockSpec((1, Lq, D), lambda b: (b, 0, 0)),      # x_q
            pl.BlockSpec((1, Lk, D), lambda b: (b, 0, 0)),      # x_kv
            pl.BlockSpec((1, 1, Lk), lambda b: (b, 0, 0)),      # key pad vector
            pl.BlockSpec((D, 3 * D), lambda b: (0, 0)),         # wqkv
            pl.BlockSpec((1, 3 * D), lambda b: (0, 0)),         # bqkv
            pl.BlockSpec((D, D), lambda b: (0, 0)),             # wo
            pl.BlockSpec((1, D), lambda b: (0, 0)),             # bo
            pl.BlockSpec((1, D), lambda b: (0, 0)),             # ln gamma
            pl.BlockSpec((1, D), lambda b: (0, 0)),             # ln beta
        ],
        out_specs=pl.BlockSpec((1, Lq, D), lambda b: (b, 0, 0)),
        compiler_params=_COMPILER_PARAMS,
        cost_estimate=cost,
    )(x_q, x_kv, kpad, p["wqkv"], p["bqkv"].reshape(1, 3 * D),
      p["wo"], p["bo"].reshape(1, D),
      p["ln_g"].reshape(1, D), p["ln_b"].reshape(1, D))


def pallas_ffn_block(x, p, g, b, eps):
    """Fused FFN + Add&LN. x: (B, L, D)."""
    B, L, D = x.shape
    M = B * L
    dff = p["w1"].shape[1]
    tm = _pick_row_tile(M)
    x2 = x.reshape(M, D)

    kernel = functools.partial(_ffn_ln_kernel, eps=eps)
    cost = pl.CostEstimate(
        flops=int(4 * M * D * dff),
        transcendentals=0,
        bytes_accessed=int(4 * (2 * M * D + 2 * D * dff + dff + 3 * D)),
    )

    out = pl.pallas_call(
        kernel,
        out_shape=jax.ShapeDtypeStruct((M, D), jnp.float32),
        grid=(M // tm,),
        in_specs=[
            pl.BlockSpec((tm, D), lambda i: (i, 0)),
            pl.BlockSpec((D, dff), lambda i: (0, 0)),
            pl.BlockSpec((1, dff), lambda i: (0, 0)),
            pl.BlockSpec((dff, D), lambda i: (0, 0)),
            pl.BlockSpec((1, D), lambda i: (0, 0)),
            pl.BlockSpec((1, D), lambda i: (0, 0)),
            pl.BlockSpec((1, D), lambda i: (0, 0)),
        ],
        out_specs=pl.BlockSpec((tm, D), lambda i: (i, 0)),
        compiler_params=_COMPILER_PARAMS,
        cost_estimate=cost,
    )(x2, p["w1"], p["b1"].reshape(1, dff), p["w2"], p["b2"].reshape(1, D),
      g.reshape(1, D), b.reshape(1, D))
    return out.reshape(B, L, D)


def pallas_linear(x2, w, b):
    """Row-tiled matmul + bias. x2: (M, K), w: (K, N), b: (N,) -> (M, N)."""
    M, K = x2.shape
    N = w.shape[1]
    tm = _pick_row_tile(M)

    cost = pl.CostEstimate(
        flops=int(2 * M * K * N),
        transcendentals=0,
        bytes_accessed=int(4 * (M * K + K * N + N + M * N)),
    )

    return pl.pallas_call(
        _linear_kernel,
        out_shape=jax.ShapeDtypeStruct((M, N), jnp.float32),
        grid=(M // tm,),
        in_specs=[
            pl.BlockSpec((tm, K), lambda i: (i, 0)),
            pl.BlockSpec((K, N), lambda i: (0, 0)),
            pl.BlockSpec((1, N), lambda i: (0, 0)),
        ],
        out_specs=pl.BlockSpec((tm, N), lambda i: (i, 0)),
        compiler_params=_COMPILER_PARAMS,
        cost_estimate=cost,
    )(x2, w, b.reshape(1, N))


# --------------------------- model building blocks --------------------------


def positional_encoding(max_len, d_model):
    pos = jnp.arange(max_len, dtype=jnp.float32)[:, None]
    i = jnp.arange(d_model)[None, :]
    angle = pos / jnp.power(10000.0, (2 * (i // 2)).astype(jnp.float32) / d_model)
    return jnp.where(i % 2 == 0, jnp.sin(angle), jnp.cos(angle)).astype(jnp.float32)


def encoder_layer(x, src_kpad, p, heads_num, eps):
    x = pallas_mha_block(x, x, src_kpad, p["attn"], heads_num, eps, causal=False)
    x = pallas_ffn_block(x, p["ffn"], p["ln2_g"], p["ln2_b"], eps)
    return x


def decoder_layer(x, enc_out, src_kpad, tgt_kpad, p, heads_num, eps):
    # masked self-attention: causal OR key-pad(tgt)
    x = pallas_mha_block(x, x, tgt_kpad, p["self_attn"], heads_num, eps, causal=True)
    # cross-attention: key-pad(src)
    x = pallas_mha_block(x, enc_out, src_kpad, p["cross_attn"], heads_num, eps,
                         causal=False)
    x = pallas_ffn_block(x, p["ffn"], p["ln3_g"], p["ln3_b"], eps)
    return x


def transformer_forward(params, src, tgt, cfg):
    heads_num = cfg["heads_num"]
    eps = cfg["layer_norm_eps"]
    pad_idx = cfg["pad_idx"]
    d_model = cfg["d_model"]

    B, Ls = src.shape
    Lt = tgt.shape[1]

    # Tiny (B, 1, L) key-pad vectors; full masks are rebuilt in-kernel.
    src_kpad = (src == pad_idx).astype(jnp.int32).reshape(B, 1, Ls)
    tgt_kpad = (tgt == pad_idx).astype(jnp.int32).reshape(B, 1, Lt)

    pe = positional_encoding(cfg["max_len"], d_model)

    # ---- encoder ----
    # TODO(synk): embedding lookup + PE add kept in plain JAX (gather glue, not the hot path).
    x = jnp.take(params["src_emb"], src, axis=0) + pe[None, :Ls]
    for p in params["enc_layers"]:
        x = encoder_layer(x, src_kpad, p, heads_num, eps)
    enc_out = x

    # ---- decoder ----
    y = jnp.take(params["tgt_emb"], tgt, axis=0) + pe[None, :Lt]
    for p in params["dec_layers"]:
        y = decoder_layer(y, enc_out, src_kpad, tgt_kpad, p, heads_num, eps)

    # ---- final projection ----
    B, L, D = y.shape
    logits = pallas_linear(y.reshape(B * L, D), params["out_w"], params["out_b"])
    return logits.reshape(B, L, cfg["tgt_vocab_size"])


# ------------------------------ initialization ------------------------------


def _init_linear(key, din, dout):
    w = jax.random.normal(key, (din, dout), jnp.float32) * 0.02
    b = jnp.zeros((dout,), jnp.float32)
    return w, b


def _init_attn(key, d_model, ln_prefix_keys):
    ks = jax.random.split(key, 4)
    wq, bq = _init_linear(ks[0], d_model, d_model)
    wk, bk = _init_linear(ks[1], d_model, d_model)
    wv, bv = _init_linear(ks[2], d_model, d_model)
    wo, bo = _init_linear(ks[3], d_model, d_model)
    p = {
        "wqkv": jnp.concatenate([wq, wk, wv], axis=1),   # (D, 3D)
        "bqkv": jnp.concatenate([bq, bk, bv], axis=0),   # (3D,)
        "wo": wo, "bo": bo,
        "ln_g": jnp.ones((d_model,), jnp.float32),
        "ln_b": jnp.zeros((d_model,), jnp.float32),
    }
    del ln_prefix_keys
    return p


def _init_ffn(key, d_model, d_ff):
    k1, k2 = jax.random.split(key)
    w1, b1 = _init_linear(k1, d_model, d_ff)
    w2, b2 = _init_linear(k2, d_ff, d_model)
    return {"w1": w1, "b1": b1, "w2": w2, "b2": b2}


def init_params(key, cfg):
    d_model, d_ff = cfg["d_model"], cfg["d_ff"]
    ks = jax.random.split(key, 4 + 2 * cfg["N"])

    src_emb = jax.random.normal(ks[0], (cfg["src_vocab_size"], d_model), jnp.float32) * 0.02
    tgt_emb = jax.random.normal(ks[1], (cfg["tgt_vocab_size"], d_model), jnp.float32) * 0.02
    # mimic nn.Embedding(padding_idx=pad_idx): pad row is zero
    src_emb = src_emb.at[cfg["pad_idx"]].set(0.0)
    tgt_emb = tgt_emb.at[cfg["pad_idx"]].set(0.0)

    enc_layers = []
    for i in range(cfg["N"]):
        ka, kf = jax.random.split(ks[2 + i])
        enc_layers.append({
            "attn": _init_attn(ka, d_model, None),
            "ffn": _init_ffn(kf, d_model, d_ff),
            "ln2_g": jnp.ones((d_model,), jnp.float32),
            "ln2_b": jnp.zeros((d_model,), jnp.float32),
        })

    dec_layers = []
    for i in range(cfg["N"]):
        ka, kc, kf = jax.random.split(ks[2 + cfg["N"] + i], 3)
        dec_layers.append({
            "self_attn": _init_attn(ka, d_model, None),
            "cross_attn": _init_attn(kc, d_model, None),
            "ffn": _init_ffn(kf, d_model, d_ff),
            "ln3_g": jnp.ones((d_model,), jnp.float32),
            "ln3_b": jnp.zeros((d_model,), jnp.float32),
        })

    out_w, out_b = _init_linear(ks[-1], d_model, cfg["tgt_vocab_size"])
    return {
        "src_emb": src_emb,
        "tgt_emb": tgt_emb,
        "enc_layers": enc_layers,
        "dec_layers": dec_layers,
        "out_w": out_w,
        "out_b": out_b,
    }


# ----------------------------------- main -----------------------------------


if __name__ == "__main__":
    cfg = dict(
        src_vocab_size=11,
        tgt_vocab_size=13,
        max_len=8,
        pad_idx=0,
        d_model=32,
        N=2,
        d_ff=64,
        heads_num=4,
        dropout_rate=0.1,      # dropout is identity in this inference kernel
        layer_norm_eps=1e-5,
    )

    key = jax.random.PRNGKey(0)
    kp, ks, kt = jax.random.split(key, 3)

    params = init_params(kp, cfg)

    B, L = 2, cfg["max_len"]
    src = jax.random.randint(ks, (B, L), 1, cfg["src_vocab_size"], dtype=jnp.int32)
    tgt = jax.random.randint(kt, (B, L), 1, cfg["tgt_vocab_size"], dtype=jnp.int32)
    # introduce some padding tokens so the pad masks are exercised
    src = src.at[:, -2:].set(cfg["pad_idx"])
    tgt = tgt.at[1, -3:].set(cfg["pad_idx"])

    fwd = jax.jit(lambda p, s, t: transformer_forward(p, s, t, cfg))
    logits = fwd(params, src, tgt)
    logits = jax.block_until_ready(logits)

    assert logits.shape == (B, L, cfg["tgt_vocab_size"]), logits.shape
    assert bool(jnp.all(jnp.isfinite(logits)))
    print("KERNEL_OK")
</pallas_src>

<mosaic_0001>
module attributes {stable_mosaic.version = 11 : i64} {
  func.func @_mha_ln_kernel(%arg0: i32, %arg1: memref<1x8x32xf32, #tpu.memory_space<vmem>>, %arg2: memref<1x8x32xf32, #tpu.memory_space<vmem>>, %arg3: memref<1x1x8xi32, #tpu.memory_space<vmem>>, %arg4: memref<32x96xf32, #tpu.memory_space<vmem>>, %arg5: memref<1x96xf32, #tpu.memory_space<vmem>>, %arg6: memref<32x32xf32, #tpu.memory_space<vmem>>, %arg7: memref<1x32xf32, #tpu.memory_space<vmem>>, %arg8: memref<1x32xf32, #tpu.memory_space<vmem>>, %arg9: memref<1x32xf32, #tpu.memory_space<vmem>>, %arg10: memref<1x8x32xf32, #tpu.memory_space<vmem>>) attributes {dimension_semantics = [#tpu.dimension_semantics<parallel>], iteration_bounds = array<i64: 2>, scalar_prefetch = 0 : i64, scratch_operands = 0 : i64, tpu.core_type = #tpu.core_type<tc>, window_params = [{transform_indices = @transform_0, window_bounds = array<i64: 1, 8, 32>}, {transform_indices = @transform_1, window_bounds = array<i64: 1, 8, 32>}, {transform_indices = @transform_2, window_bounds = array<i64: 1, 1, 8>}, {pipeline_mode = #tpu.pipeline_mode<synchronous>, transform_indices = @transform_3, window_bounds = array<i64: 32, 96>}, {pipeline_mode = #tpu.pipeline_mode<synchronous>, transform_indices = @transform_4, window_bounds = array<i64: 1, 96>}, {pipeline_mode = #tpu.pipeline_mode<synchronous>, transform_indices = @transform_5, window_bounds = array<i64: 32, 32>}, {pipeline_mode = #tpu.pipeline_mode<synchronous>, transform_indices = @transform_6, window_bounds = array<i64: 1, 32>}, {pipeline_mode = #tpu.pipeline_mode<synchronous>, transform_indices = @transform_7, window_bounds = array<i64: 1, 32>}, {pipeline_mode = #tpu.pipeline_mode<synchronous>, transform_indices = @transform_8, window_bounds = array<i64: 1, 32>}, {transform_indices = @transform_9, window_bounds = array<i64: 1, 8, 32>}]} {
    %c0 = arith.constant 0 : index
    %c0_0 = arith.constant 0 : index
    %c0_1 = arith.constant 0 : index
    %0 = vector.load %arg1[%c0, %c0_0, %c0_1] : memref<1x8x32xf32, #tpu.memory_space<vmem>>, vector<1x8x32xf32>
    %1 = vector.shape_cast %0 : vector<1x8x32xf32> to vector<8x32xf32>
    %c0_2 = arith.constant 0 : index
    %c0_3 = arith.constant 0 : index
    %c0_4 = arith.constant 0 : index
    %2 = vector.load %arg2[%c0_2, %c0_3, %c0_4] : memref<1x8x32xf32, #tpu.memory_space<vmem>>, vector<1x8x32xf32>
    %3 = vector.shape_cast %2 : vector<1x8x32xf32> to vector<8x32xf32>
    %c0_5 = arith.constant 0 : index
    %c0_6 = arith.constant 0 : index
    %4 = vector.load %arg4[%c0_5, %c0_6] : memref<32x96xf32, #tpu.memory_space<vmem>>, vector<32x96xf32>
    %c0_7 = arith.constant 0 : index
    %c0_8 = arith.constant 0 : index
    %5 = vector.load %arg5[%c0_7, %c0_8] : memref<1x96xf32, #tpu.memory_space<vmem>>, vector<1x96xf32>
    %6 = arith.truncf %1 : vector<8x32xf32> to vector<8x32xbf16>
    %7 = arith.truncf %3 : vector<8x32xf32> to vector<8x32xbf16>
    %8 = vector.extract_strided_slice %4 {offsets = [0, 0], sizes = [32, 32], strides = [1, 1]} : vector<32x96xf32> to vector<32x32xf32>
    %9 = arith.truncf %8 : vector<32x32xf32> to vector<32x32xbf16>
    %cst = arith.constant dense<0.000000e+00> : vector<8x32xf32>
    %10 = tpu.matmul %6, %9, %cst {dimension_numbers = #tpu.dot_dimension_numbers<[1], [0], [0], [1], [0, 0, 1, 1], [], []>} : vector<8x32xbf16>, vector<32x32xbf16>, vector<8x32xf32> -> vector<8x32xf32>
    %11 = vector.extract_strided_slice %5 {offsets = [0, 0], sizes = [1, 32], strides = [1, 1]} : vector<1x96xf32> to vector<1x32xf32>
    %12 = vector.broadcast %11 : vector<1x32xf32> to vector<8x32xf32>
    %13 = arith.addf %10, %12 : vector<8x32xf32>
    %14 = vector.extract_strided_slice %4 {offsets = [0, 32], sizes = [32, 32], strides = [1, 1]} : vector<32x96xf32> to vector<32x32xf32>
    %15 = arith.truncf %14 : vector<32x32xf32> to vector<32x32xbf16>
    %cst_9 = arith.constant dense<0.000000e+00> : vector<8x32xf32>
    %16 = tpu.matmul %7, %15, %cst_9 {dimension_numbers = #tpu.dot_dimension_numbers<[1], [0], [0], [1], [0, 0, 1, 1], [], []>} : vector<8x32xbf16>, vector<32x32xbf16>, vector<8x32xf32> -> vector<8x32xf32>
    %17 = vector.extract_strided_slice %5 {offsets = [0, 32], sizes = [1, 32], strides = [1, 1]} : vector<1x96xf32> to vector<1x32xf32>
    %18 = vector.broadcast %17 : vector<1x32xf32> to vector<8x32xf32>
    %19 = arith.addf %16, %18 : vector<8x32xf32>
    %20 = vector.extract_strided_slice %4 {offsets = [0, 64], sizes = [32, 32], strides = [1, 1]} : vector<32x96xf32> to vector<32x32xf32>
    %21 = arith.truncf %20 : vector<32x32xf32> to vector<32x32xbf16>
    %cst_10 = arith.constant dense<0.000000e+00> : vector<8x32xf32>
    %22 = tpu.matmul %7, %21, %cst_10 {dimension_numbers = #tpu.dot_dimension_numbers<[1], [0], [0], [1], [0, 0, 1, 1], [], []>} : vector<8x32xbf16>, vector<32x32xbf16>, vector<8x32xf32> -> vector<8x32xf32>
    %23 = vector.extract_strided_slice %5 {offsets = [0, 64], sizes = [1, 32], strides = [1, 1]} : vector<1x96xf32> to vector<1x32xf32>
    %24 = vector.broadcast %23 : vector<1x32xf32> to vector<8x32xf32>
    %25 = arith.addf %22, %24 : vector<8x32xf32>
    %cst_11 = arith.constant 0.353553385 : f32
    %26 = vector.broadcast %cst_11 : f32 to vector<8x32xf32>
    %27 = arith.mulf %13, %26 : vector<8x32xf32>
    %c0_12 = arith.constant 0 : index
    %c0_13 = arith.constant 0 : index
    %c0_14 = arith.constant 0 : index
    %28 = vector.load %arg3[%c0_12, %c0_13, %c0_14] : memref<1x1x8xi32, #tpu.memory_space<vmem>>, vector<1x1x8xi32>
    %29 = vector.shape_cast %28 : vector<1x1x8xi32> to vector<1x8xi32>
    %c0_i32 = arith.constant 0 : i32
    %30 = vector.broadcast %c0_i32 : i32 to vector<1x8xi32>
    %31 = arith.cmpi ne, %29, %30 : vector<1x8xi32>
    %32 = vector.shape_cast %31 : vector<1x8xi1> to vector<1x8xi1>
    %33 = vector.broadcast %32 : vector<1x8xi1> to vector<8x8xi1>
    %34 = vector.extract_strided_slice %27 {offsets = [0, 0], sizes = [8, 8], strides = [1, 1]} : vector<8x32xf32> to vector<8x8xf32>
    %35 = arith.truncf %34 : vector<8x8xf32> to vector<8x8xbf16>
    %36 = vector.extract_strided_slice %19 {offsets = [0, 0], sizes = [8, 8], strides = [1, 1]} : vector<8x32xf32> to vector<8x8xf32>
    %37 = arith.truncf %36 : vector<8x8xf32> to vector<8x8xbf16>
    %38 = vector.extract_strided_slice %25 {offsets = [0, 0], sizes = [8, 8], strides = [1, 1]} : vector<8x32xf32> to vector<8x8xf32>
    %39 = arith.truncf %38 : vector<8x8xf32> to vector<8x8xbf16>
    %cst_15 = arith.constant dense<0.000000e+00> : vector<8x8xf32>
    %40 = tpu.matmul %35, %37, %cst_15 {dimension_numbers = #tpu.dot_dimension_numbers<[1], [1], [0], [0], [0, 0, 1, 0], [], []>} : vector<8x8xbf16>, vector<8x8xbf16>, vector<8x8xf32> -> vector<8x8xf32>
    %cst_16 = arith.constant -1.000000e+09 : f32
    %41 = vector.broadcast %cst_16 : f32 to vector<8x8xf32>
    %42 = arith.select %33, %41, %40 : vector<8x8xi1>, vector<8x8xf32>
    %cst_17 = arith.constant dense<0xFF800000> : vector<8xf32>
    %43 = vector.multi_reduction <maximumf>, %42, %cst_17 [1] : vector<8x8xf32> to vector<8xf32>
    %44 = vector.shape_cast %43 : vector<8xf32> to vector<8x1xf32>
    %45 = vector.broadcast %44 : vector<8x1xf32> to vector<8x8xf32>
    %46 = arith.subf %42, %45 : vector<8x8xf32>
    %47 = math.exp %46 : vector<8x8xf32>
    %cst_18 = arith.constant dense<0.000000e+00> : vector<8xf32>
    %48 = vector.multi_reduction <add>, %47, %cst_18 [1] : vector<8x8xf32> to vector<8xf32>
    %49 = vector.shape_cast %48 : vector<8xf32> to vector<8x1xf32>
    %50 = tpu.reciprocal %49 {approx = true} : vector<8x1xf32> -> vector<8x1xf32>
    %51 = vector.broadcast %50 : vector<8x1xf32> to vector<8x8xf32>
    %52 = arith.mulf %47, %51 : vector<8x8xf32>
    %53 = arith.truncf %52 : vector<8x8xf32> to vector<8x8xbf16>
    %cst_19 = arith.constant dense<0.000000e+00> : vector<8x8xf32>
    %54 = tpu.matmul %53, %39, %cst_19 {dimension_numbers = #tpu.dot_dimension_numbers<[1], [0], [0], [1], [0, 0, 1, 1], [], []>} : vector<8x8xbf16>, vector<8x8xbf16>, vector<8x8xf32> -> vector<8x8xf32>
    %55 = vector.extract_strided_slice %27 {offsets = [0, 8], sizes = [8, 8], strides = [1, 1]} : vector<8x32xf32> to vector<8x8xf32>
    %56 = arith.truncf %55 : vector<8x8xf32> to vector<8x8xbf16>
    %57 = vector.extract_strided_slice %19 {offsets = [0, 8], sizes = [8, 8], strides = [1, 1]} : vector<8x32xf32> to vector<8x8xf32>
    %58 = arith.truncf %57 : vector<8x8xf32> to vector<8x8xbf16>
    %59 = vector.extract_strided_slice %25 {offsets = [0, 8], sizes = [8, 8], strides = [1, 1]} : vector<8x32xf32> to vector<8x8xf32>
    %60 = arith.truncf %59 : vector<8x8xf32> to vector<8x8xbf16>
    %cst_20 = arith.constant dense<0.000000e+00> : vector<8x8xf32>
    %61 = tpu.matmul %56, %58, %cst_20 {dimension_numbers = #tpu.dot_dimension_numbers<[1], [1], [0], [0], [0, 0, 1, 0], [], []>} : vector<8x8xbf16>, vector<8x8xbf16>, vector<8x8xf32> -> vector<8x8xf32>
    %cst_21 = arith.constant -1.000000e+09 : f32
    %62 = vector.broadcast %cst_21 : f32 to vector<8x8xf32>
    %63 = arith.select %33, %62, %61 : vector<8x8xi1>, vector<8x8xf32>
    %cst_22 = arith.constant dense<0xFF800000> : vector<8xf32>
    %64 = vector.multi_reduction <maximumf>, %63, %cst_22 [1] : vector<8x8xf32> to vector<8xf32>
    %65 = vector.shape_cast %64 : vector<8xf32> to vector<8x1xf32>
    %66 = vector.broadcast %65 : vector<8x1xf32> to vector<8x8xf32>
    %67 = arith.subf %63, %66 : vector<8x8xf32>
    %68 = math.exp %67 : vector<8x8xf32>
    %cst_23 = arith.constant dense<0.000000e+00> : vector<8xf32>
    %69 = vector.multi_reduction <add>, %68, %cst_23 [1] : vector<8x8xf32> to vector<8xf32>
    %70 = vector.shape_cast %69 : vector<8xf32> to vector<8x1xf32>
    %71 = tpu.reciprocal %70 {approx = true} : vector<8x1xf32> -> vector<8x1xf32>
    %72 = vector.broadcast %71 : vector<8x1xf32> to vector<8x8xf32>
    %73 = arith.mulf %68, %72 : vector<8x8xf32>
    %74 = arith.truncf %73 : vector<8x8xf32> to vector<8x8xbf16>
    %cst_24 = arith.constant dense<0.000000e+00> : vector<8x8xf32>
    %75 = tpu.matmul %74, %60, %cst_24 {dimension_numbers = #tpu.dot_dimension_numbers<[1], [0], [0], [1], [0, 0, 1, 1], [], []>} : vector<8x8xbf16>, vector<8x8xbf16>, vector<8x8xf32> -> vector<8x8xf32>
    %76 = vector.extract_strided_slice %27 {offsets = [0, 16], sizes = [8, 8], strides = [1, 1]} : vector<8x32xf32> to vector<8x8xf32>
    %77 = arith.truncf %76 : vector<8x8xf32> to vector<8x8xbf16>
    %78 = vector.extract_strided_slice %19 {offsets = [0, 16], sizes = [8, 8], strides = [1, 1]} : vector<8x32xf32> to vector<8x8xf32>
    %79 = arith.truncf %78 : vector<8x8xf32> to vector<8x8xbf16>
    %80 = vector.extract_strided_slice %25 {offsets = [0, 16], sizes = [8, 8], strides = [1, 1]} : vector<8x32xf32> to vector<8x8xf32>
    %81 = arith.truncf %80 : vector<8x8xf32> to vector<8x8xbf16>
    %cst_25 = arith.constant dense<0.000000e+00> : vector<8x8xf32>
    %82 = tpu.matmul %77, %79, %cst_25 {dimension_numbers = #tpu.dot_dimension_numbers<[1], [1], [0], [0], [0, 0, 1, 0], [], []>} : vector<8x8xbf16>, vector<8x8xbf16>, vector<8x8xf32> -> vector<8x8xf32>
    %cst_26 = arith.constant -1.000000e+09 : f32
    %83 = vector.broadcast %cst_26 : f32 to vector<8x8xf32>
    %84 = arith.select %33, %83, %82 : vector<8x8xi1>, vector<8x8xf32>
    %cst_27 = arith.constant dense<0xFF800000> : vector<8xf32>
    %85 = vector.multi_reduction <maximumf>, %84, %cst_27 [1] : vector<8x8xf32> to vector<8xf32>
    %86 = vector.shape_cast %85 : vector<8xf32> to vector<8x1xf32>
    %87 = vector.broadcast %86 : vector<8x1xf32> to vector<8x8xf32>
    %88 = arith.subf %84, %87 : vector<8x8xf32>
    %89 = math.exp %88 : vector<8x8xf32>
    %cst_28 = arith.constant dense<0.000000e+00> : vector<8xf32>
    %90 = vector.multi_reduction <add>, %89, %cst_28 [1] : vector<8x8xf32> to vector<8xf32>
    %91 = vector.shape_cast %90 : vector<8xf32> to vector<8x1xf32>
    %92 = tpu.reciprocal %91 {approx = true} : vector<8x1xf32> -> vector<8x1xf32>
    %93 = vector.broadcast %92 : vector<8x1xf32> to vector<8x8xf32>
    %94 = arith.mulf %89, %93 : vector<8x8xf32>
    %95 = arith.truncf %94 : vector<8x8xf32> to vector<8x8xbf16>
    %cst_29 = arith.constant dense<0.000000e+00> : vector<8x8xf32>
    %96 = tpu.matmul %95, %81, %cst_29 {dimension_numbers = #tpu.dot_dimension_numbers<[1], [0], [0], [1], [0, 0, 1, 1], [], []>} : vector<8x8xbf16>, vector<8x8xbf16>, vector<8x8xf32> -> vector<8x8xf32>
    %97 = vector.extract_strided_slice %27 {offsets = [0, 24], sizes = [8, 8], strides = [1, 1]} : vector<8x32xf32> to vector<8x8xf32>
    %98 = arith.truncf %97 : vector<8x8xf32> to vector<8x8xbf16>
    %99 = vector.extract_strided_slice %19 {offsets = [0, 24], sizes = [8, 8], strides = [1, 1]} : vector<8x32xf32> to vector<8x8xf32>
    %100 = arith.truncf %99 : vector<8x8xf32> to vector<8x8xbf16>
    %101 = vector.extract_strided_slice %25 {offsets = [0, 24], sizes = [8, 8], strides = [1, 1]} : vector<8x32xf32> to vector<8x8xf32>
    %102 = arith.truncf %101 : vector<8x8xf32> to vector<8x8xbf16>
    %cst_30 = arith.constant dense<0.000000e+00> : vector<8x8xf32>
    %103 = tpu.matmul %98, %100, %cst_30 {dimension_numbers = #tpu.dot_dimension_numbers<[1], [1], [0], [0], [0, 0, 1, 0], [], []>} : vector<8x8xbf16>, vector<8x8xbf16>, vector<8x8xf32> -> vector<8x8xf32>
    %cst_31 = arith.constant -1.000000e+09 : f32
    %104 = vector.broadcast %cst_31 : f32 to vector<8x8xf32>
    %105 = arith.select %33, %104, %103 : vector<8x8xi1>, vector<8x8xf32>
    %cst_32 = arith.constant dense<0xFF800000> : vector<8xf32>
    %106 = vector.multi_reduction <maximumf>, %105, %cst_32 [1] : vector<8x8xf32> to vector<8xf32>
    %107 = vector.shape_cast %106 : vector<8xf32> to vector<8x1xf32>
    %108 = vector.broadcast %107 : vector<8x1xf32> to vector<8x8xf32>
    %109 = arith.subf %105, %108 : vector<8x8xf32>
    %110 = math.exp %109 : vector<8x8xf32>
    %cst_33 = arith.constant dense<0.000000e+00> : vector<8xf32>
    %111 = vector.multi_reduction <add>, %110, %cst_33 [1] : vector<8x8xf32> to vector<8xf32>
    %112 = vector.shape_cast %111 : vector<8xf32> to vector<8x1xf32>
    %113 = tpu.reciprocal %112 {approx = true} : vector<8x1xf32> -> vector<8x1xf32>
    %114 = vector.broadcast %113 : vector<8x1xf32> to vector<8x8xf32>
    %115 = arith.mulf %110, %114 : vector<8x8xf32>
    %116 = arith.truncf %115 : vector<8x8xf32> to vector<8x8xbf16>
    %cst_34 = arith.constant dense<0.000000e+00> : vector<8x8xf32>
    %117 = tpu.matmul %116, %102, %cst_34 {dimension_numbers = #tpu.dot_dimension_numbers<[1], [0], [0], [1], [0, 0, 1, 1], [], []>} : vector<8x8xbf16>, vector<8x8xbf16>, vector<8x8xf32> -> vector<8x8xf32>
    %118 = tpu.concatenate %54, %75, %96, %117 in 1 : vector<8x8xf32>, vector<8x8xf32>, vector<8x8xf32>, vector<8x8xf32> -> vector<8x32xf32>
    %119 = arith.truncf %118 : vector<8x32xf32> to vector<8x32xbf16>
    %c0_35 = arith.constant 0 : index
    %c0_36 = arith.constant 0 : index
    %120 = vector.load %arg6[%c0_35, %c0_36] : memref<32x32xf32, #tpu.memory_space<vmem>>, vector<32x32xf32>
    %121 = arith.truncf %120 : vector<32x32xf32> to vector<32x32xbf16>
    %cst_37 = arith.constant dense<0.000000e+00> : vector<8x32xf32>
    %122 = tpu.matmul %119, %121, %cst_37 {dimension_numbers = #tpu.dot_dimension_numbers<[1], [0], [0], [1], [0, 0, 1, 1], [], []>} : vector<8x32xbf16>, vector<32x32xbf16>, vector<8x32xf32> -> vector<8x32xf32>
    %c0_38 = arith.constant 0 : index
    %c0_39 = arith.constant 0 : index
    %123 = vector.load %arg7[%c0_38, %c0_39] : memref<1x32xf32, #tpu.memory_space<vmem>>, vector<1x32xf32>
    %124 = vector.broadcast %123 : vector<1x32xf32> to vector<8x32xf32>
    %125 = arith.addf %122, %124 : vector<8x32xf32>
    %126 = arith.addf %1, %125 : vector<8x32xf32>
    %cst_40 = arith.constant dense<0.000000e+00> : vector<8xf32>
    %127 = vector.multi_reduction <add>, %126, %cst_40 [1] : vector<8x32xf32> to vector<8xf32>
    %128 = vector.shape_cast %127 : vector<8xf32> to vector<8x1xf32>
    %cst_41 = arith.constant 3.200000e+01 : f32
    %129 = vector.broadcast %cst_41 : f32 to vector<8x1xf32>
    %130 = arith.divf %128, %129 : vector<8x1xf32>
    %131 = vector.broadcast %130 : vector<8x1xf32> to vector<8x32xf32>
    %132 = arith.subf %126, %131 : vector<8x32xf32>
    %133 = arith.mulf %132, %132 : vector<8x32xf32>
    %cst_42 = arith.constant dense<0.000000e+00> : vector<8xf32>
    %134 = vector.multi_reduction <add>, %133, %cst_42 [1] : vector<8x32xf32> to vector<8xf32>
    %135 = vector.shape_cast %134 : vector<8xf32> to vector<8x1xf32>
    %cst_43 = arith.constant 3.200000e+01 : f32
    %136 = vector.broadcast %cst_43 : f32 to vector<8x1xf32>
    %137 = arith.divf %135, %136 : vector<8x1xf32>
    %138 = vector.broadcast %130 : vector<8x1xf32> to vector<8x32xf32>
    %139 = arith.subf %126, %138 : vector<8x32xf32>
    %cst_44 = arith.constant 9.99999974E-6 : f32
    %140 = vector.broadcast %cst_44 : f32 to vector<8x1xf32>
    %141 = arith.addf %137, %140 : vector<8x1xf32>
    %142 = math.rsqrt %141 : vector<8x1xf32>
    %143 = vector.broadcast %142 : vector<8x1xf32> to vector<8x32xf32>
    %144 = arith.mulf %139, %143 : vector<8x32xf32>
    %c0_45 = arith.constant 0 : index
    %c0_46 = arith.constant 0 : index
    %145 = vector.load %arg8[%c0_45, %c0_46] : memref<1x32xf32, #tpu.memory_space<vmem>>, vector<1x32xf32>
    %146 = vector.broadcast %145 : vector<1x32xf32> to vector<8x32xf32>
    %147 = arith.mulf %144, %146 : vector<8x32xf32>
    %c0_47 = arith.constant 0 : index
    %c0_48 = arith.constant 0 : index
    %148 = vector.load %arg9[%c0_47, %c0_48] : memref<1x32xf32, #tpu.memory_space<vmem>>, vector<1x32xf32>
    %149 = vector.broadcast %148 : vector<1x32xf32> to vector<8x32xf32>
    %150 = arith.addf %147, %149 : vector<8x32xf32>
    %c0_49 = arith.constant 0 : index
    %c0_50 = arith.constant 0 : index
    %c0_51 = arith.constant 0 : index
    %151 = vector.load %arg10[%c0_49, %c0_50, %c0_51] : memref<1x8x32xf32, #tpu.memory_space<vmem>>, vector<1x8x32xf32>
    %152 = vector.shape_cast %151 : vector<1x8x32xf32> to vector<8x32xf32>
    %153 = vector.shape_cast %150 : vector<8x32xf32> to vector<1x8x32xf32>
    tpu.vector_store %arg10[%c0_49, %c0_50, %c0_51], %153 {strides = array<i32>} : memref<1x8x32xf32, #tpu.memory_space<vmem>>, vector<1x8x32xf32>,
    return
  }
  func.func @transform_0(%arg0: i32) -> (i32, i32, i32) {
    %c0_i32 = arith.constant 0 : i32
    %c0_i32_0 = arith.constant 0 : i32
    %c0_i32_1 = arith.constant 0 : i32
    return %arg0, %c0_i32, %c0_i32_0 : i32, i32, i32
  }
  func.func @transform_1(%arg0: i32) -> (i32, i32, i32) {
    %c0_i32 = arith.constant 0 : i32
    %c0_i32_0 = arith.constant 0 : i32
    %c0_i32_1 = arith.constant 0 : i32
    return %arg0, %c0_i32, %c0_i32_0 : i32, i32, i32
  }
  func.func @transform_2(%arg0: i32) -> (i32, i32, i32) {
    %c0_i32 = arith.constant 0 : i32
    %c0_i32_0 = arith.constant 0 : i32
    %c0_i32_1 = arith.constant 0 : i32
    return %arg0, %c0_i32, %c0_i32_0 : i32, i32, i32
  }
  func.func @transform_3(%arg0: i32) -> (i32, i32) {
    %c0_i32 = arith.constant 0 : i32
    %c0_i32_0 = arith.constant 0 : i32
    %c0_i32_1 = arith.constant 0 : i32
    return %c0_i32, %c0_i32_0 : i32, i32
  }
  func.func @transform_4(%arg0: i32) -> (i32, i32) {
    %c0_i32 = arith.constant 0 : i32
    %c0_i32_0 = arith.constant 0 : i32
    %c0_i32_1 = arith.constant 0 : i32
    return %c0_i32, %c0_i32_0 : i32, i32
  }
  func.func @transform_5(%arg0: i32) -> (i32, i32) {
    %c0_i32 = arith.constant 0 : i32
    %c0_i32_0 = arith.constant 0 : i32
    %c0_i32_1 = arith.constant 0 : i32
    return %c0_i32, %c0_i32_0 : i32, i32
  }
  func.func @transform_6(%arg0: i32) -> (i32, i32) {
    %c0_i32 = arith.constant 0 : i32
    %c0_i32_0 = arith.constant 0 : i32
    %c0_i32_1 = arith.constant 0 : i32
    return %c0_i32, %c0_i32_0 : i32, i32
  }
  func.func @transform_7(%arg0: i32) -> (i32, i32) {
    %c0_i32 = arith.constant 0 : i32
    %c0_i32_0 = arith.constant 0 : i32
    %c0_i32_1 = arith.constant 0 : i32
    return %c0_i32, %c0_i32_0 : i32, i32
  }
  func.func @transform_8(%arg0: i32) -> (i32, i32) {
    %c0_i32 = arith.constant 0 : i32
    %c0_i32_0 = arith.constant 0 : i32
    %c0_i32_1 = arith.constant 0 : i32
    return %c0_i32, %c0_i32_0 : i32, i32
  }
  func.func @transform_9(%arg0: i32) -> (i32, i32, i32) {
    %c0_i32 = arith.constant 0 : i32
    %c0_i32_0 = arith.constant 0 : i32
    %c0_i32_1 = arith.constant 0 : i32
    return %arg0, %c0_i32, %c0_i32_0 : i32, i32, i32
  }
}

module attributes {stable_mosaic.version = 11 : i64} {
  func.func @_mha_ln_kernel(%arg0: i32, %arg1: memref<1x8x32xf32, #tpu.memory_space<vmem>>, %arg2: memref<1x8x32xf32, #tpu.memory_space<vmem>>, %arg3: memref<1x1x8xi32, #tpu.memory_space<vmem>>, %arg4: memref<32x96xf32, #tpu.memory_space<vmem>>, %arg5: memref<1x96xf32, #tpu.memory_space<vmem>>, %arg6: memref<32x32xf32, #tpu.memory_space<vmem>>, %arg7: memref<1x32xf32, #tpu.memory_space<vmem>>, %arg8: memref<1x32xf32, #tpu.memory_space<vmem>>, %arg9: memref<1x32xf32, #tpu.memory_space<vmem>>, %arg10: memref<1x8x32xf32, #tpu.memory_space<vmem>>) attributes {dimension_semantics = [#tpu.dimension_semantics<parallel>], iteration_bounds = array<i64: 2>, scalar_prefetch = 0 : i64, scratch_operands = 0 : i64, tpu.core_type = #tpu.core_type<tc>, window_params = [{transform_indices = @transform_0, window_bounds = array<i64: 1, 8, 32>}, {transform_indices = @transform_1, window_bounds = array<i64: 1, 8, 32>}, {transform_indices = @transform_2, window_bounds = array<i64: 1, 1, 8>}, {pipeline_mode = #tpu.pipeline_mode<synchronous>, transform_indices = @transform_3, window_bounds = array<i64: 32, 96>}, {pipeline_mode = #tpu.pipeline_mode<synchronous>, transform_indices = @transform_4, window_bounds = array<i64: 1, 96>}, {pipeline_mode = #tpu.pipeline_mode<synchronous>, transform_indices = @transform_5, window_bounds = array<i64: 32, 32>}, {pipeline_mode = #tpu.pipeline_mode<synchronous>, transform_indices = @transform_6, window_bounds = array<i64: 1, 32>}, {pipeline_mode = #tpu.pipeline_mode<synchronous>, transform_indices = @transform_7, window_bounds = array<i64: 1, 32>}, {pipeline_mode = #tpu.pipeline_mode<synchronous>, transform_indices = @transform_8, window_bounds = array<i64: 1, 32>}, {transform_indices = @transform_9, window_bounds = array<i64: 1, 8, 32>}]} {
    %c0 = arith.constant 0 : index
    %c0_0 = arith.constant 0 : index
    %c0_1 = arith.constant 0 : index
    %0 = vector.load %arg1[%c0, %c0_0, %c0_1] : memref<1x8x32xf32, #tpu.memory_space<vmem>>, vector<1x8x32xf32>
    %1 = vector.shape_cast %0 : vector<1x8x32xf32> to vector<8x32xf32>
    %c0_2 = arith.constant 0 : index
    %c0_3 = arith.constant 0 : index
    %c0_4 = arith.constant 0 : index
    %2 = vector.load %arg2[%c0_2, %c0_3, %c0_4] : memref<1x8x32xf32, #tpu.memory_space<vmem>>, vector<1x8x32xf32>
    %3 = vector.shape_cast %2 : vector<1x8x32xf32> to vector<8x32xf32>
    %c0_5 = arith.constant 0 : index
    %c0_6 = arith.constant 0 : index
    %4 = vector.load %arg4[%c0_5, %c0_6] : memref<32x96xf32, #tpu.memory_space<vmem>>, vector<32x96xf32>
    %c0_7 = arith.constant 0 : index
    %c0_8 = arith.constant 0 : index
    %5 = vector.load %arg5[%c0_7, %c0_8] : memref<1x96xf32, #tpu.memory_space<vmem>>, vector<1x96xf32>
    %6 = arith.truncf %1 : vector<8x32xf32> to vector<8x32xbf16>
    %7 = arith.truncf %3 : vector<8x32xf32> to vector<8x32xbf16>
    %8 = vector.extract_strided_slice %4 {offsets = [0, 0], sizes = [32, 32], strides = [1, 1]} : vector<32x96xf32> to vector<32x32xf32>
    %9 = arith.truncf %8 : vector<32x32xf32> to vector<32x32xbf16>
    %cst = arith.constant dense<0.000000e+00> : vector<8x32xf32>
    %10 = tpu.matmul %6, %9, %cst {dimension_numbers = #tpu.dot_dimension_numbers<[1], [0], [0], [1], [0, 0, 1, 1], [], []>} : vector<8x32xbf16>, vector<32x32xbf16>, vector<8x32xf32> -> vector<8x32xf32>
    %11 = vector.extract_strided_slice %5 {offsets = [0, 0], sizes = [1, 32], strides = [1, 1]} : vector<1x96xf32> to vector<1x32xf32>
    %12 = vector.broadcast %11 : vector<1x32xf32> to vector<8x32xf32>
    %13 = arith.addf %10, %12 : vector<8x32xf32>
    %14 = vector.extract_strided_slice %4 {offsets = [0, 32], sizes = [32, 32], strides = [1, 1]} : vector<32x96xf32> to vector<32x32xf32>
    %15 = arith.truncf %14 : vector<32x32xf32> to vector<32x32xbf16>
    %cst_9 = arith.constant dense<0.000000e+00> : vector<8x32xf32>
    %16 = tpu.matmul %7, %15, %cst_9 {dimension_numbers = #tpu.dot_dimension_numbers<[1], [0], [0], [1], [0, 0, 1, 1], [], []>} : vector<8x32xbf16>, vector<32x32xbf16>, vector<8x32xf32> -> vector<8x32xf32>
    %17 = vector.extract_strided_slice %5 {offsets = [0, 32], sizes = [1, 32], strides = [1, 1]} : vector<1x96xf32> to vector<1x32xf32>
    %18 = vector.broadcast %17 : vector<1x32xf32> to vector<8x32xf32>
    %19 = arith.addf %16, %18 : vector<8x32xf32>
    %20 = vector.extract_strided_slice %4 {offsets = [0, 64], sizes = [32, 32], strides = [1, 1]} : vector<32x96xf32> to vector<32x32xf32>
    %21 = arith.truncf %20 : vector<32x32xf32> to vector<32x32xbf16>
    %cst_10 = arith.constant dense<0.000000e+00> : vector<8x32xf32>
    %22 = tpu.matmul %7, %21, %cst_10 {dimension_numbers = #tpu.dot_dimension_numbers<[1], [0], [0], [1], [0, 0, 1, 1], [], []>} : vector<8x32xbf16>, vector<32x32xbf16>, vector<8x32xf32> -> vector<8x32xf32>
    %23 = vector.extract_strided_slice %5 {offsets = [0, 64], sizes = [1, 32], strides = [1, 1]} : vector<1x96xf32> to vector<1x32xf32>
    %24 = vector.broadcast %23 : vector<1x32xf32> to vector<8x32xf32>
    %25 = arith.addf %22, %24 : vector<8x32xf32>
    %cst_11 = arith.constant 0.353553385 : f32
    %26 = vector.broadcast %cst_11 : f32 to vector<8x32xf32>
    %27 = arith.mulf %13, %26 : vector<8x32xf32>
    %c0_12 = arith.constant 0 : index
    %c0_13 = arith.constant 0 : index
    %c0_14 = arith.constant 0 : index
    %28 = vector.load %arg3[%c0_12, %c0_13, %c0_14] : memref<1x1x8xi32, #tpu.memory_space<vmem>>, vector<1x1x8xi32>
    %29 = vector.shape_cast %28 : vector<1x1x8xi32> to vector<1x8xi32>
    %c0_i32 = arith.constant 0 : i32
    %30 = vector.broadcast %c0_i32 : i32 to vector<1x8xi32>
    %31 = arith.cmpi ne, %29, %30 : vector<1x8xi32>
    %32 = vector.shape_cast %31 : vector<1x8xi1> to vector<1x8xi1>
    %33 = vector.broadcast %32 : vector<1x8xi1> to vector<8x8xi1>
    %34 = tpu.iota {dimensions = array<i32: 0>} : vector<8x8xi32>
    %35 = tpu.iota {dimensions = array<i32: 1>} : vector<8x8xi32>
    %36 = arith.cmpi sgt, %35, %34 : vector<8x8xi32>
    %37 = arith.ori %33, %36 : vector<8x8xi1>
    %38 = vector.extract_strided_slice %27 {offsets = [0, 0], sizes = [8, 8], strides = [1, 1]} : vector<8x32xf32> to vector<8x8xf32>
    %39 = arith.truncf %38 : vector<8x8xf32> to vector<8x8xbf16>
    %40 = vector.extract_strided_slice %19 {offsets = [0, 0], sizes = [8, 8], strides = [1, 1]} : vector<8x32xf32> to vector<8x8xf32>
    %41 = arith.truncf %40 : vector<8x8xf32> to vector<8x8xbf16>
    %42 = vector.extract_strided_slice %25 {offsets = [0, 0], sizes = [8, 8], strides = [1, 1]} : vector<8x32xf32> to vector<8x8xf32>
    %43 = arith.truncf %42 : vector<8x8xf32> to vector<8x8xbf16>
    %cst_15 = arith.constant dense<0.000000e+00> : vector<8x8xf32>
    %44 = tpu.matmul %39, %41, %cst_15 {dimension_numbers = #tpu.dot_dimension_numbers<[1], [1], [0], [0], [0, 0, 1, 0], [], []>} : vector<8x8xbf16>, vector<8x8xbf16>, vector<8x8xf32> -> vector<8x8xf32>
    %cst_16 = arith.constant -1.000000e+09 : f32
    %45 = vector.broadcast %cst_16 : f32 to vector<8x8xf32>
    %46 = arith.select %37, %45, %44 : vector<8x8xi1>, vector<8x8xf32>
    %cst_17 = arith.constant dense<0xFF800000> : vector<8xf32>
    %47 = vector.multi_reduction <maximumf>, %46, %cst_17 [1] : vector<8x8xf32> to vector<8xf32>
    %48 = vector.shape_cast %47 : vector<8xf32> to vector<8x1xf32>
    %49 = vector.broadcast %48 : vector<8x1xf32> to vector<8x8xf32>
    %50 = arith.subf %46, %49 : vector<8x8xf32>
    %51 = math.exp %50 : vector<8x8xf32>
    %cst_18 = arith.constant dense<0.000000e+00> : vector<8xf32>
    %52 = vector.multi_reduction <add>, %51, %cst_18 [1] : vector<8x8xf32> to vector<8xf32>
    %53 = vector.shape_cast %52 : vector<8xf32> to vector<8x1xf32>
    %54 = tpu.reciprocal %53 {approx = true} : vector<8x1xf32> -> vector<8x1xf32>
    %55 = vector.broadcast %54 : vector<8x1xf32> to vector<8x8xf32>
    %56 = arith.mulf %51, %55 : vector<8x8xf32>
    %57 = arith.truncf %56 : vector<8x8xf32> to vector<8x8xbf16>
    %cst_19 = arith.constant dense<0.000000e+00> : vector<8x8xf32>
    %58 = tpu.matmul %57, %43, %cst_19 {dimension_numbers = #tpu.dot_dimension_numbers<[1], [0], [0], [1], [0, 0, 1, 1], [], []>} : vector<8x8xbf16>, vector<8x8xbf16>, vector<8x8xf32> -> vector<8x8xf32>
    %59 = vector.extract_strided_slice %27 {offsets = [0, 8], sizes = [8, 8], strides = [1, 1]} : vector<8x32xf32> to vector<8x8xf32>
    %60 = arith.truncf %59 : vector<8x8xf32> to vector<8x8xbf16>
    %61 = vector.extract_strided_slice %19 {offsets = [0, 8], sizes = [8, 8], strides = [1, 1]} : vector<8x32xf32> to vector<8x8xf32>
    %62 = arith.truncf %61 : vector<8x8xf32> to vector<8x8xbf16>
    %63 = vector.extract_strided_slice %25 {offsets = [0, 8], sizes = [8, 8], strides = [1, 1]} : vector<8x32xf32> to vector<8x8xf32>
    %64 = arith.truncf %63 : vector<8x8xf32> to vector<8x8xbf16>
    %cst_20 = arith.constant dense<0.000000e+00> : vector<8x8xf32>
    %65 = tpu.matmul %60, %62, %cst_20 {dimension_numbers = #tpu.dot_dimension_numbers<[1], [1], [0], [0], [0, 0, 1, 0], [], []>} : vector<8x8xbf16>, vector<8x8xbf16>, vector<8x8xf32> -> vector<8x8xf32>
    %cst_21 = arith.constant -1.000000e+09 : f32
    %66 = vector.broadcast %cst_21 : f32 to vector<8x8xf32>
    %67 = arith.select %37, %66, %65 : vector<8x8xi1>, vector<8x8xf32>
    %cst_22 = arith.constant dense<0xFF800000> : vector<8xf32>
    %68 = vector.multi_reduction <maximumf>, %67, %cst_22 [1] : vector<8x8xf32> to vector<8xf32>
    %69 = vector.shape_cast %68 : vector<8xf32> to vector<8x1xf32>
    %70 = vector.broadcast %69 : vector<8x1xf32> to vector<8x8xf32>
    %71 = arith.subf %67, %70 : vector<8x8xf32>
    %72 = math.exp %71 : vector<8x8xf32>
    %cst_23 = arith.constant dense<0.000000e+00> : vector<8xf32>
    %73 = vector.multi_reduction <add>, %72, %cst_23 [1] : vector<8x8xf32> to vector<8xf32>
    %74 = vector.shape_cast %73 : vector<8xf32> to vector<8x1xf32>
    %75 = tpu.reciprocal %74 {approx = true} : vector<8x1xf32> -> vector<8x1xf32>
    %76 = vector.broadcast %75 : vector<8x1xf32> to vector<8x8xf32>
    %77 = arith.mulf %72, %76 : vector<8x8xf32>
    %78 = arith.truncf %77 : vector<8x8xf32> to vector<8x8xbf16>
    %cst_24 = arith.constant dense<0.000000e+00> : vector<8x8xf32>
    %79 = tpu.matmul %78, %64, %cst_24 {dimension_numbers = #tpu.dot_dimension_numbers<[1], [0], [0], [1], [0, 0, 1, 1], [], []>} : vector<8x8xbf16>, vector<8x8xbf16>, vector<8x8xf32> -> vector<8x8xf32>
    %80 = vector.extract_strided_slice %27 {offsets = [0, 16], sizes = [8, 8], strides = [1, 1]} : vector<8x32xf32> to vector<8x8xf32>
    %81 = arith.truncf %80 : vector<8x8xf32> to vector<8x8xbf16>
    %82 = vector.extract_strided_slice %19 {offsets = [0, 16], sizes = [8, 8], strides = [1, 1]} : vector<8x32xf32> to vector<8x8xf32>
    %83 = arith.truncf %82 : vector<8x8xf32> to vector<8x8xbf16>
    %84 = vector.extract_strided_slice %25 {offsets = [0, 16], sizes = [8, 8], strides = [1, 1]} : vector<8x32xf32> to vector<8x8xf32>
    %85 = arith.truncf %84 : vector<8x8xf32> to vector<8x8xbf16>
    %cst_25 = arith.constant dense<0.000000e+00> : vector<8x8xf32>
    %86 = tpu.matmul %81, %83, %cst_25 {dimension_numbers = #tpu.dot_dimension_numbers<[1], [1], [0], [0], [0, 0, 1, 0], [], []>} : vector<8x8xbf16>, vector<8x8xbf16>, vector<8x8xf32> -> vector<8x8xf32>
    %cst_26 = arith.constant -1.000000e+09 : f32
    %87 = vector.broadcast %cst_26 : f32 to vector<8x8xf32>
    %88 = arith.select %37, %87, %86 : vector<8x8xi1>, vector<8x8xf32>
    %cst_27 = arith.constant dense<0xFF800000> : vector<8xf32>
    %89 = vector.multi_reduction <maximumf>, %88, %cst_27 [1] : vector<8x8xf32> to vector<8xf32>
    %90 = vector.shape_cast %89 : vector<8xf32> to vector<8x1xf32>
    %91 = vector.broadcast %90 : vector<8x1xf32> to vector<8x8xf32>
    %92 = arith.subf %88, %91 : vector<8x8xf32>
    %93 = math.exp %92 : vector<8x8xf32>
    %cst_28 = arith.constant dense<0.000000e+00> : vector<8xf32>
    %94 = vector.multi_reduction <add>, %93, %cst_28 [1] : vector<8x8xf32> to vector<8xf32>
    %95 = vector.shape_cast %94 : vector<8xf32> to vector<8x1xf32>
    %96 = tpu.reciprocal %95 {approx = true} : vector<8x1xf32> -> vector<8x1xf32>
    %97 = vector.broadcast %96 : vector<8x1xf32> to vector<8x8xf32>
    %98 = arith.mulf %93, %97 : vector<8x8xf32>
    %99 = arith.truncf %98 : vector<8x8xf32> to vector<8x8xbf16>
    %cst_29 = arith.constant dense<0.000000e+00> : vector<8x8xf32>
    %100 = tpu.matmul %99, %85, %cst_29 {dimension_numbers = #tpu.dot_dimension_numbers<[1], [0], [0], [1], [0, 0, 1, 1], [], []>} : vector<8x8xbf16>, vector<8x8xbf16>, vector<8x8xf32> -> vector<8x8xf32>
    %101 = vector.extract_strided_slice %27 {offsets = [0, 24], sizes = [8, 8], strides = [1, 1]} : vector<8x32xf32> to vector<8x8xf32>
    %102 = arith.truncf %101 : vector<8x8xf32> to vector<8x8xbf16>
    %103 = vector.extract_strided_slice %19 {offsets = [0, 24], sizes = [8, 8], strides = [1, 1]} : vector<8x32xf32> to vector<8x8xf32>
    %104 = arith.truncf %103 : vector<8x8xf32> to vector<8x8xbf16>
    %105 = vector.extract_strided_slice %25 {offsets = [0, 24], sizes = [8, 8], strides = [1, 1]} : vector<8x32xf32> to vector<8x8xf32>
    %106 = arith.truncf %105 : vector<8x8xf32> to vector<8x8xbf16>
    %cst_30 = arith.constant dense<0.000000e+00> : vector<8x8xf32>
    %107 = tpu.matmul %102, %104, %cst_30 {dimension_numbers = #tpu.dot_dimension_numbers<[1], [1], [0], [0], [0, 0, 1, 0], [], []>} : vector<8x8xbf16>, vector<8x8xbf16>, vector<8x8xf32> -> vector<8x8xf32>
    %cst_31 = arith.constant -1.000000e+09 : f32
    %108 = vector.broadcast %cst_31 : f32 to vector<8x8xf32>
    %109 = arith.select %37, %108, %107 : vector<8x8xi1>, vector<8x8xf32>
    %cst_32 = arith.constant dense<0xFF800000> : vector<8xf32>
    %110 = vector.multi_reduction <maximumf>, %109, %cst_32 [1] : vector<8x8xf32> to vector<8xf32>
    %111 = vector.shape_cast %110 : vector<8xf32> to vector<8x1xf32>
    %112 = vector.broadcast %111 : vector<8x1xf32> to vector<8x8xf32>
    %113 = arith.subf %109, %112 : vector<8x8xf32>
    %114 = math.exp %113 : vector<8x8xf32>
    %cst_33 = arith.constant dense<0.000000e+00> : vector<8xf32>
    %115 = vector.multi_reduction <add>, %114, %cst_33 [1] : vector<8x8xf32> to vector<8xf32>
    %116 = vector.shape_cast %115 : vector<8xf32> to vector<8x1xf32>
    %117 = tpu.reciprocal %116 {approx = true} : vector<8x1xf32> -> vector<8x1xf32>
    %118 = vector.broadcast %117 : vector<8x1xf32> to vector<8x8xf32>
    %119 = arith.mulf %114, %118 : vector<8x8xf32>
    %120 = arith.truncf %119 : vector<8x8xf32> to vector<8x8xbf16>
    %cst_34 = arith.constant dense<0.000000e+00> : vector<8x8xf32>
    %121 = tpu.matmul %120, %106, %cst_34 {dimension_numbers = #tpu.dot_dimension_numbers<[1], [0], [0], [1], [0, 0, 1, 1], [], []>} : vector<8x8xbf16>, vector<8x8xbf16>, vector<8x8xf32> -> vector<8x8xf32>
    %122 = tpu.concatenate %58, %79, %100, %121 in 1 : vector<8x8xf32>, vector<8x8xf32>, vector<8x8xf32>, vector<8x8xf32> -> vector<8x32xf32>
    %123 = arith.truncf %122 : vector<8x32xf32> to vector<8x32xbf16>
    %c0_35 = arith.constant 0 : index
    %c0_36 = arith.constant 0 : index
    %124 = vector.load %arg6[%c0_35, %c0_36] : memref<32x32xf32, #tpu.memory_space<vmem>>, vector<32x32xf32>
    %125 = arith.truncf %124 : vector<32x32xf32> to vector<32x32xbf16>
    %cst_37 = arith.constant dense<0.000000e+00> : vector<8x32xf32>
    %126 = tpu.matmul %123, %125, %cst_37 {dimension_numbers = #tpu.dot_dimension_numbers<[1], [0], [0], [1], [0, 0, 1, 1], [], []>} : vector<8x32xbf16>, vector<32x32xbf16>, vector<8x32xf32> -> vector<8x32xf32>
    %c0_38 = arith.constant 0 : index
    %c0_39 = arith.constant 0 : index
    %127 = vector.load %arg7[%c0_38, %c0_39] : memref<1x32xf32, #tpu.memory_space<vmem>>, vector<1x32xf32>
    %128 = vector.broadcast %127 : vector<1x32xf32> to vector<8x32xf32>
    %129 = arith.addf %126, %128 : vector<8x32xf32>
    %130 = arith.addf %1, %129 : vector<8x32xf32>
    %cst_40 = arith.constant dense<0.000000e+00> : vector<8xf32>
    %131 = vector.multi_reduction <add>, %130, %cst_40 [1] : vector<8x32xf32> to vector<8xf32>
    %132 = vector.shape_cast %131 : vector<8xf32> to vector<8x1xf32>
    %cst_41 = arith.constant 3.200000e+01 : f32
    %133 = vector.broadcast %cst_41 : f32 to vector<8x1xf32>
    %134 = arith.divf %132, %133 : vector<8x1xf32>
    %135 = vector.broadcast %134 : vector<8x1xf32> to vector<8x32xf32>
    %136 = arith.subf %130, %135 : vector<8x32xf32>
    %137 = arith.mulf %136, %136 : vector<8x32xf32>
    %cst_42 = arith.constant dense<0.000000e+00> : vector<8xf32>
    %138 = vector.multi_reduction <add>, %137, %cst_42 [1] : vector<8x32xf32> to vector<8xf32>
    %139 = vector.shape_cast %138 : vector<8xf32> to vector<8x1xf32>
    %cst_43 = arith.constant 3.200000e+01 : f32
    %140 = vector.broadcast %cst_43 : f32 to vector<8x1xf32>
    %141 = arith.divf %139, %140 : vector<8x1xf32>
    %142 = vector.broadcast %134 : vector<8x1xf32> to vector<8x32xf32>
    %143 = arith.subf %130, %142 : vector<8x32xf32>
    %cst_44 = arith.constant 9.99999974E-6 : f32
    %144 = vector.broadcast %cst_44 : f32 to vector<8x1xf32>
    %145 = arith.addf %141, %144 : vector<8x1xf32>
    %146 = math.rsqrt %145 : vector<8x1xf32>
    %147 = vector.broadcast %146 : vector<8x1xf32> to vector<8x32xf32>
    %148 = arith.mulf %143, %147 : vector<8x32xf32>
    %c0_45 = arith.constant 0 : index
    %c0_46 = arith.constant 0 : index
    %149 = vector.load %arg8[%c0_45, %c0_46] : memref<1x32xf32, #tpu.memory_space<vmem>>, vector<1x32xf32>
    %150 = vector.broadcast %149 : vector<1x32xf32> to vector<8x32xf32>
    %151 = arith.mulf %148, %150 : vector<8x32xf32>
    %c0_47 = arith.constant 0 : index
    %c0_48 = arith.constant 0 : index
    %152 = vector.load %arg9[%c0_47, %c0_48] : memref<1x32xf32, #tpu.memory_space<vmem>>, vector<1x32xf32>
    %153 = vector.broadcast %152 : vector<1x32xf32> to vector<8x32xf32>
    %154 = arith.addf %151, %153 : vector<8x32xf32>
    %c0_49 = arith.constant 0 : index
    %c0_50 = arith.constant 0 : index
    %c0_51 = arith.constant 0 : index
    %155 = vector.load %arg10[%c0_49, %c0_50, %c0_51] : memref<1x8x32xf32, #tpu.memory_space<vmem>>, vector<1x8x32xf32>
    %156 = vector.shape_cast %155 : vector<1x8x32xf32> to vector<8x32xf32>
    %157 = vector.shape_cast %154 : vector<8x32xf32> to vector<1x8x32xf32>
    tpu.vector_store %arg10[%c0_49, %c0_50, %c0_51], %157 {strides = array<i32>} : memref<1x8x32xf32, #tpu.memory_space<vmem>>, vector<1x8x32xf32>,
    return
  }
  func.func @transform_0(%arg0: i32) -> (i32, i32, i32) {
    %c0_i32 = arith.constant 0 : i32
    %c0_i32_0 = arith.constant 0 : i32
    %c0_i32_1 = arith.constant 0 : i32
    return %arg0, %c0_i32, %c0_i32_0 : i32, i32, i32
  }
  func.func @transform_1(%arg0: i32) -> (i32, i32, i32) {
    %c0_i32 = arith.constant 0 : i32
    %c0_i32_0 = arith.constant 0 : i32
    %c0_i32_1 = arith.constant 0 : i32
    return %arg0, %c0_i32, %c0_i32_0 : i32, i32, i32
  }
  func.func @transform_2(%arg0: i32) -> (i32, i32, i32) {
    %c0_i32 = arith.constant 0 : i32
    %c0_i32_0 = arith.constant 0 : i32
    %c0_i32_1 = arith.constant 0 : i32
    return %arg0, %c0_i32, %c0_i32_0 : i32, i32, i32
  }
  func.func @transform_3(%arg0: i32) -> (i32, i32) {
    %c0_i32 = arith.constant 0 : i32
    %c0_i32_0 = arith.constant 0 : i32
    %c0_i32_1 = arith.constant 0 : i32
    return %c0_i32, %c0_i32_0 : i32, i32
  }
  func.func @transform_4(%arg0: i32) -> (i32, i32) {
    %c0_i32 = arith.constant 0 : i32
    %c0_i32_0 = arith.constant 0 : i32
    %c0_i32_1 = arith.constant 0 : i32
    return %c0_i32, %c0_i32_0 : i32, i32
  }
  func.func @transform_5(%arg0: i32) -> (i32, i32) {
    %c0_i32 = arith.constant 0 : i32
    %c0_i32_0 = arith.constant 0 : i32
    %c0_i32_1 = arith.constant 0 : i32
    return %c0_i32, %c0_i32_0 : i32, i32
  }
  func.func @transform_6(%arg0: i32) -> (i32, i32) {
    %c0_i32 = arith.constant 0 : i32
    %c0_i32_0 = arith.constant 0 : i32
    %c0_i32_1 = arith.constant 0 : i32
    return %c0_i32, %c0_i32_0 : i32, i32
  }
  func.func @transform_7(%arg0: i32) -> (i32, i32) {
    %c0_i32 = arith.constant 0 : i32
    %c0_i32_0 = arith.constant 0 : i32
    %c0_i32_1 = arith.constant 0 : i32
    return %c0_i32, %c0_i32_0 : i32, i32
  }
  func.func @transform_8(%arg0: i32) -> (i32, i32) {
    %c0_i32 = arith.constant 0 : i32
    %c0_i32_0 = arith.constant 0 : i32
    %c0_i32_1 = arith.constant 0 : i32
    return %c0_i32, %c0_i32_0 : i32, i32
  }
  func.func @transform_9(%arg0: i32) -> (i32, i32, i32) {
    %c0_i32 = arith.constant 0 : i32
    %c0_i32_0 = arith.constant 0 : i32
    %c0_i32_1 = arith.constant 0 : i32
    return %arg0, %c0_i32, %c0_i32_0 : i32, i32, i32
  }
}

module attributes {stable_mosaic.version = 11 : i64} {
  func.func @_linear_kernel(%arg0: i32, %arg1: memref<16x32xf32, #tpu.memory_space<vmem>>, %arg2: memref<32x13xf32, #tpu.memory_space<vmem>>, %arg3: memref<1x13xf32, #tpu.memory_space<vmem>>, %arg4: memref<16x13xf32, #tpu.memory_space<vmem>>) attributes {dimension_semantics = [#tpu.dimension_semantics<parallel>], iteration_bounds = array<i64: 1>, scalar_prefetch = 0 : i64, scratch_operands = 0 : i64, tpu.core_type = #tpu.core_type<tc>, window_params = [{transform_indices = @transform_0, window_bounds = array<i64: 16, 32>}, {pipeline_mode = #tpu.pipeline_mode<synchronous>, transform_indices = @transform_1, window_bounds = array<i64: 32, 13>}, {pipeline_mode = #tpu.pipeline_mode<synchronous>, transform_indices = @transform_2, window_bounds = array<i64: 1, 13>}, {transform_indices = @transform_3, window_bounds = array<i64: 16, 13>}]} {
    %c0 = arith.constant 0 : index
    %c0_0 = arith.constant 0 : index
    %0 = vector.load %arg1[%c0, %c0_0] : memref<16x32xf32, #tpu.memory_space<vmem>>, vector<16x32xf32>
    %1 = arith.truncf %0 : vector<16x32xf32> to vector<16x32xbf16>
    %c0_1 = arith.constant 0 : index
    %c0_2 = arith.constant 0 : index
    %2 = vector.load %arg2[%c0_1, %c0_2] : memref<32x13xf32, #tpu.memory_space<vmem>>, vector<32x13xf32>
    %3 = arith.truncf %2 : vector<32x13xf32> to vector<32x13xbf16>
    %cst = arith.constant dense<0.000000e+00> : vector<16x13xf32>
    %4 = tpu.matmul %1, %3, %cst {dimension_numbers = #tpu.dot_dimension_numbers<[1], [0], [0], [1], [0, 0, 1, 1], [], []>} : vector<16x32xbf16>, vector<32x13xbf16>, vector<16x13xf32> -> vector<16x13xf32>
    %c0_3 = arith.constant 0 : index
    %c0_4 = arith.constant 0 : index
    %5 = vector.load %arg3[%c0_3, %c0_4] : memref<1x13xf32, #tpu.memory_space<vmem>>, vector<1x13xf32>
    %6 = vector.broadcast %5 : vector<1x13xf32> to vector<16x13xf32>
    %7 = arith.addf %4, %6 : vector<16x13xf32>
    %c0_5 = arith.constant 0 : index
    %c0_6 = arith.constant 0 : index
    %8 = vector.load %arg4[%c0_5, %c0_6] : memref<16x13xf32, #tpu.memory_space<vmem>>, vector<16x13xf32>
    tpu.vector_store %arg4[%c0_5, %c0_6], %7 {strides = array<i32>} : memref<16x13xf32, #tpu.memory_space<vmem>>, vector<16x13xf32>,
    return
  }
  func.func @transform_0(%arg0: i32) -> (i32, i32) {
    %c0_i32 = arith.constant 0 : i32
    %c0_i32_0 = arith.constant 0 : i32
    return %arg0, %c0_i32 : i32, i32
  }
  func.func @transform_1(%arg0: i32) -> (i32, i32) {
    %c0_i32 = arith.constant 0 : i32
    %c0_i32_0 = arith.constant 0 : i32
    %c0_i32_1 = arith.constant 0 : i32
    return %c0_i32, %c0_i32_0 : i32, i32
  }
  func.func @transform_2(%arg0: i32) -> (i32, i32) {
    %c0_i32 = arith.constant 0 : i32
    %c0_i32_0 = arith.constant 0 : i32
    %c0_i32_1 = arith.constant 0 : i32
    return %c0_i32, %c0_i32_0 : i32, i32
  }
  func.func @transform_3(%arg0: i32) -> (i32, i32) {
    %c0_i32 = arith.constant 0 : i32
    %c0_i32_0 = arith.constant 0 : i32
    return %arg0, %c0_i32 : i32, i32
  }
}

module attributes {stable_mosaic.version = 11 : i64} {
  func.func @_ffn_ln_kernel(%arg0: i32, %arg1: memref<16x32xf32, #tpu.memory_space<vmem>>, %arg2: memref<32x64xf32, #tpu.memory_space<vmem>>, %arg3: memref<1x64xf32, #tpu.memory_space<vmem>>, %arg4: memref<64x32xf32, #tpu.memory_space<vmem>>, %arg5: memref<1x32xf32, #tpu.memory_space<vmem>>, %arg6: memref<1x32xf32, #tpu.memory_space<vmem>>, %arg7: memref<1x32xf32, #tpu.memory_space<vmem>>, %arg8: memref<16x32xf32, #tpu.memory_space<vmem>>) attributes {dimension_semantics = [#tpu.dimension_semantics<parallel>], iteration_bounds = array<i64: 1>, scalar_prefetch = 0 : i64, scratch_operands = 0 : i64, tpu.core_type = #tpu.core_type<tc>, window_params = [{transform_indices = @transform_0, window_bounds = array<i64: 16, 32>}, {pipeline_mode = #tpu.pipeline_mode<synchronous>, transform_indices = @transform_1, window_bounds = array<i64: 32, 64>}, {pipeline_mode = #tpu.pipeline_mode<synchronous>, transform_indices = @transform_2, window_bounds = array<i64: 1, 64>}, {pipeline_mode = #tpu.pipeline_mode<synchronous>, transform_indices = @transform_3, window_bounds = array<i64: 64, 32>}, {pipeline_mode = #tpu.pipeline_mode<synchronous>, transform_indices = @transform_4, window_bounds = array<i64: 1, 32>}, {pipeline_mode = #tpu.pipeline_mode<synchronous>, transform_indices = @transform_5, window_bounds = array<i64: 1, 32>}, {pipeline_mode = #tpu.pipeline_mode<synchronous>, transform_indices = @transform_6, window_bounds = array<i64: 1, 32>}, {transform_indices = @transform_7, window_bounds = array<i64: 16, 32>}]} {
    %c0 = arith.constant 0 : index
    %c0_0 = arith.constant 0 : index
    %0 = vector.load %arg1[%c0, %c0_0] : memref<16x32xf32, #tpu.memory_space<vmem>>, vector<16x32xf32>
    %1 = arith.truncf %0 : vector<16x32xf32> to vector<16x32xbf16>
    %c0_1 = arith.constant 0 : index
    %c0_2 = arith.constant 0 : index
    %2 = vector.load %arg2[%c0_1, %c0_2] : memref<32x64xf32, #tpu.memory_space<vmem>>, vector<32x64xf32>
    %3 = arith.truncf %2 : vector<32x64xf32> to vector<32x64xbf16>
    %cst = arith.constant dense<0.000000e+00> : vector<16x64xf32>
    %4 = tpu.matmul %1, %3, %cst {dimension_numbers = #tpu.dot_dimension_numbers<[1], [0], [0], [1], [0, 0, 1, 1], [], []>} : vector<16x32xbf16>, vector<32x64xbf16>, vector<16x64xf32> -> vector<16x64xf32>
    %c0_3 = arith.constant 0 : index
    %c0_4 = arith.constant 0 : index
    %5 = vector.load %arg3[%c0_3, %c0_4] : memref<1x64xf32, #tpu.memory_space<vmem>>, vector<1x64xf32>
    %6 = vector.broadcast %5 : vector<1x64xf32> to vector<16x64xf32>
    %7 = arith.addf %4, %6 : vector<16x64xf32>
    %cst_5 = arith.constant 0.000000e+00 : f32
    %8 = vector.broadcast %cst_5 : f32 to vector<16x64xf32>
    %9 = arith.maximumf %7, %8 : vector<16x64xf32>
    %10 = arith.truncf %9 : vector<16x64xf32> to vector<16x64xbf16>
    %c0_6 = arith.constant 0 : index
    %c0_7 = arith.constant 0 : index
    %11 = vector.load %arg4[%c0_6, %c0_7] : memref<64x32xf32, #tpu.memory_space<vmem>>, vector<64x32xf32>
    %12 = arith.truncf %11 : vector<64x32xf32> to vector<64x32xbf16>
    %cst_8 = arith.constant dense<0.000000e+00> : vector<16x32xf32>
    %13 = tpu.matmul %10, %12, %cst_8 {dimension_numbers = #tpu.dot_dimension_numbers<[1], [0], [0], [1], [0, 0, 1, 1], [], []>} : vector<16x64xbf16>, vector<64x32xbf16>, vector<16x32xf32> -> vector<16x32xf32>
    %c0_9 = arith.constant 0 : index
    %c0_10 = arith.constant 0 : index
    %14 = vector.load %arg5[%c0_9, %c0_10] : memref<1x32xf32, #tpu.memory_space<vmem>>, vector<1x32xf32>
    %15 = vector.broadcast %14 : vector<1x32xf32> to vector<16x32xf32>
    %16 = arith.addf %13, %15 : vector<16x32xf32>
    %17 = arith.addf %0, %16 : vector<16x32xf32>
    %cst_11 = arith.constant dense<0.000000e+00> : vector<16xf32>
    %18 = vector.multi_reduction <add>, %17, %cst_11 [1] : vector<16x32xf32> to vector<16xf32>
    %19 = vector.shape_cast %18 : vector<16xf32> to vector<16x1xf32>
    %cst_12 = arith.constant 3.200000e+01 : f32
    %20 = vector.broadcast %cst_12 : f32 to vector<16x1xf32>
    %21 = arith.divf %19, %20 : vector<16x1xf32>
    %22 = vector.broadcast %21 : vector<16x1xf32> to vector<16x32xf32>
    %23 = arith.subf %17, %22 : vector<16x32xf32>
    %24 = arith.mulf %23, %23 : vector<16x32xf32>
    %cst_13 = arith.constant dense<0.000000e+00> : vector<16xf32>
    %25 = vector.multi_reduction <add>, %24, %cst_13 [1] : vector<16x32xf32> to vector<16xf32>
    %26 = vector.shape_cast %25 : vector<16xf32> to vector<16x1xf32>
    %cst_14 = arith.constant 3.200000e+01 : f32
    %27 = vector.broadcast %cst_14 : f32 to vector<16x1xf32>
    %28 = arith.divf %26, %27 : vector<16x1xf32>
    %29 = vector.broadcast %21 : vector<16x1xf32> to vector<16x32xf32>
    %30 = arith.subf %17, %29 : vector<16x32xf32>
    %cst_15 = arith.constant 9.99999974E-6 : f32
    %31 = vector.broadcast %cst_15 : f32 to vector<16x1xf32>
    %32 = arith.addf %28, %31 : vector<16x1xf32>
    %33 = math.rsqrt %32 : vector<16x1xf32>
    %34 = vector.broadcast %33 : vector<16x1xf32> to vector<16x32xf32>
    %35 = arith.mulf %30, %34 : vector<16x32xf32>
    %c0_16 = arith.constant 0 : index
    %c0_17 = arith.constant 0 : index
    %36 = vector.load %arg6[%c0_16, %c0_17] : memref<1x32xf32, #tpu.memory_space<vmem>>, vector<1x32xf32>
    %37 = vector.broadcast %36 : vector<1x32xf32> to vector<16x32xf32>
    %38 = arith.mulf %35, %37 : vector<16x32xf32>
    %c0_18 = arith.constant 0 : index
    %c0_19 = arith.constant 0 : index
    %39 = vector.load %arg7[%c0_18, %c0_19] : memref<1x32xf32, #tpu.memory_space<vmem>>, vector<1x32xf32>
    %40 = vector.broadcast %39 : vector<1x32xf32> to vector<16x32xf32>
    %41 = arith.addf %38, %40 : vector<16x32xf32>
    %c0_20 = arith.constant 0 : index
    %c0_21 = arith.constant 0 : index
    %42 = vector.load %arg8[%c0_20, %c0_21] : memref<16x32xf32, #tpu.memory_space<vmem>>, vector<16x32xf32>
    tpu.vector_store %arg8[%c0_20, %c0_21], %41 {strides = array<i32>} : memref<16x32xf32, #tpu.memory_space<vmem>>, vector<16x32xf32>,
    return
  }
  func.func @transform_0(%arg0: i32) -> (i32, i32) {
    %c0_i32 = arith.constant 0 : i32
    %c0_i32_0 = arith.constant 0 : i32
    return %arg0, %c0_i32 : i32, i32
  }
  func.func @transform_1(%arg0: i32) -> (i32, i32) {
    %c0_i32 = arith.constant 0 : i32
    %c0_i32_0 = arith.constant 0 : i32
    %c0_i32_1 = arith.constant 0 : i32
    return %c0_i32, %c0_i32_0 : i32, i32
  }
  func.func @transform_2(%arg0: i32) -> (i32, i32) {
    %c0_i32 = arith.constant 0 : i32
    %c0_i32_0 = arith.constant 0 : i32
    %c0_i32_1 = arith.constant 0 : i32
    return %c0_i32, %c0_i32_0 : i32, i32
  }
  func.func @transform_3(%arg0: i32) -> (i32, i32) {
    %c0_i32 = arith.constant 0 : i32
    %c0_i32_0 = arith.constant 0 : i32
    %c0_i32_1 = arith.constant 0 : i32
    return %c0_i32, %c0_i32_0 : i32, i32
  }
  func.func @transform_4(%arg0: i32) -> (i32, i32) {
    %c0_i32 = arith.constant 0 : i32
    %c0_i32_0 = arith.constant 0 : i32
    %c0_i32_1 = arith.constant 0 : i32
    return %c0_i32, %c0_i32_0 : i32, i32
  }
  func.func @transform_5(%arg0: i32) -> (i32, i32) {
    %c0_i32 = arith.constant 0 : i32
    %c0_i32_0 = arith.constant 0 : i32
    %c0_i32_1 = arith.constant 0 : i32
    return %c0_i32, %c0_i32_0 : i32, i32
  }
  func.func @transform_6(%arg0: i32) -> (i32, i32) {
    %c0_i32 = arith.constant 0 : i32
    %c0_i32_0 = arith.constant 0 : i32
    %c0_i32_1 = arith.constant 0 : i32
    return %c0_i32, %c0_i32_0 : i32, i32
  }
  func.func @transform_7(%arg0: i32) -> (i32, i32) {
    %c0_i32 = arith.constant 0 : i32
    %c0_i32_0 = arith.constant 0 : i32
    return %arg0, %c0_i32 : i32, i32
  }
}

</mosaic_0001>

<llo_original>
// kernel: _lambda_.21
$region0: #{_lambda_.21}
  #allocation0 [shape = 'u32[]', space=smem, size = 0x4, offset = 0x4, fixed_abs, tag = 'smem constant byte address 0x4 - core index']
  #allocation1 [shape = 'u32[144,128]{1,0:T(1,128)}', space=vmem, size = 0x12000, scoped, tag = 'internal scratch']
  %s0 = inlined_call_operand.vmem [shape: f32[16,32], index: 0, kind: input, shape index: {}]
  %s1 = inlined_call_operand.vmem [shape: f32[32,13], index: 1, kind: input, shape index: {}]
  %s2 = inlined_call_operand.vmem [shape: f32[1,13], index: 2, kind: input, shape index: {}]
  %s3 = inlined_call_operand.hbm [shape: f32[16,13], index: 3, kind: output, shape index: {}]
  %s4 = sld [smem:[#allocation0]]
  $region22: #{_lambda_.21} parent=0
    _
  %s6 = ssub.s32 1, %s4
  %s7 = scalar_select 0, %s6, %s4
  $region1: #{_lambda_.21} parent=0
    #allocation2 [shape = 'u8[8192]{0}', space=vmem, size = 0x2000, scoped, tag = 'output window, operand 0, single buffered']
    #allocation3 [shape = 's32[1]{0}', space=sflag, size = 0x4, scoped, tag = 'scoped memory for _lambda_.21']
    %8 = vsyncpa [#allocation3], 0
    // Predicated region
    $region2: #{_lambda_.21} parent=1 // pred_check
      _
    $region3: #{_lambda_.21} parent=1 // pred_check_branch
      %10 = sbr.rel (0) target = $region5
    $region4: #{_lambda_.21} parent=1 // pred_region
      _
    $region5: #{_lambda_.21} parent=1 // pred_fallthru
      _
    // Predicated region
    $region6: #{_lambda_.21} parent=1 // pred_check
      _
    $region7: #{_lambda_.21} parent=1 // pred_check_branch
      %12 = sbr.rel (0) target = $region9
    $region8: #{_lambda_.21} parent=1 // pred_region
      _
    $region9: #{_lambda_.21} parent=1 // pred_fallthru
      _
    // Predicated region
    $region10: #{_lambda_.21} parent=1 // pred_check
      _
    $region11: #{_lambda_.21} parent=1 // pred_check_branch
      %14 = sbr.rel (0) target = $region13
    $region12: #{_lambda_.21} parent=1 // pred_region
      _
    $region13: #{_lambda_.21} parent=1 // pred_fallthru
      _
    %v16 = vld [vmem:[%s0] sm:$0xff]
    %v17 = vld [vmem:[%s0 + $0x8] sm:$0xff]
    %v18 = vpack.c.bf16 %v17, %v16
    %v19 = vld [vmem:[%s1] sm:$0xff]
    %v20 = vld [vmem:[%s1 + $0x8] sm:$0xff]
    %v21 = vld [vmem:[%s1 + $0x10] sm:$0xff]
    %v22 = vld [vmem:[%s1 + $0x18] sm:$0xff]
    %v23 = vpack.c.bf16 %v20, %v19
    %v24 = vpack.c.bf16 %v22, %v21
    %v25 = vld [vmem:[%s2] sm:$0x1]
    %v27 = vlaneseq
    %v28 = vshrl.u32 %v27, 7
    %v29 = vsub.s32 0, %v28
    %v30 = vrot.slane %v25, %v29
    %vm32 = vcmask 261120
    %v34 = vsel %vm32, %v18, 0
    %36 = vmatprep.subr.bf16.mxu0 0
    %37 = vmatpush1.bf16.msra.mxu0 0
    %38 = vmatprep.subr.bf16.mxu0 0
    %39 = vmatpush1.bf16.msra.mxu0 0
    %40 = vmatprep.subr.bf16.mxu0 0
    %41 = vmatpush1.bf16.msra.mxu0 0
    %42 = vmatprep.subr.bf16.mxu0 0
    %43 = vmatpush1.bf16.msra.mxu0 0
    %44 = vmatprep.subr.bf16.mxu0 0
    %45 = vmatpush1.bf16.msra.mxu0 0
    %46 = vmatprep.subr.bf16.mxu0 0
    %47 = vmatpush1.bf16.msra.mxu0 0
    %48 = vmatprep.subr.bf16.mxu0 0
    %49 = vmatpush1.bf16.msra.mxu0 %v24
    %50 = vmatprep.subr.bf16.mxu0 0
    %51 = vmatpush1.bf16.msra.mxu0 %v23
    %52 = vmatprep.subr.bf16.mxu0 0
    %53 = vmatpush2.bf16.msra.mxu0 0
    %54 = vmatprep.subr.bf16.mxu0 0
    %55 = vmatpush2.bf16.msra.mxu0 0
    %56 = vmatprep.subr.bf16.mxu0 0
    %57 = vmatpush2.bf16.msra.mxu0 0
    %58 = vmatprep.subr.bf16.mxu0 0
    %59 = vmatpush2.bf16.msra.mxu0 0
    %60 = vmatprep.subr.bf16.mxu0 0
    %61 = vmatpush2.bf16.msra.mxu0 0
    %62 = vmatprep.subr.bf16.mxu0 0
    %63 = vmatpush2.bf16.msra.mxu0 0
    %64 = vmatprep.subr.bf16.mxu0 0
    %65 = vmatpush2.bf16.msra.mxu0 0
    %66 = vmatprep.subr.bf16.mxu0 0
    %67 = vmatpush2.bf16.msra.mxu0 0
    %68 = vmatprep.mubr.bf16.mxu0 0
    %69 = vmatmul.mubr.bf16.gmra.mxu0 %v34
    %v70 = vpop.f32.mrf.mxu0
    %v71 = vadd.f32 %v30, %v70
    %v72 = vpop.f32.mrf.mxu0
    %v73 = vpop.f32.mrf.mxu0
    %v74 = vadd.f32 %v30, %v73
    %v75 = vpop.f32.mrf.mxu0
    %76 = vdwg.mxu0
    %vm77 = vcmask 105472
    %78 = vst.msk [vmem:[#allocation2] sm:$0xff] %vm77, %v71
    %79 = vst.msk [vmem:[#allocation2 + $0x8] sm:$0xff] %vm77, %v74
    // Predicated region
    $region14: #{_lambda_.21} parent=1 // pred_check
      _
    $region15: #{_lambda_.21} parent=1 // pred_check_branch
      %81 = sbr.rel (0) target = $region17
    $region16: #{_lambda_.21} parent=1 // pred_region
      %s83 = ssub.s32 256, 256
      %84 = vsyncadd [#allocation3], %s83
      %s85 = sshll.u32 [#allocation2], 4
      %s86 = int_to_ptr.vmem [resolvable:$true] %s85
      %91 = dma.vmem_to_hbm [thread:$0]  %s86, 256, %s3, [#allocation3], 128, 128, 8
    $region17: #{_lambda_.21} parent=1 // pred_fallthru
      _
    // Predicated region
    $region18: #{_lambda_.21} parent=1 // pred_check
      _
    $region19: #{_lambda_.21} parent=1 // pred_check_branch
      %93 = sbr.rel (0) target = $region21
    $region20: #{_lambda_.21} parent=1 // pred_region
      %94 = dma.done [#allocation3], 256
    $region21: #{_lambda_.21} parent=1 // pred_fallthru
      _
    %95 = vsyncpa [#allocation3], 1

// kernel: _lambda_.12
$region0: #{_lambda_.12}
  #allocation0 [shape = 'u32[]', space=smem, size = 0x4, offset = 0x4, fixed_abs, tag = 'smem constant byte address 0x4 - core index']
  #allocation1 [shape = 'u32[144,128]{1,0:T(1,128)}', space=vmem, size = 0x12000, scoped, tag = 'internal scratch']
  %s0 = inlined_call_operand.vmem [shape: f32[16,32], index: 0, kind: input, shape index: {}]
  %s1 = inlined_call_operand.vmem [shape: f32[32,64], index: 1, kind: input, shape index: {}]
  %s2 = inlined_call_operand.vmem [shape: f32[1,64], index: 2, kind: input, shape index: {}]
  %s3 = inlined_call_operand.vmem [shape: f32[64,32], index: 3, kind: input, shape index: {}]
  %s4 = inlined_call_operand.vmem [shape: f32[1,32], index: 4, kind: input, shape index: {}]
  %s5 = inlined_call_operand.vmem [shape: f32[1,32], index: 5, kind: input, shape index: {}]
  %s6 = inlined_call_operand.vmem [shape: f32[1,32], index: 6, kind: input, shape index: {}]
  %s7 = inlined_call_operand.vmem [shape: f32[16,32], index: 7, kind: output, shape index: {}]
  %s8 = sld [smem:[#allocation0]]
  $region38: #{_lambda_.12} parent=0
    _
  %s10 = ssub.s32 1, %s8
  %s11 = scalar_select 0, %s10, %s8
  // Predicated region
  $region2: #{_lambda_.12} parent=0 // pred_check
    _
  $region3: #{_lambda_.12} parent=0 // pred_check_branch
    %13 = sbr.rel (0) target = $region5
  $region4: #{_lambda_.12} parent=0 // pred_region
    _
  $region5: #{_lambda_.12} parent=0 // pred_fallthru
    _
  // Predicated region
  $region6: #{_lambda_.12} parent=0 // pred_check
    _
  $region7: #{_lambda_.12} parent=0 // pred_check_branch
    %15 = sbr.rel (0) target = $region9
  $region8: #{_lambda_.12} parent=0 // pred_region
    _
  $region9: #{_lambda_.12} parent=0 // pred_fallthru
    _
  // Predicated region
  $region10: #{_lambda_.12} parent=0 // pred_check
    _
  $region11: #{_lambda_.12} parent=0 // pred_check_branch
    %17 = sbr.rel (0) target = $region13
  $region12: #{_lambda_.12} parent=0 // pred_region
    _
  $region13: #{_lambda_.12} parent=0 // pred_fallthru
    _
  // Predicated region
  $region14: #{_lambda_.12} parent=0 // pred_check
    _
  $region15: #{_lambda_.12} parent=0 // pred_check_branch
    %19 = sbr.rel (0) target = $region17
  $region16: #{_lambda_.12} parent=0 // pred_region
    _
  $region17: #{_lambda_.12} parent=0 // pred_fallthru
    _
  // Predicated region
  $region18: #{_lambda_.12} parent=0 // pred_check
    _
  $region19: #{_lambda_.12} parent=0 // pred_check_branch
    %21 = sbr.rel (0) target = $region21
  $region20: #{_lambda_.12} parent=0 // pred_region
    _
  $region21: #{_lambda_.12} parent=0 // pred_fallthru
    _
  // Predicated region
  $region22: #{_lambda_.12} parent=0 // pred_check
    _
  $region23: #{_lambda_.12} parent=0 // pred_check_branch
    %23 = sbr.rel (0) target = $region25
  $region24: #{_lambda_.12} parent=0 // pred_region
    _
  $region25: #{_lambda_.12} parent=0 // pred_fallthru
    _
  // Predicated region
  $region26: #{_lambda_.12} parent=0 // pred_check
    _
  $region27: #{_lambda_.12} parent=0 // pred_check_branch
    %25 = sbr.rel (0) target = $region29
  $region28: #{_lambda_.12} parent=0 // pred_region
    _
  $region29: #{_lambda_.12} parent=0 // pred_fallthru
    _
  %v27 = vld [vmem:[%s0] sm:$0xff]
  %v28 = vld [vmem:[%s0 + $0x8] sm:$0xff]
  %v29 = vpack.c.bf16 %v28, %v27
  %v30 = vld [vmem:[%s1] sm:$0xff]
  %v31 = vld [vmem:[%s1 + $0x8] sm:$0xff]
  %v32 = vld [vmem:[%s1 + $0x10] sm:$0xff]
  %v33 = vld [vmem:[%s1 + $0x18] sm:$0xff]
  %v34 = vpack.c.bf16 %v31, %v30
  %v35 = vpack.c.bf16 %v33, %v32
  %v36 = vld [vmem:[%s2] sm:$0x1]
  %v38 = vlaneseq
  %v39 = vshrl.u32 %v38, 7
  %v40 = vsub.s32 0, %v39
  %v41 = vrot.slane %v36, %v40
  %vm43 = vcmask 261120
  %v45 = vsel %vm43, %v29, 0
  %47 = vmatprep.subr.bf16.mxu0 0
  %48 = vmatpush1.bf16.msra.mxu0 0
  %49 = vmatprep.subr.bf16.mxu0 0
  %50 = vmatpush1.bf16.msra.mxu0 0
  %51 = vmatprep.subr.bf16.mxu0 0
  %52 = vmatpush1.bf16.msra.mxu0 0
  %53 = vmatprep.subr.bf16.mxu0 0
  %54 = vmatpush1.bf16.msra.mxu0 0
  %55 = vmatprep.subr.bf16.mxu0 0
  %56 = vmatpush1.bf16.msra.mxu0 0
  %57 = vmatprep.subr.bf16.mxu0 0
  %58 = vmatpush1.bf16.msra.mxu0 0
  %59 = vmatprep.subr.bf16.mxu0 0
  %60 = vmatpush1.bf16.msra.mxu0 %v35
  %61 = vmatprep.subr.bf16.mxu0 0
  %62 = vmatpush1.bf16.msra.mxu0 %v34
  %63 = vmatprep.subr.bf16.mxu0 0
  %64 = vmatpush2.bf16.msra.mxu0 0
  %65 = vmatprep.subr.bf16.mxu0 0
  %66 = vmatpush2.bf16.msra.mxu0 0
  %67 = vmatprep.subr.bf16.mxu0 0
  %68 = vmatpush2.bf16.msra.mxu0 0
  %69 = vmatprep.subr.bf16.mxu0 0
  %70 = vmatpush2.bf16.msra.mxu0 0
  %71 = vmatprep.subr.bf16.mxu0 0
  %72 = vmatpush2.bf16.msra.mxu0 0
  %73 = vmatprep.subr.bf16.mxu0 0
  %74 = vmatpush2.bf16.msra.mxu0 0
  %75 = vmatprep.subr.bf16.mxu0 0
  %76 = vmatpush2.bf16.msra.mxu0 0
  %77 = vmatprep.subr.bf16.mxu0 0
  %78 = vmatpush2.bf16.msra.mxu0 0
  %79 = vmatprep.mubr.bf16.mxu0 0
  %80 = vmatmul.mubr.bf16.gmra.mxu0 %v45
  %v81 = vpop.f32.mrf.mxu0
  %v82 = vadd.f32 %v41, %v81
  %v83 = vpop.f32.mrf.mxu0
  %v84 = vpop.f32.mrf.mxu0
  %v85 = vadd.f32 %v41, %v84
  %v86 = vpop.f32.mrf.mxu0
  %87 = vdwg.mxu0
  %v88 = vmax.f32 %v82, 0.0
  %v89 = vmax.f32 %v85, 0.0
  %v90 = vpack.c.bf16 %v89, %v88
  %v91 = vld [vmem:[%s3] sm:$0xff]
  %v92 = vld [vmem:[%s3 + $0x8] sm:$0xff]
  %v93 = vld [vmem:[%s3 + $0x10] sm:$0xff]
  %v94 = vld [vmem:[%s3 + $0x18] sm:$0xff]
  %v95 = vld [vmem:[%s3 + $0x20] sm:$0xff]
  %v96 = vld [vmem:[%s3 + $0x28] sm:$0xff]
  %v97 = vld [vmem:[%s3 + $0x30] sm:$0xff]
  %v98 = vld [vmem:[%s3 + $0x38] sm:$0xff]
  %v99 = vpack.c.bf16 %v92, %v91
  %v100 = vpack.c.bf16 %v94, %v93
  %v101 = vpack.c.bf16 %v96, %v95
  %v102 = vpack.c.bf16 %v98, %v97
  %v103 = vld [vmem:[%s4] sm:$0x1]
  %v105 = vlaneseq
  %v106 = vshrl.u32 %v105, 7
  %v107 = vsub.s32 0, %v106
  %v108 = vrot.slane %v103, %v107
  %vm110 = vcmask 523264
  %v112 = vsel %vm110, %v90, 0
  %114 = vmatprep.subr.bf16.mxu0 0
  %115 = vmatpush1.bf16.msra.mxu0 0
  %116 = vmatprep.subr.bf16.mxu0 0
  %117 = vmatpush1.bf16.msra.mxu0 0
  %118 = vmatprep.subr.bf16.mxu0 0
  %119 = vmatpush1.bf16.msra.mxu0 0
  %120 = vmatprep.subr.bf16.mxu0 0
  %121 = vmatpush1.bf16.msra.mxu0 0
  %122 = vmatprep.subr.bf16.mxu0 0
  %123 = vmatpush1.bf16.msra.mxu0 %v102
  %124 = vmatprep.subr.bf16.mxu0 0
  %125 = vmatpush1.bf16.msra.mxu0 %v101
  %126 = vmatprep.subr.bf16.mxu0 0
  %127 = vmatpush1.bf16.msra.mxu0 %v100
  %128 = vmatprep.subr.bf16.mxu0 0
  %129 = vmatpush1.bf16.msra.mxu0 %v99
  %130 = vmatprep.subr.bf16.mxu0 0
  %131 = vmatpush2.bf16.msra.mxu0 0
  %132 = vmatprep.subr.bf16.mxu0 0
  %133 = vmatpush2.bf16.msra.mxu0 0
  %134 = vmatprep.subr.bf16.mxu0 0
  %135 = vmatpush2.bf16.msra.mxu0 0
  %136 = vmatprep.subr.bf16.mxu0 0
  %137 = vmatpush2.bf16.msra.mxu0 0
  %138 = vmatprep.subr.bf16.mxu0 0
  %139 = vmatpush2.bf16.msra.mxu0 0
  %140 = vmatprep.subr.bf16.mxu0 0
  %141 = vmatpush2.bf16.msra.mxu0 0
  %142 = vmatprep.subr.bf16.mxu0 0
  %143 = vmatpush2.bf16.msra.mxu0 0
  %144 = vmatprep.subr.bf16.mxu0 0
  %145 = vmatpush2.bf16.msra.mxu0 0
  %146 = vmatprep.mubr.bf16.mxu0 0
  %147 = vmatmul.mubr.bf16.gmra.mxu0 %v112
  %v148 = vpop.f32.mrf.mxu0
  %v149 = vadd.f32 %v108, %v148
  %v150 = vpop.f32.mrf.mxu0
  %v151 = vpop.f32.mrf.mxu0
  %v152 = vadd.f32 %v108, %v151
  %v153 = vpop.f32.mrf.mxu0
  %154 = vdwg.mxu0
  %v155 = vadd.f32 %v27, %v149
  %v156 = vadd.f32 %v28, %v152
  %v157 = vsel %vm43, %v155, 0.0
  %158 = vadd.xlane.f32.xlu0 %v157
  %v159 = vpop.xlane.xlu0 %158
  %v160 = vsel %vm43, %v156, 0.0
  %161 = vadd.xlane.f32.xlu0 %v160
  %v162 = vpop.xlane.xlu0 %161
  %v163 = vrcp.pop 32.0
  %v164 = vmul.f32 %v159, %v163
  %v165 = vmul.f32 %v162, %v163
  %v166 = vsub.f32 %v155, %v164
  %v167 = vsub.f32 %v156, %v165
  %v168 = vmul.f32 %v166, %v166
  %v169 = vmul.f32 %v167, %v167
  %v170 = vsel %vm43, %v168, 0.0
  %171 = vadd.xlane.f32.xlu0 %v170
  %v172 = vpop.xlane.xlu0 %171
  %v173 = vsel %vm43, %v169, 0.0
  %174 = vadd.xlane.f32.xlu0 %v173
  %v175 = vpop.xlane.xlu0 %174
  %v176 = vmul.f32 %v172, %v163
  %v177 = vmul.f32 %v175, %v163
  %v178 = vadd.f32 %v176, 1e-05
  %v179 = vadd.f32 %v177, 1e-05
  %v180 = vrsqrt.pop %v178
  %v181 = vrsqrt.pop %v179
  %v182 = vmul.f32 %v166, %v180
  %v183 = vmul.f32 %v167, %v181
  %v184 = vld [vmem:[%s5] sm:$0x1]
  %v186 = vlaneseq
  %v187 = vshrl.u32 %v186, 7
  %v188 = vsub.s32 0, %v187
  %v189 = vrot.slane %v184, %v188
  %v191 = vmul.f32 %v182, %v189
  %v192 = vmul.f32 %v183, %v189
  %v193 = vld [vmem:[%s6] sm:$0x1]
  %v195 = vlaneseq
  %v196 = vshrl.u32 %v195, 7
  %v197 = vsub.s32 0, %v196
  %v198 = vrot.slane %v193, %v197
  %v200 = vadd.f32 %v191, %v198
  %v201 = vadd.f32 %v192, %v198
  %202 = vst.msk [vmem:[%s7] sm:$0xff] %vm43, %v200
  %203 = vst.msk [vmem:[%s7 + $0x8] sm:$0xff] %vm43, %v201
  // Predicated region
  $region30: #{_lambda_.12} parent=0 // pred_check
    _
  $region31: #{_lambda_.12} parent=0 // pred_check_branch
    %205 = sbr.rel (0) target = $region33
  $region32: #{_lambda_.12} parent=0 // pred_region
    _
  $region33: #{_lambda_.12} parent=0 // pred_fallthru
    _
  // Predicated region
  $region34: #{_lambda_.12} parent=0 // pred_check
    _
  $region35: #{_lambda_.12} parent=0 // pred_check_branch
    %207 = sbr.rel (0) target = $region37
  $region36: #{_lambda_.12} parent=0 // pred_region
    _
  $region37: #{_lambda_.12} parent=0 // pred_fallthru
    _

// kernel: _lambda_.11
$region0: #{_lambda_.11}
  #allocation0 [shape = 'u32[]', space=smem, size = 0x4, offset = 0x4, fixed_abs, tag = 'smem constant byte address 0x4 - core index']
  #allocation1 [shape = 'u32[144,128]{1,0:T(1,128)}', space=vmem, size = 0x12000, scoped, tag = 'internal scratch']
  %s0 = inlined_call_operand.vmem [shape: f32[2,8,32], index: 0, kind: input, shape index: {}, may-alias: {0,1}]
  %s1 = inlined_call_operand.vmem [shape: f32[2,8,32], index: 1, kind: input, shape index: {}, may-alias: {0,1}]
  %s2 = inlined_call_operand.vmem [shape: s32[2,1,8], index: 2, kind: input, shape index: {}]
  %s3 = inlined_call_operand.vmem [shape: f32[32,96], index: 3, kind: input, shape index: {}]
  %s4 = inlined_call_operand.vmem [shape: f32[1,96], index: 4, kind: input, shape index: {}]
  %s5 = inlined_call_operand.vmem [shape: f32[32,32], index: 5, kind: input, shape index: {}]
  %s6 = inlined_call_operand.vmem [shape: f32[1,32], index: 6, kind: input, shape index: {}]
  %s7 = inlined_call_operand.vmem [shape: f32[1,32], index: 7, kind: input, shape index: {}]
  %s8 = inlined_call_operand.vmem [shape: f32[1,32], index: 8, kind: input, shape index: {}]
  %s9 = inlined_call_operand.vmem [shape: f32[2,8,32], index: 9, kind: output, shape index: {}]
  %s10 = sld [smem:[#allocation0]]
  $region69: #{_lambda_.11} parent=0
    _
  %s12 = ssub.s32 1, %s10
  %s13 = scalar_select 0, %s12, %s10
  loop: start=0, step=1, limit=4
  $region2: #{_lambda_.11} parent=0 // loop_pre_header
    _
  $region3: #{_lambda_.11} parent=0 // loop_header
    %s15 = sphi 0, %s19
    %p16 = scmp.ge.s32.totalorder %s15, 4
    %s25 = sphi 0, %s27
    %s28 = sphi 0, %s25
    %s29 = sphi 0, %s28
    %s45 = sphi 0, %s29
    %s51 = sphi 0, %s53
    %s54 = sphi 0, %s51
    %s55 = sphi 0, %s54
    %s71 = sphi 0, %s55
    %s77 = sphi 0, %s79
    %s80 = sphi 0, %s77
    %s81 = sphi 0, %s80
    %s97 = sphi 0, %s81
    %s101 = sphi 0, %s101
    %s103 = sphi 0, %s101
    %s104 = sphi 0, %s103
    %s118 = sphi 0, %s104
    %s122 = sphi 0, %s122
    %s124 = sphi 0, %s122
    %s125 = sphi 0, %s124
    %s139 = sphi 0, %s125
    %s143 = sphi 0, %s143
    %s145 = sphi 0, %s143
    %s146 = sphi 0, %s145
    %s160 = sphi 0, %s146
    %s164 = sphi 0, %s164
    %s166 = sphi 0, %s164
    %s167 = sphi 0, %s166
    %s181 = sphi 0, %s167
    %s185 = sphi 0, %s185
    %s187 = sphi 0, %s185
    %s188 = sphi 0, %s187
    %s202 = sphi 0, %s188
    %s206 = sphi 0, %s206
    %s208 = sphi 0, %s206
    %s209 = sphi 0, %s208
    %s223 = sphi 0, %s209
    %s229 = sphi 0, %s231
    %s232 = sphi 0, %s229
    %s233 = sphi 0, %s232
    %s249 = sphi 0, %s233
  $region4: #{_lambda_.11} parent=0 // loop_header_branch
    %18 = sbr.rel (%p16) target = $region8
  $region5: #{_lambda_.11} parent=0 // loop_body
    %s20 = ssub.s32 %s15, 1
    %s21 = ssub.s32 %s15, 2
    %s22 = sadd.s32 %s15, 1
    %s23 = ssub.s32 %s15, %s22
    %p24 = scmp.eq.s32.totalorder %s23, 0
    %s26 = sadd.s32 %s25, 1
    %s27 = scalar_select %p24, %s25, %s26
    %p30 = pneg %p24
    %p31 = scmp.eq.s32.totalorder %s15, 1
    %p32 = por %p30, %p31
    %p33 = scmp.ne.s32.totalorder %s25, %s28
    %p34 = scmp.eq.s32.totalorder %s15, 0
    %p35 = por %p33, %p34
    %p36 = scmp.ne.s32.totalorder %s25, %s28
    %p37 = scmp.eq.s32.totalorder %s20, 1
    %p38 = por %p36, %p37
    %p39 = scmp.ne.s32.totalorder %s28, %s29
    %p40 = scmp.eq.s32.totalorder %s20, 0
    %p41 = por %p39, %p40
    %p42 = scmp.ne.s32.totalorder %s28, %s29
    %p43 = scmp.eq.s32.totalorder %s21, 1
    %p44 = por %p42, %p43
    %p46 = scmp.ne.s32.totalorder %s29, %s45
    %p47 = scmp.eq.s32.totalorder %s21, 0
    %p48 = por %p46, %p47
    %s49 = ssub.s32 %s15, %s22
    %p50 = scmp.eq.s32.totalorder %s49, 0
    %s52 = sadd.s32 %s51, 1
    %s53 = scalar_select %p50, %s51, %s52
    %p56 = pneg %p50
    %p57 = scmp.eq.s32.totalorder %s15, 1
    %p58 = por %p56, %p57
    %p59 = scmp.ne.s32.totalorder %s51, %s54
    %p60 = scmp.eq.s32.totalorder %s15, 0
    %p61 = por %p59, %p60
    %p62 = scmp.ne.s32.totalorder %s51, %s54
    %p63 = scmp.eq.s32.totalorder %s20, 1
    %p64 = por %p62, %p63
    %p65 = scmp.ne.s32.totalorder %s54, %s55
    %p66 = scmp.eq.s32.totalorder %s20, 0
    %p67 = por %p65, %p66
    %p68 = scmp.ne.s32.totalorder %s54, %s55
    %p69 = scmp.eq.s32.totalorder %s21, 1
    %p70 = por %p68, %p69
    %p72 = scmp.ne.s32.totalorder %s55, %s71
    %p73 = scmp.eq.s32.totalorder %s21, 0
    %p74 = por %p72, %p73
    %s75 = ssub.s32 %s15, %s22
    %p76 = scmp.eq.s32.totalorder %s75, 0
    %s78 = sadd.s32 %s77, 1
    %s79 = scalar_select %p76, %s77, %s78
    %p82 = pneg %p76
    %p83 = scmp.eq.s32.totalorder %s15, 1
    %p84 = por %p82, %p83
    %p85 = scmp.ne.s32.totalorder %s77, %s80
    %p86 = scmp.eq.s32.totalorder %s15, 0
    %p87 = por %p85, %p86
    %p88 = scmp.ne.s32.totalorder %s77, %s80
    %p89 = scmp.eq.s32.totalorder %s20, 1
    %p90 = por %p88, %p89
    %p91 = scmp.ne.s32.totalorder %s80, %s81
    %p92 = scmp.eq.s32.totalorder %s20, 0
    %p93 = por %p91, %p92
    %p94 = scmp.ne.s32.totalorder %s80, %s81
    %p95 = scmp.eq.s32.totalorder %s21, 1
    %p96 = por %p94, %p95
    %p98 = scmp.ne.s32.totalorder %s81, %s97
    %p99 = scmp.eq.s32.totalorder %s21, 0
    %p100 = por %p98, %p99
    %s102 = sadd.s32 %s101, 1
    %p105 = scmp.eq.s32.totalorder %s15, 1
    %p106 = scmp.ne.s32.totalorder %s101, %s103
    %p107 = scmp.eq.s32.totalorder %s15, 0
    %p108 = por %p106, %p107
    %p109 = scmp.ne.s32.totalorder %s101, %s103
    %p110 = scmp.eq.s32.totalorder %s20, 1
    %p111 = por %p109, %p110
    %p112 = scmp.ne.s32.totalorder %s103, %s104
    %p113 = scmp.eq.s32.totalorder %s20, 0
    %p114 = por %p112, %p113
    %p115 = scmp.ne.s32.totalorder %s103, %s104
    %p116 = scmp.eq.s32.totalorder %s21, 1
    %p117 = por %p115, %p116
    %p119 = scmp.ne.s32.totalorder %s104, %s118
    %p120 = scmp.eq.s32.totalorder %s21, 0
    %p121 = por %p119, %p120
    %s123 = sadd.s32 %s122, 1
    %p126 = scmp.eq.s32.totalorder %s15, 1
    %p127 = scmp.ne.s32.totalorder %s122, %s124
    %p128 = scmp.eq.s32.totalorder %s15, 0
    %p129 = por %p127, %p128
    %p130 = scmp.ne.s32.totalorder %s122, %s124
    %p131 = scmp.eq.s32.totalorder %s20, 1
    %p132 = por %p130, %p131
    %p133 = scmp.ne.s32.totalorder %s124, %s125
    %p134 = scmp.eq.s32.totalorder %s20, 0
    %p135 = por %p133, %p134
    %p136 = scmp.ne.s32.totalorder %s124, %s125
    %p137 = scmp.eq.s32.totalorder %s21, 1
    %p138 = por %p136, %p137
    %p140 = scmp.ne.s32.totalorder %s125, %s139
    %p141 = scmp.eq.s32.totalorder %s21, 0
    %p142 = por %p140, %p141
    %s144 = sadd.s32 %s143, 1
    %p147 = scmp.eq.s32.totalorder %s15, 1
    %p148 = scmp.ne.s32.totalorder %s143, %s145
    %p149 = scmp.eq.s32.totalorder %s15, 0
    %p150 = por %p148, %p149
    %p151 = scmp.ne.s32.totalorder %s143, %s145
    %p152 = scmp.eq.s32.totalorder %s20, 1
    %p153 = por %p151, %p152
    %p154 = scmp.ne.s32.totalorder %s145, %s146
    %p155 = scmp.eq.s32.totalorder %s20, 0
    %p156 = por %p154, %p155
    %p157 = scmp.ne.s32.totalorder %s145, %s146
    %p158 = scmp.eq.s32.totalorder %s21, 1
    %p159 = por %p157, %p158
    %p161 = scmp.ne.s32.totalorder %s146, %s160
    %p162 = scmp.eq.s32.totalorder %s21, 0
    %p163 = por %p161, %p162
    %s165 = sadd.s32 %s164, 1
    %p168 = scmp.eq.s32.totalorder %s15, 1
    %p169 = scmp.ne.s32.totalorder %s164, %s166
    %p170 = scmp.eq.s32.totalorder %s15, 0
    %p171 = por %p169, %p170
    %p172 = scmp.ne.s32.totalorder %s164, %s166
    %p173 = scmp.eq.s32.totalorder %s20, 1
    %p174 = por %p172, %p173
    %p175 = scmp.ne.s32.totalorder %s166, %s167
    %p176 = scmp.eq.s32.totalorder %s20, 0
    %p177 = por %p175, %p176
    %p178 = scmp.ne.s32.totalorder %s166, %s167
    %p179 = scmp.eq.s32.totalorder %s21, 1
    %p180 = por %p178, %p179
    %p182 = scmp.ne.s32.totalorder %s167, %s181
    %p183 = scmp.eq.s32.totalorder %s21, 0
    %p184 = por %p182, %p183
    %s186 = sadd.s32 %s185, 1
    %p189 = scmp.eq.s32.totalorder %s15, 1
    %p190 = scmp.ne.s32.totalorder %s185, %s187
    %p191 = scmp.eq.s32.totalorder %s15, 0
    %p192 = por %p190, %p191
    %p193 = scmp.ne.s32.totalorder %s185, %s187
    %p194 = scmp.eq.s32.totalorder %s20, 1
    %p195 = por %p193, %p194
    %p196 = scmp.ne.s32.totalorder %s187, %s188
    %p197 = scmp.eq.s32.totalorder %s20, 0
    %p198 = por %p196, %p197
    %p199 = scmp.ne.s32.totalorder %s187, %s188
    %p200 = scmp.eq.s32.totalorder %s21, 1
    %p201 = por %p199, %p200
    %p203 = scmp.ne.s32.totalorder %s188, %s202
    %p204 = scmp.eq.s32.totalorder %s21, 0
    %p205 = por %p203, %p204
    %s207 = sadd.s32 %s206, 1
    %p210 = scmp.eq.s32.totalorder %s15, 1
    %p211 = scmp.ne.s32.totalorder %s206, %s208
    %p212 = scmp.eq.s32.totalorder %s15, 0
    %p213 = por %p211, %p212
    %p214 = scmp.ne.s32.totalorder %s206, %s208
    %p215 = scmp.eq.s32.totalorder %s20, 1
    %p216 = por %p214, %p215
    %p217 = scmp.ne.s32.totalorder %s208, %s209
    %p218 = scmp.eq.s32.totalorder %s20, 0
    %p219 = por %p217, %p218
    %p220 = scmp.ne.s32.totalorder %s208, %s209
    %p221 = scmp.eq.s32.totalorder %s21, 1
    %p222 = por %p220, %p221
    %p224 = scmp.ne.s32.totalorder %s209, %s223
    %p225 = scmp.eq.s32.totalorder %s21, 0
    %p226 = por %p224, %p225
    %s227 = ssub.s32 %s15, %s22
    %p228 = scmp.eq.s32.totalorder %s227, 0
    %s230 = sadd.s32 %s229, 1
    %s231 = scalar_select %p228, %s229, %s230
    %p234 = pneg %p228
    %p235 = scmp.eq.s32.totalorder %s15, 1
    %p236 = por %p234, %p235
    %p237 = scmp.ne.s32.totalorder %s229, %s232
    %p238 = scmp.eq.s32.totalorder %s15, 0
    %p239 = por %p237, %p238
    %p240 = scmp.ne.s32.totalorder %s229, %s232
    %p241 = scmp.eq.s32.totalorder %s20, 1
    %p242 = por %p240, %p241
    %p243 = scmp.ne.s32.totalorder %s232, %s233
    %p244 = scmp.eq.s32.totalorder %s20, 0
    %p245 = por %p243, %p244
    %p246 = scmp.ne.s32.totalorder %s232, %s233
    %p247 = scmp.eq.s32.totalorder %s21, 1
    %p248 = por %p246, %p247
    %p250 = scmp.ne.s32.totalorder %s233, %s249
    %p251 = scmp.eq.s32.totalorder %s21, 0
    %p252 = por %p250, %p251
    %p253 = scmp.le.s32.totalorder 1, %s15
    %p254 = scmp.lt.s32.totalorder %s15, 3
    %p255 = pnand %p253, %p254
    %p256 = pneg %p255
    // Predicated region
    $region9: #{_lambda_.11} parent=5 // pred_check
      _
    $region10: #{_lambda_.11} parent=5 // pred_check_branch
      %258 = sbr.rel (%p255) target = $region12
    $region11: #{_lambda_.11} parent=5 // pred_region
      %s259 = ssub.s32 %s15, 1
      // Predicated region
      $region13: #{_lambda_.11} parent=11 // pred_check
        %p260 = pneg %p114
      $region14: #{_lambda_.11} parent=11 // pred_check_branch
        %262 = sbr.rel (%p260) target = $region16
      $region15: #{_lambda_.11} parent=11 // pred_region
        _
      $region16: #{_lambda_.11} parent=11 // pred_fallthru
        _
      // Predicated region
      $region17: #{_lambda_.11} parent=11 // pred_check
        %p263 = pneg %p135
      $region18: #{_lambda_.11} parent=11 // pred_check_branch
        %265 = sbr.rel (%p263) target = $region20
      $region19: #{_lambda_.11} parent=11 // pred_region
        _
      $region20: #{_lambda_.11} parent=11 // pred_fallthru
        _
      // Predicated region
      $region21: #{_lambda_.11} parent=11 // pred_check
        %p266 = pneg %p156
      $region22: #{_lambda_.11} parent=11 // pred_check_branch
        %268 = sbr.rel (%p266) target = $region24
      $region23: #{_lambda_.11} parent=11 // pred_region
        _
      $region24: #{_lambda_.11} parent=11 // pred_fallthru
        _
      // Predicated region
      $region25: #{_lambda_.11} parent=11 // pred_check
        %p269 = pneg %p177
      $region26: #{_lambda_.11} parent=11 // pred_check_branch
        %271 = sbr.rel (%p269) target = $region28
      $region27: #{_lambda_.11} parent=11 // pred_region
        _
      $region28: #{_lambda_.11} parent=11 // pred_fallthru
        _
      // Predicated region
      $region29: #{_lambda_.11} parent=11 // pred_check
        %p272 = pneg %p198
      $region30: #{_lambda_.11} parent=11 // pred_check_branch
        %274 = sbr.rel (%p272) target = $region32
      $region31: #{_lambda_.11} parent=11 // pred_region
        _
      $region32: #{_lambda_.11} parent=11 // pred_fallthru
        _
      // Predicated region
      $region33: #{_lambda_.11} parent=11 // pred_check
        %p275 = pneg %p219
      $region34: #{_lambda_.11} parent=11 // pred_check_branch
        %277 = sbr.rel (%p275) target = $region36
      $region35: #{_lambda_.11} parent=11 // pred_region
        _
      $region36: #{_lambda_.11} parent=11 // pred_fallthru
        _
    $region12: #{_lambda_.11} parent=5 // pred_fallthru
      _
    %p278 = scmp.lt.s32.totalorder %s15, 2
    // Predicated region
    $region37: #{_lambda_.11} parent=5 // pred_check
      %p279 = pneg %p278
    $region38: #{_lambda_.11} parent=5 // pred_check_branch
      %281 = sbr.rel (%p279) target = $region40
    $region39: #{_lambda_.11} parent=5 // pred_region
      // Predicated region
      $region41: #{_lambda_.11} parent=39 // pred_check
        %p282 = pneg %p35
      $region42: #{_lambda_.11} parent=39 // pred_check_branch
        %284 = sbr.rel (%p282) target = $region44
      $region43: #{_lambda_.11} parent=39 // pred_region
        %p285 = scmp.lt.s32.totalorder %s15, 1
        %s286 = scalar_select %p285, %s15, 1
        %s287 = smul.addr %s286, 8
        %s288 = scalar_lea.vmem %s0, %s287
      $region44: #{_lambda_.11} parent=39 // pred_fallthru
        _
      // Predicated region
      $region45: #{_lambda_.11} parent=39 // pred_check
        %p289 = pneg %p61
      $region46: #{_lambda_.11} parent=39 // pred_check_branch
        %291 = sbr.rel (%p289) target = $region48
      $region47: #{_lambda_.11} parent=39 // pred_region
        %p292 = scmp.lt.s32.totalorder %s15, 1
        %s293 = scalar_select %p292, %s15, 1
        %s294 = smul.addr %s293, 8
        %s295 = scalar_lea.vmem %s1, %s294
      $region48: #{_lambda_.11} parent=39 // pred_fallthru
        _
      // Predicated region
      $region49: #{_lambda_.11} parent=39 // pred_check
        %p296 = pneg %p87
      $region50: #{_lambda_.11} parent=39 // pred_check_branch
        %298 = sbr.rel (%p296) target = $region52
      $region51: #{_lambda_.11} parent=39 // pred_region
        %p299 = scmp.lt.s32.totalorder %s15, 1
        %s300 = scalar_select %p299, %s15, 1
        %s301 = scalar_lea.vmem %s2, %s300
      $region52: #{_lambda_.11} parent=39 // pred_fallthru
        _
    $region40: #{_lambda_.11} parent=5 // pred_fallthru
      _
    %p302 = scmp.le.s32.totalorder 1, %s15
    %p303 = scmp.lt.s32.totalorder %s15, 3
    %p304 = pnand %p302, %p303
    %p305 = pneg %p304
    // Predicated region
    $region53: #{_lambda_.11} parent=5 // pred_check
      _
    $region54: #{_lambda_.11} parent=5 // pred_check_branch
      %307 = sbr.rel (%p304) target = $region56
    $region55: #{_lambda_.11} parent=5 // pred_region
      %s308 = ssub.s32 %s15, 1
      %p309 = scmp.lt.s32.totalorder %s20, 1
      %s310 = scalar_select %p309, %s20, 1
      %s311 = smul.addr %s310, 8
      %s312 = scalar_lea.vmem %s0, %s311
      %p313 = pneg %p41
      %p314 = pneg %p38
      %p315 = scmp.lt.s32.totalorder %s20, 1
      %s316 = scalar_select %p315, %s20, 1
      %s317 = smul.addr %s316, 8
      %s318 = scalar_lea.vmem %s1, %s317
      %p319 = pneg %p67
      %p320 = pneg %p64
      %p321 = scmp.lt.s32.totalorder %s20, 1
      %s322 = scalar_select %p321, %s20, 1
      %s323 = scalar_lea.vmem %s2, %s322
      %p324 = pneg %p93
      %p325 = pneg %p90
      %p326 = pneg %p114
      %p327 = pneg %p111
      %p328 = pneg %p135
      %p329 = pneg %p132
      %p330 = pneg %p156
      %p331 = pneg %p153
      %p332 = pneg %p177
      %p333 = pneg %p174
      %p334 = pneg %p198
      %p335 = pneg %p195
      %p336 = pneg %p219
      %p337 = pneg %p216
      %p338 = pneg %p245
      %p339 = pneg %p242
      %p340 = scmp.lt.s32.totalorder %s20, 1
      %s341 = scalar_select %p340, %s20, 1
      %s342 = smul.addr %s341, 8
      %s343 = scalar_lea.vmem %s9, %s342
      %p344 = scmp.lt.s32.totalorder %s20, 1
      %s345 = scalar_select %p344, %s20, 1
      %s346 = smul.addr %s345, 8
      %s347 = scalar_lea.vmem %s0, %s346
      %p348 = scmp.lt.s32.totalorder %s20, 1
      %s349 = scalar_select %p348, %s20, 1
      %s350 = smul.addr %s349, 8
      %s351 = scalar_lea.vmem %s1, %s350
      %p352 = scmp.lt.s32.totalorder %s20, 1
      %s353 = scalar_select %p352, %s20, 1
      %s354 = scalar_lea.vmem %s2, %s353
      %p355 = scmp.lt.s32.totalorder %s20, 1
      %s356 = scalar_select %p355, %s20, 1
      %s357 = smul.addr %s356, 8
      %s358 = scalar_lea.vmem %s9, %s357
      %v360 = vld [vmem:[%s347] sm:$0xff]
      %v361 = vld [vmem:[%s351] sm:$0xff]
      %v362 = vld [vmem:[%s3] sm:$0xff]
      %v363 = vld [vmem:[%s3 + $0x8] sm:$0xff]
      %v364 = vld [vmem:[%s3 + $0x10] sm:$0xff]
      %v365 = vld [vmem:[%s3 + $0x18] sm:$0xff]
      %v366 = vld [vmem:[%s4] sm:$0x1]
      %v367 = vpack.c.bf16 %v360, %v360
      %v368 = vpack.c.bf16 %v361, %v361
      %v369 = vpack.c.bf16 %v363, %v362
      %v370 = vpack.c.bf16 %v365, %v364
      %v372 = vlaneseq
      %v373 = vshrl.u32 %v372, 7
      %v374 = vsub.s32 0, %v373
      %v375 = vrot.slane %v366, %v374
      %vm377 = vcmask 261120
      %v379 = vsel %vm377, %v367, 0
      %381 = vmatprep.subr.bf16.mxu0 0
      %382 = vmatpush1.bf16.msra.mxu0 0
      %383 = vmatprep.subr.bf16.mxu0 0
      %384 = vmatpush1.bf16.msra.mxu0 0
      %385 = vmatprep.subr.bf16.mxu0 0
      %386 = vmatpush1.bf16.msra.mxu0 0
      %387 = vmatprep.subr.bf16.mxu0 0
      %388 = vmatpush1.bf16.msra.mxu0 0
      %389 = vmatprep.subr.bf16.mxu0 0
      %390 = vmatpush1.bf16.msra.mxu0 0
      %391 = vmatprep.subr.bf16.mxu0 0
      %392 = vmatpush1.bf16.msra.mxu0 0
      %393 = vmatprep.subr.bf16.mxu0 0
      %394 = vmatpush1.bf16.msra.mxu0 %v370
      %395 = vmatprep.subr.bf16.mxu0 0
      %396 = vmatpush1.bf16.msra.mxu0 %v369
      %397 = vmatprep.subr.bf16.mxu0 0
      %398 = vmatpush2.bf16.msra.mxu0 0
      %399 = vmatprep.subr.bf16.mxu0 0
      %400 = vmatpush2.bf16.msra.mxu0 0
      %401 = vmatprep.subr.bf16.mxu0 0
      %402 = vmatpush2.bf16.msra.mxu0 0
      %403 = vmatprep.subr.bf16.mxu0 0
      %404 = vmatpush2.bf16.msra.mxu0 0
      %405 = vmatprep.subr.bf16.mxu0 0
      %406 = vmatpush2.bf16.msra.mxu0 0
      %407 = vmatprep.subr.bf16.mxu0 0
      %408 = vmatpush2.bf16.msra.mxu0 0
      %409 = vmatprep.subr.bf16.mxu0 0
      %410 = vmatpush2.bf16.msra.mxu0 0
      %411 = vmatprep.subr.bf16.mxu0 0
      %412 = vmatpush2.bf16.msra.mxu0 0
      %413 = vmatprep.mubr.bf16.mxu0 0
      %414 = vmatmul.mubr.bf16.gmra.mxu0 %v379
      %v415 = vpop.f32.mrf.mxu0
      %v416 = vadd.f32 %v375, %v415
      %v417 = vpop.f32.mrf.mxu0
      %v418 = vpop.f32.mrf.mxu0
      %v419 = vpop.f32.mrf.mxu0
      %420 = vdwg.mxu0
      %423 = vrot.lane.b32.xlu0 %v369, 96
      %v424 = vpop.permute.xlu0 %423
      %425 = vrot.lane.b32.xlu0 %v370, 96
      %v426 = vpop.permute.xlu0 %425
      %429 = vrot.lane.b32.xlu0 %v375, 96
      %v430 = vpop.permute.xlu0 %429
      %v433 = vsel %vm377, %v368, 0
      %435 = vmatprep.subr.bf16.mxu0 0
      %436 = vmatpush1.bf16.msra.mxu0 0
      %437 = vmatprep.subr.bf16.mxu0 0
      %438 = vmatpush1.bf16.msra.mxu0 0
      %439 = vmatprep.subr.bf16.mxu0 0
      %440 = vmatpush1.bf16.msra.mxu0 0
      %441 = vmatprep.subr.bf16.mxu0 0
      %442 = vmatpush1.bf16.msra.mxu0 0
      %443 = vmatprep.subr.bf16.mxu0 0
      %444 = vmatpush1.bf16.msra.mxu0 0
      %445 = vmatprep.subr.bf16.mxu0 0
      %446 = vmatpush1.bf16.msra.mxu0 0
      %447 = vmatprep.subr.bf16.mxu0 0
      %448 = vmatpush1.bf16.msra.mxu0 %v426
      %449 = vmatprep.subr.bf16.mxu0 0
      %450 = vmatpush1.bf16.msra.mxu0 %v424
      %451 = vmatprep.subr.bf16.mxu0 0
      %452 = vmatpush2.bf16.msra.mxu0 0
      %453 = vmatprep.subr.bf16.mxu0 0
      %454 = vmatpush2.bf16.msra.mxu0 0
      %455 = vmatprep.subr.bf16.mxu0 0
      %456 = vmatpush2.bf16.msra.mxu0 0
      %457 = vmatprep.subr.bf16.mxu0 0
      %458 = vmatpush2.bf16.msra.mxu0 0
      %459 = vmatprep.subr.bf16.mxu0 0
      %460 = vmatpush2.bf16.msra.mxu0 0
      %461 = vmatprep.subr.bf16.mxu0 0
      %462 = vmatpush2.bf16.msra.mxu0 0
      %463 = vmatprep.subr.bf16.mxu0 0
      %464 = vmatpush2.bf16.msra.mxu0 0
      %465 = vmatprep.subr.bf16.mxu0 0
      %466 = vmatpush2.bf16.msra.mxu0 0
      %467 = vmatprep.mubr.bf16.mxu0 0
      %468 = vmatmul.mubr.bf16.gmra.mxu0 %v433
      %v469 = vpop.f32.mrf.mxu0
      %v470 = vadd.f32 %v430, %v469
      %v471 = vpop.f32.mrf.mxu0
      %v472 = vpop.f32.mrf.mxu0
      %v473 = vpop.f32.mrf.mxu0
      %474 = vdwg.mxu0
      %475 = vrot.lane.b32.xlu0 %v369, 64
      %v476 = vpop.permute.xlu0 %475
      %477 = vrot.lane.b32.xlu0 %v370, 64
      %v478 = vpop.permute.xlu0 %477
      %481 = vrot.lane.b32.xlu0 %v375, 64
      %v482 = vpop.permute.xlu0 %481
      %484 = vmatprep.subr.bf16.mxu0 0
      %485 = vmatpush1.bf16.msra.mxu0 0
      %486 = vmatprep.subr.bf16.mxu0 0
      %487 = vmatpush1.bf16.msra.mxu0 0
      %488 = vmatprep.subr.bf16.mxu0 0
      %489 = vmatpush1.bf16.msra.mxu0 0
      %490 = vmatprep.subr.bf16.mxu0 0
      %491 = vmatpush1.bf16.msra.mxu0 0
      %492 = vmatprep.subr.bf16.mxu0 0
      %493 = vmatpush1.bf16.msra.mxu0 0
      %494 = vmatprep.subr.bf16.mxu0 0
      %495 = vmatpush1.bf16.msra.mxu0 0
      %496 = vmatprep.subr.bf16.mxu0 0
      %497 = vmatpush1.bf16.msra.mxu0 %v478
      %498 = vmatprep.subr.bf16.mxu0 0
      %499 = vmatpush1.bf16.msra.mxu0 %v476
      %500 = vmatprep.subr.bf16.mxu0 0
      %501 = vmatpush2.bf16.msra.mxu0 0
      %502 = vmatprep.subr.bf16.mxu0 0
      %503 = vmatpush2.bf16.msra.mxu0 0
      %504 = vmatprep.subr.bf16.mxu0 0
      %505 = vmatpush2.bf16.msra.mxu0 0
      %506 = vmatprep.subr.bf16.mxu0 0
      %507 = vmatpush2.bf16.msra.mxu0 0
      %508 = vmatprep.subr.bf16.mxu0 0
      %509 = vmatpush2.bf16.msra.mxu0 0
      %510 = vmatprep.subr.bf16.mxu0 0
      %511 = vmatpush2.bf16.msra.mxu0 0
      %512 = vmatprep.subr.bf16.mxu0 0
      %513 = vmatpush2.bf16.msra.mxu0 0
      %514 = vmatprep.subr.bf16.mxu0 0
      %515 = vmatpush2.bf16.msra.mxu0 0
      %516 = vmatprep.mubr.bf16.mxu0 0
      %517 = vmatmul.mubr.bf16.gmra.mxu0 %v433
      %v518 = vpop.f32.mrf.mxu0
      %v519 = vadd.f32 %v482, %v518
      %v520 = vpop.f32.mrf.mxu0
      %v521 = vpop.f32.mrf.mxu0
      %v522 = vpop.f32.mrf.mxu0
      %523 = vdwg.mxu0
      %v524 = vmul.f32 %v416, 0.35355338
      %v525 = vld [vmem:[%s354] sm:$0x1]
      %vm526 = vcmp.ne.s32.totalorder %v525, 0
      %v527 = vsel %vm526, 1, 0
      %v528 = vlaneseq
      %v529 = vshrl.u32 %v528, 7
      %v530 = vsub.s32 0, %v529
      %v531 = vrot.slane %v527, %v530
      %vm532 = vcmp.eq.s32.totalorder %v531, 1
      %v533 = vpack.c.bf16 %v524, %v524
      %v534 = vpack.c.bf16 %v470, %v470
      %v535 = vpack.c.bf16 %v519, %v519
      %vm536 = vcmask 64512
      %v538 = vsel %vm536, %v533, 0
      %v541 = vsel %vm536, %v534, 0
      %543 = vmatprep.subr.bf16.mxu0 0
      %544 = vmatpush1.bf16.xpose.msra.mxu0 0
      %545 = vmatprep.subr.bf16.mxu0 0
      %546 = vmatpush1.bf16.xpose.msra.mxu0 0
      %547 = vmatprep.subr.bf16.mxu0 0
      %548 = vmatpush1.bf16.xpose.msra.mxu0 0
      %549 = vmatprep.subr.bf16.mxu0 0
      %550 = vmatpush1.bf16.xpose.msra.mxu0 0
      %551 = vmatprep.subr.bf16.mxu0 0
      %552 = vmatpush1.bf16.xpose.msra.mxu0 0
      %553 = vmatprep.subr.bf16.mxu0 0
      %554 = vmatpush1.bf16.xpose.msra.mxu0 0
      %555 = vmatprep.subr.bf16.mxu0 0
      %556 = vmatpush1.bf16.xpose.msra.mxu0 0
      %557 = vmatprep.subr.bf16.mxu0 0
      %558 = vmatpush1.bf16.xpose.msra.mxu0 %v541
      %559 = vmatprep.subr.bf16.mxu0 0
      %560 = vmatpush2.bf16.xpose.msra.mxu0 0
      %561 = vmatprep.subr.bf16.mxu0 0
      %562 = vmatpush2.bf16.xpose.msra.mxu0 0
      %563 = vmatprep.subr.bf16.mxu0 0
      %564 = vmatpush2.bf16.xpose.msra.mxu0 0
      %565 = vmatprep.subr.bf16.mxu0 0
      %566 = vmatpush2.bf16.xpose.msra.mxu0 0
      %567 = vmatprep.subr.bf16.mxu0 0
      %568 = vmatpush2.bf16.xpose.msra.mxu0 0
      %569 = vmatprep.subr.bf16.mxu0 0
      %570 = vmatpush2.bf16.xpose.msra.mxu0 0
      %571 = vmatprep.subr.bf16.mxu0 0
      %572 = vmatpush2.bf16.xpose.msra.mxu0 0
      %573 = vmatprep.subr.bf16.mxu0 0
      %574 = vmatpush2.bf16.xpose.msra.mxu0 0
      %575 = vmatprep.mubr.bf16.mxu0 0
      %576 = vmatmul.mubr.bf16.gmra.mxu0 %v538
      %v577 = vpop.f32.mrf.mxu0
      %v578 = vadd.f32 0.0, %v577
      %v579 = vpop.f32.mrf.mxu0
      %v580 = vpop.f32.mrf.mxu0
      %v581 = vpop.f32.mrf.mxu0
      %582 = vdwg.mxu0
      %v583 = vsel %vm532, -1e+09, %v578
      %v584 = vsel %vm536, %v583, -inf
      %585 = vmax.xlane.f32.xlu0 %v584
      %v586 = vpop.xlane.xlu0 %585
      %v587 = vsub.f32 %v583, %v586
      %v588 = vmul.f32 %v587, 1.442695
      %v589 = vpow.pop %v588
      %v590 = vsel %vm536, %v589, 0.0
      %591 = vadd.xlane.f32.xlu0 %v590
      %v592 = vpop.xlane.xlu0 %591
      %v593 = vrcp.pop %v592
      %v594 = vmul.f32 %v589, %v593
      %v595 = vpack.c.bf16 %v594, %v594
      %v597 = vsel %vm536, %v595, 0
      %vm599 = vcmask 1043456
      %v601 = vsel %vm599, %v535, 0
      %603 = vmatprep.subr.bf16.mxu0 0
      %604 = vmatpush1.bf16.msra.mxu0 0
      %605 = vmatprep.subr.bf16.mxu0 0
      %606 = vmatpush1.bf16.msra.mxu0 0
      %607 = vmatprep.subr.bf16.mxu0 0
      %608 = vmatpush1.bf16.msra.mxu0 0
      %609 = vmatprep.subr.bf16.mxu0 0
      %610 = vmatpush1.bf16.msra.mxu0 0
      %611 = vmatprep.subr.bf16.mxu0 0
      %612 = vmatpush1.bf16.msra.mxu0 0
      %613 = vmatprep.subr.bf16.mxu0 0
      %614 = vmatpush1.bf16.msra.mxu0 0
      %615 = vmatprep.subr.bf16.mxu0 0
      %616 = vmatpush1.bf16.msra.mxu0 0
      %617 = vmatprep.subr.bf16.mxu0 0
      %618 = vmatpush1.bf16.msra.mxu0 %v601
      %619 = vmatprep.subr.bf16.mxu0 0
      %620 = vmatpush2.bf16.msra.mxu0 0
      %621 = vmatprep.subr.bf16.mxu0 0
      %622 = vmatpush2.bf16.msra.mxu0 0
      %623 = vmatprep.subr.bf16.mxu0 0
      %624 = vmatpush2.bf16.msra.mxu0 0
      %625 = vmatprep.subr.bf16.mxu0 0
      %626 = vmatpush2.bf16.msra.mxu0 0
      %627 = vmatprep.subr.bf16.mxu0 0
      %628 = vmatpush2.bf16.msra.mxu0 0
      %629 = vmatprep.subr.bf16.mxu0 0
      %630 = vmatpush2.bf16.msra.mxu0 0
      %631 = vmatprep.subr.bf16.mxu0 0
      %632 = vmatpush2.bf16.msra.mxu0 0
      %633 = vmatprep.subr.bf16.mxu0 0
      %634 = vmatpush2.bf16.msra.mxu0 0
      %635 = vmatprep.mubr.bf16.mxu0 0
      %636 = vmatmul.mubr.bf16.gmra.mxu0 %v597
      %v637 = vpop.f32.mrf.mxu0
      %v638 = vadd.f32 0.0, %v637
      %v639 = vpop.f32.mrf.mxu0
      %v640 = vpop.f32.mrf.mxu0
      %v641 = vpop.f32.mrf.mxu0
      %642 = vdwg.mxu0
      %644 = vrot.lane.b32.xlu0 %v533, 120
      %v645 = vpop.permute.xlu0 %644
      %647 = vrot.lane.b32.xlu0 %v534, 120
      %v648 = vpop.permute.xlu0 %647
      %v650 = vsel %vm536, %v645, 0
      %v653 = vsel %vm536, %v648, 0
      %655 = vmatprep.subr.bf16.mxu0 0
      %656 = vmatpush1.bf16.xpose.msra.mxu0 0
      %657 = vmatprep.subr.bf16.mxu0 0
      %658 = vmatpush1.bf16.xpose.msra.mxu0 0
      %659 = vmatprep.subr.bf16.mxu0 0
      %660 = vmatpush1.bf16.xpose.msra.mxu0 0
      %661 = vmatprep.subr.bf16.mxu0 0
      %662 = vmatpush1.bf16.xpose.msra.mxu0 0
      %663 = vmatprep.subr.bf16.mxu0 0
      %664 = vmatpush1.bf16.xpose.msra.mxu0 0
      %665 = vmatprep.subr.bf16.mxu0 0
      %666 = vmatpush1.bf16.xpose.msra.mxu0 0
      %667 = vmatprep.subr.bf16.mxu0 0
      %668 = vmatpush1.bf16.xpose.msra.mxu0 0
      %669 = vmatprep.subr.bf16.mxu0 0
      %670 = vmatpush1.bf16.xpose.msra.mxu0 %v653
      %671 = vmatprep.subr.bf16.mxu0 0
      %672 = vmatpush2.bf16.xpose.msra.mxu0 0
      %673 = vmatprep.subr.bf16.mxu0 0
      %674 = vmatpush2.bf16.xpose.msra.mxu0 0
      %675 = vmatprep.subr.bf16.mxu0 0
      %676 = vmatpush2.bf16.xpose.msra.mxu0 0
      %677 = vmatprep.subr.bf16.mxu0 0
      %678 = vmatpush2.bf16.xpose.msra.mxu0 0
      %679 = vmatprep.subr.bf16.mxu0 0
      %680 = vmatpush2.bf16.xpose.msra.mxu0 0
      %681 = vmatprep.subr.bf16.mxu0 0
      %682 = vmatpush2.bf16.xpose.msra.mxu0 0
      %683 = vmatprep.subr.bf16.mxu0 0
      %684 = vmatpush2.bf16.xpose.msra.mxu0 0
      %685 = vmatprep.subr.bf16.mxu0 0
      %686 = vmatpush2.bf16.xpose.msra.mxu0 0
      %687 = vmatprep.mubr.bf16.mxu0 0
      %688 = vmatmul.mubr.bf16.gmra.mxu0 %v650
      %v689 = vpop.f32.mrf.mxu0
      %v690 = vadd.f32 0.0, %v689
      %v691 = vpop.f32.mrf.mxu0
      %v692 = vpop.f32.mrf.mxu0
      %v693 = vpop.f32.mrf.mxu0
      %694 = vdwg.mxu0
      %v695 = vsel %vm532, -1e+09, %v690
      %v696 = vsel %vm536, %v695, -inf
      %697 = vmax.xlane.f32.xlu0 %v696
      %v698 = vpop.xlane.xlu0 %697
      %v699 = vsub.f32 %v695, %v698
      %v700 = vmul.f32 %v699, 1.442695
      %v701 = vpow.pop %v700
      %v702 = vsel %vm536, %v701, 0.0
      %703 = vadd.xlane.f32.xlu0 %v702
      %v704 = vpop.xlane.xlu0 %703
      %v705 = vrcp.pop %v704
      %v706 = vmul.f32 %v701, %v705
      %v707 = vpack.c.bf16 %v706, %v706
      %709 = vrot.lane.b32.xlu0 %v535, 120
      %v710 = vpop.permute.xlu0 %709
      %v712 = vsel %vm536, %v707, 0
      %v715 = vsel %vm599, %v710, 0
      %717 = vmatprep.subr.bf16.mxu0 0
      %718 = vmatpush1.bf16.msra.mxu0 0
      %719 = vmatprep.subr.bf16.mxu0 0
      %720 = vmatpush1.bf16.msra.mxu0 0
      %721 = vmatprep.subr.bf16.mxu0 0
      %722 = vmatpush1.bf16.msra.mxu0 0
      %723 = vmatprep.subr.bf16.mxu0 0
      %724 = vmatpush1.bf16.msra.mxu0 0
      %725 = vmatprep.subr.bf16.mxu0 0
      %726 = vmatpush1.bf16.msra.mxu0 0
      %727 = vmatprep.subr.bf16.mxu0 0
      %728 = vmatpush1.bf16.msra.mxu0 0
      %729 = vmatprep.subr.bf16.mxu0 0
      %730 = vmatpush1.bf16.msra.mxu0 0
      %731 = vmatprep.subr.bf16.mxu0 0
      %732 = vmatpush1.bf16.msra.mxu0 %v715
      %733 = vmatprep.subr.bf16.mxu0 0
      %734 = vmatpush2.bf16.msra.mxu0 0
      %735 = vmatprep.subr.bf16.mxu0 0
      %736 = vmatpush2.bf16.msra.mxu0 0
      %737 = vmatprep.subr.bf16.mxu0 0
      %738 = vmatpush2.bf16.msra.mxu0 0
      %739 = vmatprep.subr.bf16.mxu0 0
      %740 = vmatpush2.bf16.msra.mxu0 0
      %741 = vmatprep.subr.bf16.mxu0 0
      %742 = vmatpush2.bf16.msra.mxu0 0
      %743 = vmatprep.subr.bf16.mxu0 0
      %744 = vmatpush2.bf16.msra.mxu0 0
      %745 = vmatprep.subr.bf16.mxu0 0
      %746 = vmatpush2.bf16.msra.mxu0 0
      %747 = vmatprep.subr.bf16.mxu0 0
      %748 = vmatpush2.bf16.msra.mxu0 0
      %749 = vmatprep.mubr.bf16.mxu0 0
      %750 = vmatmul.mubr.bf16.gmra.mxu0 %v712
      %v751 = vpop.f32.mrf.mxu0
      %v752 = vadd.f32 0.0, %v751
      %v753 = vpop.f32.mrf.mxu0
      %v754 = vpop.f32.mrf.mxu0
      %v755 = vpop.f32.mrf.mxu0
      %756 = vdwg.mxu0
      %757 = vrot.lane.b32.xlu0 %v533, 112
      %v758 = vpop.permute.xlu0 %757
      %759 = vrot.lane.b32.xlu0 %v534, 112
      %v760 = vpop.permute.xlu0 %759
      %v762 = vsel %vm536, %v758, 0
      %v765 = vsel %vm536, %v760, 0
      %767 = vmatprep.subr.bf16.mxu0 0
      %768 = vmatpush1.bf16.xpose.msra.mxu0 0
      %769 = vmatprep.subr.bf16.mxu0 0
      %770 = vmatpush1.bf16.xpose.msra.mxu0 0
      %771 = vmatprep.subr.bf16.mxu0 0
      %772 = vmatpush1.bf16.xpose.msra.mxu0 0
      %773 = vmatprep.subr.bf16.mxu0 0
      %774 = vmatpush1.bf16.xpose.msra.mxu0 0
      %775 = vmatprep.subr.bf16.mxu0 0
      %776 = vmatpush1.bf16.xpose.msra.mxu0 0
      %777 = vmatprep.subr.bf16.mxu0 0
      %778 = vmatpush1.bf16.xpose.msra.mxu0 0
      %779 = vmatprep.subr.bf16.mxu0 0
      %780 = vmatpush1.bf16.xpose.msra.mxu0 0
      %781 = vmatprep.subr.bf16.mxu0 0
      %782 = vmatpush1.bf16.xpose.msra.mxu0 %v765
      %783 = vmatprep.subr.bf16.mxu0 0
      %784 = vmatpush2.bf16.xpose.msra.mxu0 0
      %785 = vmatprep.subr.bf16.mxu0 0
      %786 = vmatpush2.bf16.xpose.msra.mxu0 0
      %787 = vmatprep.subr.bf16.mxu0 0
      %788 = vmatpush2.bf16.xpose.msra.mxu0 0
      %789 = vmatprep.subr.bf16.mxu0 0
      %790 = vmatpush2.bf16.xpose.msra.mxu0 0
      %791 = vmatprep.subr.bf16.mxu0 0
      %792 = vmatpush2.bf16.xpose.msra.mxu0 0
      %793 = vmatprep.subr.bf16.mxu0 0
      %794 = vmatpush2.bf16.xpose.msra.mxu0 0
      %795 = vmatprep.subr.bf16.mxu0 0
      %796 = vmatpush2.bf16.xpose.msra.mxu0 0
      %797 = vmatprep.subr.bf16.mxu0 0
      %798 = vmatpush2.bf16.xpose.msra.mxu0 0
      %799 = vmatprep.mubr.bf16.mxu0 0
      %800 = vmatmul.mubr.bf16.gmra.mxu0 %v762
      %v801 = vpop.f32.mrf.mxu0
      %v802 = vadd.f32 0.0, %v801
      %v803 = vpop.f32.mrf.mxu0
      %v804 = vpop.f32.mrf.mxu0
      %v805 = vpop.f32.mrf.mxu0
      %806 = vdwg.mxu0
      %v807 = vsel %vm532, -1e+09, %v802
      %v808 = vsel %vm536, %v807, -inf
      %809 = vmax.xlane.f32.xlu0 %v808
      %v810 = vpop.xlane.xlu0 %809
      %v811 = vsub.f32 %v807, %v810
      %v812 = vmul.f32 %v811, 1.442695
      %v813 = vpow.pop %v812
      %v814 = vsel %vm536, %v813, 0.0
      %815 = vadd.xlane.f32.xlu0 %v814
      %v816 = vpop.xlane.xlu0 %815
      %v817 = vrcp.pop %v816
      %v818 = vmul.f32 %v813, %v817
      %v819 = vpack.c.bf16 %v818, %v818
      %820 = vrot.lane.b32.xlu0 %v535, 112
      %v821 = vpop.permute.xlu0 %820
      %v823 = vsel %vm536, %v819, 0
      %v826 = vsel %vm599, %v821, 0
      %828 = vmatprep.subr.bf16.mxu0 0
      %829 = vmatpush1.bf16.msra.mxu0 0
      %830 = vmatprep.subr.bf16.mxu0 0
      %831 = vmatpush1.bf16.msra.mxu0 0
      %832 = vmatprep.subr.bf16.mxu0 0
      %833 = vmatpush1.bf16.msra.mxu0 0
      %834 = vmatprep.subr.bf16.mxu0 0
      %835 = vmatpush1.bf16.msra.mxu0 0
      %836 = vmatprep.subr.bf16.mxu0 0
      %837 = vmatpush1.bf16.msra.mxu0 0
      %838 = vmatprep.subr.bf16.mxu0 0
      %839 = vmatpush1.bf16.msra.mxu0 0
      %840 = vmatprep.subr.bf16.mxu0 0
      %841 = vmatpush1.bf16.msra.mxu0 0
      %842 = vmatprep.subr.bf16.mxu0 0
      %843 = vmatpush1.bf16.msra.mxu0 %v826
      %844 = vmatprep.subr.bf16.mxu0 0
      %845 = vmatpush2.bf16.msra.mxu0 0
      %846 = vmatprep.subr.bf16.mxu0 0
      %847 = vmatpush2.bf16.msra.mxu0 0
      %848 = vmatprep.subr.bf16.mxu0 0
      %849 = vmatpush2.bf16.msra.mxu0 0
      %850 = vmatprep.subr.bf16.mxu0 0
      %851 = vmatpush2.bf16.msra.mxu0 0
      %852 = vmatprep.subr.bf16.mxu0 0
      %853 = vmatpush2.bf16.msra.mxu0 0
      %854 = vmatprep.subr.bf16.mxu0 0
      %855 = vmatpush2.bf16.msra.mxu0 0
      %856 = vmatprep.subr.bf16.mxu0 0
      %857 = vmatpush2.bf16.msra.mxu0 0
      %858 = vmatprep.subr.bf16.mxu0 0
      %859 = vmatpush2.bf16.msra.mxu0 0
      %860 = vmatprep.mubr.bf16.mxu0 0
      %861 = vmatmul.mubr.bf16.gmra.mxu0 %v823
      %v862 = vpop.f32.mrf.mxu0
      %v863 = vadd.f32 0.0, %v862
      %v864 = vpop.f32.mrf.mxu0
      %v865 = vpop.f32.mrf.mxu0
      %v866 = vpop.f32.mrf.mxu0
      %867 = vdwg.mxu0
      %868 = vrot.lane.b32.xlu0 %v533, 104
      %v869 = vpop.permute.xlu0 %868
      %870 = vrot.lane.b32.xlu0 %v534, 104
      %v871 = vpop.permute.xlu0 %870
      %v873 = vsel %vm536, %v869, 0
      %v876 = vsel %vm536, %v871, 0
      %878 = vmatprep.subr.bf16.mxu0 0
      %879 = vmatpush1.bf16.xpose.msra.mxu0 0
      %880 = vmatprep.subr.bf16.mxu0 0
      %881 = vmatpush1.bf16.xpose.msra.mxu0 0
      %882 = vmatprep.subr.bf16.mxu0 0
      %883 = vmatpush1.bf16.xpose.msra.mxu0 0
      %884 = vmatprep.subr.bf16.mxu0 0
      %885 = vmatpush1.bf16.xpose.msra.mxu0 0
      %886 = vmatprep.subr.bf16.mxu0 0
      %887 = vmatpush1.bf16.xpose.msra.mxu0 0
      %888 = vmatprep.subr.bf16.mxu0 0
      %889 = vmatpush1.bf16.xpose.msra.mxu0 0
      %890 = vmatprep.subr.bf16.mxu0 0
      %891 = vmatpush1.bf16.xpose.msra.mxu0 0
      %892 = vmatprep.subr.bf16.mxu0 0
      %893 = vmatpush1.bf16.xpose.msra.mxu0 %v876
      %894 = vmatprep.subr.bf16.mxu0 0
      %895 = vmatpush2.bf16.xpose.msra.mxu0 0
      %896 = vmatprep.subr.bf16.mxu0 0
      %897 = vmatpush2.bf16.xpose.msra.mxu0 0
      %898 = vmatprep.subr.bf16.mxu0 0
      %899 = vmatpush2.bf16.xpose.msra.mxu0 0
      %900 = vmatprep.subr.bf16.mxu0 0
      %901 = vmatpush2.bf16.xpose.msra.mxu0 0
      %902 = vmatprep.subr.bf16.mxu0 0
      %903 = vmatpush2.bf16.xpose.msra.mxu0 0
      %904 = vmatprep.subr.bf16.mxu0 0
      %905 = vmatpush2.bf16.xpose.msra.mxu0 0
      %906 = vmatprep.subr.bf16.mxu0 0
      %907 = vmatpush2.bf16.xpose.msra.mxu0 0
      %908 = vmatprep.subr.bf16.mxu0 0
      %909 = vmatpush2.bf16.xpose.msra.mxu0 0
      %910 = vmatprep.mubr.bf16.mxu0 0
      %911 = vmatmul.mubr.bf16.gmra.mxu0 %v873
      %v912 = vpop.f32.mrf.mxu0
      %v913 = vadd.f32 0.0, %v912
      %v914 = vpop.f32.mrf.mxu0
      %v915 = vpop.f32.mrf.mxu0
      %v916 = vpop.f32.mrf.mxu0
      %917 = vdwg.mxu0
      %v918 = vsel %vm532, -1e+09, %v913
      %v919 = vsel %vm536, %v918, -inf
      %920 = vmax.xlane.f32.xlu0 %v919
      %v921 = vpop.xlane.xlu0 %920
      %v922 = vsub.f32 %v918, %v921
      %v923 = vmul.f32 %v922, 1.442695
      %v924 = vpow.pop %v923
      %v925 = vsel %vm536, %v924, 0.0
      %926 = vadd.xlane.f32.xlu0 %v925
      %v927 = vpop.xlane.xlu0 %926
      %v928 = vrcp.pop %v927
      %v929 = vmul.f32 %v924, %v928
      %v930 = vpack.c.bf16 %v929, %v929
      %931 = vrot.lane.b32.xlu0 %v535, 104
      %v932 = vpop.permute.xlu0 %931
      %v934 = vsel %vm536, %v930, 0
      %v937 = vsel %vm599, %v932, 0
      %939 = vmatprep.subr.bf16.mxu0 0
      %940 = vmatpush1.bf16.msra.mxu0 0
      %941 = vmatprep.subr.bf16.mxu0 0
      %942 = vmatpush1.bf16.msra.mxu0 0
      %943 = vmatprep.subr.bf16.mxu0 0
      %944 = vmatpush1.bf16.msra.mxu0 0
      %945 = vmatprep.subr.bf16.mxu0 0
      %946 = vmatpush1.bf16.msra.mxu0 0
      %947 = vmatprep.subr.bf16.mxu0 0
      %948 = vmatpush1.bf16.msra.mxu0 0
      %949 = vmatprep.subr.bf16.mxu0 0
      %950 = vmatpush1.bf16.msra.mxu0 0
      %951 = vmatprep.subr.bf16.mxu0 0
      %952 = vmatpush1.bf16.msra.mxu0 0
      %953 = vmatprep.subr.bf16.mxu0 0
      %954 = vmatpush1.bf16.msra.mxu0 %v937
      %955 = vmatprep.subr.bf16.mxu0 0
      %956 = vmatpush2.bf16.msra.mxu0 0
      %957 = vmatprep.subr.bf16.mxu0 0
      %958 = vmatpush2.bf16.msra.mxu0 0
      %959 = vmatprep.subr.bf16.mxu0 0
      %960 = vmatpush2.bf16.msra.mxu0 0
      %961 = vmatprep.subr.bf16.mxu0 0
      %962 = vmatpush2.bf16.msra.mxu0 0
      %963 = vmatprep.subr.bf16.mxu0 0
      %964 = vmatpush2.bf16.msra.mxu0 0
      %965 = vmatprep.subr.bf16.mxu0 0
      %966 = vmatpush2.bf16.msra.mxu0 0
      %967 = vmatprep.subr.bf16.mxu0 0
      %968 = vmatpush2.bf16.msra.mxu0 0
      %969 = vmatprep.subr.bf16.mxu0 0
      %970 = vmatpush2.bf16.msra.mxu0 0
      %971 = vmatprep.mubr.bf16.mxu0 0
      %972 = vmatmul.mubr.bf16.gmra.mxu0 %v934
      %v973 = vpop.f32.mrf.mxu0
      %v974 = vadd.f32 0.0, %v973
      %v975 = vpop.f32.mrf.mxu0
      %v976 = vpop.f32.mrf.mxu0
      %v977 = vpop.f32.mrf.mxu0
      %978 = vdwg.mxu0
      %980 = vrot.lane.b32.xlu0 %v752, 8
      %v981 = vpop.permute.xlu0 %980
      %984 = vrot.lane.b32.xlu0 %v863, 16
      %v985 = vpop.permute.xlu0 %984
      %988 = vrot.lane.b32.xlu0 %v974, 24
      %v989 = vpop.permute.xlu0 %988
      %v991 = vsel %vm536, %v638, %v981
      %vm992 = vcmask 130048
      %v993 = vsel %vm992, %v991, %v985
      %vm994 = vcmask 195584
      %v995 = vsel %vm994, %v993, %v989
      %v996 = vpack.c.bf16 %v995, %v995
      %v997 = vld [vmem:[%s5] sm:$0xff]
      %v998 = vld [vmem:[%s5 + $0x8] sm:$0xff]
      %v999 = vld [vmem:[%s5 + $0x10] sm:$0xff]
      %v1000 = vld [vmem:[%s5 + $0x18] sm:$0xff]
      %v1001 = vpack.c.bf16 %v998, %v997
      %v1002 = vpack.c.bf16 %v1000, %v999
      %v1003 = vld [vmem:[%s6] sm:$0x1]
      %v1005 = vlaneseq
      %v1006 = vshrl.u32 %v1005, 7
      %v1007 = vsub.s32 0, %v1006
      %v1008 = vrot.slane %v1003, %v1007
      %v1011 = vsel %vm377, %v996, 0
      %1013 = vmatprep.subr.bf16.mxu0 0
      %1014 = vmatpush1.bf16.msra.mxu0 0
      %1015 = vmatprep.subr.bf16.mxu0 0
      %1016 = vmatpush1.bf16.msra.mxu0 0
      %1017 = vmatprep.subr.bf16.mxu0 0
      %1018 = vmatpush1.bf16.msra.mxu0 0
      %1019 = vmatprep.subr.bf16.mxu0 0
      %1020 = vmatpush1.bf16.msra.mxu0 0
      %1021 = vmatprep.subr.bf16.mxu0 0
      %1022 = vmatpush1.bf16.msra.mxu0 0
      %1023 = vmatprep.subr.bf16.mxu0 0
      %1024 = vmatpush1.bf16.msra.mxu0 0
      %1025 = vmatprep.subr.bf16.mxu0 0
      %1026 = vmatpush1.bf16.msra.mxu0 %v1002
      %1027 = vmatprep.subr.bf16.mxu0 0
      %1028 = vmatpush1.bf16.msra.mxu0 %v1001
      %1029 = vmatprep.subr.bf16.mxu0 0
      %1030 = vmatpush2.bf16.msra.mxu0 0
      %1031 = vmatprep.subr.bf16.mxu0 0
      %1032 = vmatpush2.bf16.msra.mxu0 0
      %1033 = vmatprep.subr.bf16.mxu0 0
      %1034 = vmatpush2.bf16.msra.mxu0 0
      %1035 = vmatprep.subr.bf16.mxu0 0
      %1036 = vmatpush2.bf16.msra.mxu0 0
      %1037 = vmatprep.subr.bf16.mxu0 0
      %1038 = vmatpush2.bf16.msra.mxu0 0
      %1039 = vmatprep.subr.bf16.mxu0 0
      %1040 = vmatpush2.bf16.msra.mxu0 0
      %1041 = vmatprep.subr.bf16.mxu0 0
      %1042 = vmatpush2.bf16.msra.mxu0 0
      %1043 = vmatprep.subr.bf16.mxu0 0
      %1044 = vmatpush2.bf16.msra.mxu0 0
      %1045 = vmatprep.mubr.bf16.mxu0 0
      %1046 = vmatmul.mubr.bf16.gmra.mxu0 %v1011
      %v1047 = vpop.f32.mrf.mxu0
      %v1048 = vadd.f32 %v1008, %v1047
      %v1049 = vpop.f32.mrf.mxu0
      %v1050 = vpop.f32.mrf.mxu0
      %v1051 = vpop.f32.mrf.mxu0
      %1052 = vdwg.mxu0
      %v1053 = vadd.f32 %v360, %v1048
      %v1054 = vsel %vm377, %v1053, 0.0
      %1055 = vadd.xlane.f32.xlu0 %v1054
      %v1056 = vpop.xlane.xlu0 %1055
      %v1057 = vrcp.pop 32.0
      %v1058 = vmul.f32 %v1056, %v1057
      %v1059 = vsub.f32 %v1053, %v1058
      %v1060 = vmul.f32 %v1059, %v1059
      %v1061 = vsel %vm377, %v1060, 0.0
      %1062 = vadd.xlane.f32.xlu0 %v1061
      %v1063 = vpop.xlane.xlu0 %1062
      %v1064 = vmul.f32 %v1063, %v1057
      %v1065 = vadd.f32 %v1064, 1e-05
      %v1066 = vrsqrt.pop %v1065
      %v1067 = vmul.f32 %v1059, %v1066
      %v1068 = vld [vmem:[%s7] sm:$0x1]
      %v1070 = vlaneseq
      %v1071 = vshrl.u32 %v1070, 7
      %v1072 = vsub.s32 0, %v1071
      %v1073 = vrot.slane %v1068, %v1072
      %v1075 = vmul.f32 %v1067, %v1073
      %v1076 = vld [vmem:[%s8] sm:$0x1]
      %v1078 = vlaneseq
      %v1079 = vshrl.u32 %v1078, 7
      %v1080 = vsub.s32 0, %v1079
      %v1081 = vrot.slane %v1076, %v1080
      %v1083 = vadd.f32 %v1075, %v1081
      %1084 = vst.msk [vmem:[%s358] sm:$0xff] %vm377, %v1083
      %p1085 = scmp.lt.s32.totalorder %s20, 1
      %s1086 = scalar_select %p1085, %s20, 1
      %s1087 = smul.addr %s1086, 8
      %s1088 = scalar_lea.vmem %s9, %s1087
      // Predicated region
      $region57: #{_lambda_.11} parent=55 // pred_check
        %p1089 = pneg %p242
      $region58: #{_lambda_.11} parent=55 // pred_check_branch
        %1091 = sbr.rel (%p1089) target = $region60
      $region59: #{_lambda_.11} parent=55 // pred_region
        _
      $region60: #{_lambda_.11} parent=55 // pred_fallthru
        _
    $region56: #{_lambda_.11} parent=5 // pred_fallthru
      _
    %p1092 = scmp.le.s32.totalorder 2, %s15
    // Predicated region
    $region61: #{_lambda_.11} parent=5 // pred_check
      %p1093 = pneg %p1092
    $region62: #{_lambda_.11} parent=5 // pred_check_branch
      %1095 = sbr.rel (%p1093) target = $region64
    $region63: #{_lambda_.11} parent=5 // pred_region
      %s1096 = ssub.s32 %s15, 2
      // Predicated region
      $region65: #{_lambda_.11} parent=63 // pred_check
        %p1097 = pneg %p248
      $region66: #{_lambda_.11} parent=63 // pred_check_branch
        %1099 = sbr.rel (%p1097) target = $region68
      $region67: #{_lambda_.11} parent=63 // pred_region
        %p1100 = scmp.lt.s32.totalorder %s21, 1
        %s1101 = scalar_select %p1100, %s21, 1
        %s1102 = smul.addr %s1101, 8
        %s1103 = scalar_lea.vmem %s9, %s1102
      $region68: #{_lambda_.11} parent=63 // pred_fallthru
        _
    $region64: #{_lambda_.11} parent=5 // pred_fallthru
      _
  $region6: #{_lambda_.11} parent=0 // loop_footer
    %s19 = sadd.s32 1, %s15
  $region7: #{_lambda_.11} parent=0 // loop_footer_branch
    %14 = sbr.rel target = $region3
  $region8: #{_lambda_.11} parent=0 // loop_exit
    _

// kernel: _lambda_.15
$region0: #{_lambda_.15}
  #allocation0 [shape = 'u32[]', space=smem, size = 0x4, offset = 0x4, fixed_abs, tag = 'smem constant byte address 0x4 - core index']
  #allocation1 [shape = 'u32[144,128]{1,0:T(1,128)}', space=vmem, size = 0x12000, scoped, tag = 'internal scratch']
  %s0 = inlined_call_operand.vmem [shape: f32[2,8,32], index: 0, kind: input, shape index: {}, may-alias: {0,1}]
  %s1 = inlined_call_operand.vmem [shape: f32[2,8,32], index: 1, kind: input, shape index: {}, may-alias: {0,1}]
  %s2 = inlined_call_operand.vmem [shape: s32[2,1,8], index: 2, kind: input, shape index: {}]
  %s3 = inlined_call_operand.vmem [shape: f32[32,96], index: 3, kind: input, shape index: {}]
  %s4 = inlined_call_operand.vmem [shape: f32[1,96], index: 4, kind: input, shape index: {}]
  %s5 = inlined_call_operand.vmem [shape: f32[32,32], index: 5, kind: input, shape index: {}]
  %s6 = inlined_call_operand.vmem [shape: f32[1,32], index: 6, kind: input, shape index: {}]
  %s7 = inlined_call_operand.vmem [shape: f32[1,32], index: 7, kind: input, shape index: {}]
  %s8 = inlined_call_operand.vmem [shape: f32[1,32], index: 8, kind: input, shape index: {}]
  %s9 = inlined_call_operand.vmem [shape: f32[2,8,32], index: 9, kind: output, shape index: {}]
  %s10 = sld [smem:[#allocation0]]
  $region69: #{_lambda_.15} parent=0
    _
  %s12 = ssub.s32 1, %s10
  %s13 = scalar_select 0, %s12, %s10
  loop: start=0, step=1, limit=4
  $region2: #{_lambda_.15} parent=0 // loop_pre_header
    _
  $region3: #{_lambda_.15} parent=0 // loop_header
    %s15 = sphi 0, %s19
    %p16 = scmp.ge.s32.totalorder %s15, 4
    %s25 = sphi 0, %s27
    %s28 = sphi 0, %s25
    %s29 = sphi 0, %s28
    %s45 = sphi 0, %s29
    %s51 = sphi 0, %s53
    %s54 = sphi 0, %s51
    %s55 = sphi 0, %s54
    %s71 = sphi 0, %s55
    %s77 = sphi 0, %s79
    %s80 = sphi 0, %s77
    %s81 = sphi 0, %s80
    %s97 = sphi 0, %s81
    %s101 = sphi 0, %s101
    %s103 = sphi 0, %s101
    %s104 = sphi 0, %s103
    %s118 = sphi 0, %s104
    %s122 = sphi 0, %s122
    %s124 = sphi 0, %s122
    %s125 = sphi 0, %s124
    %s139 = sphi 0, %s125
    %s143 = sphi 0, %s143
    %s145 = sphi 0, %s143
    %s146 = sphi 0, %s145
    %s160 = sphi 0, %s146
    %s164 = sphi 0, %s164
    %s166 = sphi 0, %s164
    %s167 = sphi 0, %s166
    %s181 = sphi 0, %s167
    %s185 = sphi 0, %s185
    %s187 = sphi 0, %s185
    %s188 = sphi 0, %s187
    %s202 = sphi 0, %s188
    %s206 = sphi 0, %s206
    %s208 = sphi 0, %s206
    %s209 = sphi 0, %s208
    %s223 = sphi 0, %s209
    %s229 = sphi 0, %s231
    %s232 = sphi 0, %s229
    %s233 = sphi 0, %s232
    %s249 = sphi 0, %s233
  $region4: #{_lambda_.15} parent=0 // loop_header_branch
    %18 = sbr.rel (%p16) target = $region8
  $region5: #{_lambda_.15} parent=0 // loop_body
    %s20 = ssub.s32 %s15, 1
    %s21 = ssub.s32 %s15, 2
    %s22 = sadd.s32 %s15, 1
    %s23 = ssub.s32 %s15, %s22
    %p24 = scmp.eq.s32.totalorder %s23, 0
    %s26 = sadd.s32 %s25, 1
    %s27 = scalar_select %p24, %s25, %s26
    %p30 = pneg %p24
    %p31 = scmp.eq.s32.totalorder %s15, 1
    %p32 = por %p30, %p31
    %p33 = scmp.ne.s32.totalorder %s25, %s28
    %p34 = scmp.eq.s32.totalorder %s15, 0
    %p35 = por %p33, %p34
    %p36 = scmp.ne.s32.totalorder %s25, %s28
    %p37 = scmp.eq.s32.totalorder %s20, 1
    %p38 = por %p36, %p37
    %p39 = scmp.ne.s32.totalorder %s28, %s29
    %p40 = scmp.eq.s32.totalorder %s20, 0
    %p41 = por %p39, %p40
    %p42 = scmp.ne.s32.totalorder %s28, %s29
    %p43 = scmp.eq.s32.totalorder %s21, 1
    %p44 = por %p42, %p43
    %p46 = scmp.ne.s32.totalorder %s29, %s45
    %p47 = scmp.eq.s32.totalorder %s21, 0
    %p48 = por %p46, %p47
    %s49 = ssub.s32 %s15, %s22
    %p50 = scmp.eq.s32.totalorder %s49, 0
    %s52 = sadd.s32 %s51, 1
    %s53 = scalar_select %p50, %s51, %s52
    %p56 = pneg %p50
    %p57 = scmp.eq.s32.totalorder %s15, 1
    %p58 = por %p56, %p57
    %p59 = scmp.ne.s32.totalorder %s51, %s54
    %p60 = scmp.eq.s32.totalorder %s15, 0
    %p61 = por %p59, %p60
    %p62 = scmp.ne.s32.totalorder %s51, %s54
    %p63 = scmp.eq.s32.totalorder %s20, 1
    %p64 = por %p62, %p63
    %p65 = scmp.ne.s32.totalorder %s54, %s55
    %p66 = scmp.eq.s32.totalorder %s20, 0
    %p67 = por %p65, %p66
    %p68 = scmp.ne.s32.totalorder %s54, %s55
    %p69 = scmp.eq.s32.totalorder %s21, 1
    %p70 = por %p68, %p69
    %p72 = scmp.ne.s32.totalorder %s55, %s71
    %p73 = scmp.eq.s32.totalorder %s21, 0
    %p74 = por %p72, %p73
    %s75 = ssub.s32 %s15, %s22
    %p76 = scmp.eq.s32.totalorder %s75, 0
    %s78 = sadd.s32 %s77, 1
    %s79 = scalar_select %p76, %s77, %s78
    %p82 = pneg %p76
    %p83 = scmp.eq.s32.totalorder %s15, 1
    %p84 = por %p82, %p83
    %p85 = scmp.ne.s32.totalorder %s77, %s80
    %p86 = scmp.eq.s32.totalorder %s15, 0
    %p87 = por %p85, %p86
    %p88 = scmp.ne.s32.totalorder %s77, %s80
    %p89 = scmp.eq.s32.totalorder %s20, 1
    %p90 = por %p88, %p89
    %p91 = scmp.ne.s32.totalorder %s80, %s81
    %p92 = scmp.eq.s32.totalorder %s20, 0
    %p93 = por %p91, %p92
    %p94 = scmp.ne.s32.totalorder %s80, %s81
    %p95 = scmp.eq.s32.totalorder %s21, 1
    %p96 = por %p94, %p95
    %p98 = scmp.ne.s32.totalorder %s81, %s97
    %p99 = scmp.eq.s32.totalorder %s21, 0
    %p100 = por %p98, %p99
    %s102 = sadd.s32 %s101, 1
    %p105 = scmp.eq.s32.totalorder %s15, 1
    %p106 = scmp.ne.s32.totalorder %s101, %s103
    %p107 = scmp.eq.s32.totalorder %s15, 0
    %p108 = por %p106, %p107
    %p109 = scmp.ne.s32.totalorder %s101, %s103
    %p110 = scmp.eq.s32.totalorder %s20, 1
    %p111 = por %p109, %p110
    %p112 = scmp.ne.s32.totalorder %s103, %s104
    %p113 = scmp.eq.s32.totalorder %s20, 0
    %p114 = por %p112, %p113
    %p115 = scmp.ne.s32.totalorder %s103, %s104
    %p116 = scmp.eq.s32.totalorder %s21, 1
    %p117 = por %p115, %p116
    %p119 = scmp.ne.s32.totalorder %s104, %s118
    %p120 = scmp.eq.s32.totalorder %s21, 0
    %p121 = por %p119, %p120
    %s123 = sadd.s32 %s122, 1
    %p126 = scmp.eq.s32.totalorder %s15, 1
    %p127 = scmp.ne.s32.totalorder %s122, %s124
    %p128 = scmp.eq.s32.totalorder %s15, 0
    %p129 = por %p127, %p128
    %p130 = scmp.ne.s32.totalorder %s122, %s124
    %p131 = scmp.eq.s32.totalorder %s20, 1
    %p132 = por %p130, %p131
    %p133 = scmp.ne.s32.totalorder %s124, %s125
    %p134 = scmp.eq.s32.totalorder %s20, 0
    %p135 = por %p133, %p134
    %p136 = scmp.ne.s32.totalorder %s124, %s125
    %p137 = scmp.eq.s32.totalorder %s21, 1
    %p138 = por %p136, %p137
    %p140 = scmp.ne.s32.totalorder %s125, %s139
    %p141 = scmp.eq.s32.totalorder %s21, 0
    %p142 = por %p140, %p141
    %s144 = sadd.s32 %s143, 1
    %p147 = scmp.eq.s32.totalorder %s15, 1
    %p148 = scmp.ne.s32.totalorder %s143, %s145
    %p149 = scmp.eq.s32.totalorder %s15, 0
    %p150 = por %p148, %p149
    %p151 = scmp.ne.s32.totalorder %s143, %s145
    %p152 = scmp.eq.s32.totalorder %s20, 1
    %p153 = por %p151, %p152
    %p154 = scmp.ne.s32.totalorder %s145, %s146
    %p155 = scmp.eq.s32.totalorder %s20, 0
    %p156 = por %p154, %p155
    %p157 = scmp.ne.s32.totalorder %s145, %s146
    %p158 = scmp.eq.s32.totalorder %s21, 1
    %p159 = por %p157, %p158
    %p161 = scmp.ne.s32.totalorder %s146, %s160
    %p162 = scmp.eq.s32.totalorder %s21, 0
    %p163 = por %p161, %p162
    %s165 = sadd.s32 %s164, 1
    %p168 = scmp.eq.s32.totalorder %s15, 1
    %p169 = scmp.ne.s32.totalorder %s164, %s166
    %p170 = scmp.eq.s32.totalorder %s15, 0
    %p171 = por %p169, %p170
    %p172 = scmp.ne.s32.totalorder %s164, %s166
    %p173 = scmp.eq.s32.totalorder %s20, 1
    %p174 = por %p172, %p173
    %p175 = scmp.ne.s32.totalorder %s166, %s167
    %p176 = scmp.eq.s32.totalorder %s20, 0
    %p177 = por %p175, %p176
    %p178 = scmp.ne.s32.totalorder %s166, %s167
    %p179 = scmp.eq.s32.totalorder %s21, 1
    %p180 = por %p178, %p179
    %p182 = scmp.ne.s32.totalorder %s167, %s181
    %p183 = scmp.eq.s32.totalorder %s21, 0
    %p184 = por %p182, %p183
    %s186 = sadd.s32 %s185, 1
    %p189 = scmp.eq.s32.totalorder %s15, 1
    %p190 = scmp.ne.s32.totalorder %s185, %s187
    %p191 = scmp.eq.s32.totalorder %s15, 0
    %p192 = por %p190, %p191
    %p193 = scmp.ne.s32.totalorder %s185, %s187
    %p194 = scmp.eq.s32.totalorder %s20, 1
    %p195 = por %p193, %p194
    %p196 = scmp.ne.s32.totalorder %s187, %s188
    %p197 = scmp.eq.s32.totalorder %s20, 0
    %p198 = por %p196, %p197
    %p199 = scmp.ne.s32.totalorder %s187, %s188
    %p200 = scmp.eq.s32.totalorder %s21, 1
    %p201 = por %p199, %p200
    %p203 = scmp.ne.s32.totalorder %s188, %s202
    %p204 = scmp.eq.s32.totalorder %s21, 0
    %p205 = por %p203, %p204
    %s207 = sadd.s32 %s206, 1
    %p210 = scmp.eq.s32.totalorder %s15, 1
    %p211 = scmp.ne.s32.totalorder %s206, %s208
    %p212 = scmp.eq.s32.totalorder %s15, 0
    %p213 = por %p211, %p212
    %p214 = scmp.ne.s32.totalorder %s206, %s208
    %p215 = scmp.eq.s32.totalorder %s20, 1
    %p216 = por %p214, %p215
    %p217 = scmp.ne.s32.totalorder %s208, %s209
    %p218 = scmp.eq.s32.totalorder %s20, 0
    %p219 = por %p217, %p218
    %p220 = scmp.ne.s32.totalorder %s208, %s209
    %p221 = scmp.eq.s32.totalorder %s21, 1
    %p222 = por %p220, %p221
    %p224 = scmp.ne.s32.totalorder %s209, %s223
    %p225 = scmp.eq.s32.totalorder %s21, 0
    %p226 = por %p224, %p225
    %s227 = ssub.s32 %s15, %s22
    %p228 = scmp.eq.s32.totalorder %s227, 0
    %s230 = sadd.s32 %s229, 1
    %s231 = scalar_select %p228, %s229, %s230
    %p234 = pneg %p228
    %p235 = scmp.eq.s32.totalorder %s15, 1
    %p236 = por %p234, %p235
    %p237 = scmp.ne.s32.totalorder %s229, %s232
    %p238 = scmp.eq.s32.totalorder %s15, 0
    %p239 = por %p237, %p238
    %p240 = scmp.ne.s32.totalorder %s229, %s232
    %p241 = scmp.eq.s32.totalorder %s20, 1
    %p242 = por %p240, %p241
    %p243 = scmp.ne.s32.totalorder %s232, %s233
    %p244 = scmp.eq.s32.totalorder %s20, 0
    %p245 = por %p243, %p244
    %p246 = scmp.ne.s32.totalorder %s232, %s233
    %p247 = scmp.eq.s32.totalorder %s21, 1
    %p248 = por %p246, %p247
    %p250 = scmp.ne.s32.totalorder %s233, %s249
    %p251 = scmp.eq.s32.totalorder %s21, 0
    %p252 = por %p250, %p251
    %p253 = scmp.le.s32.totalorder 1, %s15
    %p254 = scmp.lt.s32.totalorder %s15, 3
    %p255 = pnand %p253, %p254
    %p256 = pneg %p255
    // Predicated region
    $region9: #{_lambda_.15} parent=5 // pred_check
      _
    $region10: #{_lambda_.15} parent=5 // pred_check_branch
      %258 = sbr.rel (%p255) target = $region12
    $region11: #{_lambda_.15} parent=5 // pred_region
      %s259 = ssub.s32 %s15, 1
      // Predicated region
      $region13: #{_lambda_.15} parent=11 // pred_check
        %p260 = pneg %p114
      $region14: #{_lambda_.15} parent=11 // pred_check_branch
        %262 = sbr.rel (%p260) target = $region16
      $region15: #{_lambda_.15} parent=11 // pred_region
        _
      $region16: #{_lambda_.15} parent=11 // pred_fallthru
        _
      // Predicated region
      $region17: #{_lambda_.15} parent=11 // pred_check
        %p263 = pneg %p135
      $region18: #{_lambda_.15} parent=11 // pred_check_branch
        %265 = sbr.rel (%p263) target = $region20
      $region19: #{_lambda_.15} parent=11 // pred_region
        _
      $region20: #{_lambda_.15} parent=11 // pred_fallthru
        _
      // Predicated region
      $region21: #{_lambda_.15} parent=11 // pred_check
        %p266 = pneg %p156
      $region22: #{_lambda_.15} parent=11 // pred_check_branch
        %268 = sbr.rel (%p266) target = $region24
      $region23: #{_lambda_.15} parent=11 // pred_region
        _
      $region24: #{_lambda_.15} parent=11 // pred_fallthru
        _
      // Predicated region
      $region25: #{_lambda_.15} parent=11 // pred_check
        %p269 = pneg %p177
      $region26: #{_lambda_.15} parent=11 // pred_check_branch
        %271 = sbr.rel (%p269) target = $region28
      $region27: #{_lambda_.15} parent=11 // pred_region
        _
      $region28: #{_lambda_.15} parent=11 // pred_fallthru
        _
      // Predicated region
      $region29: #{_lambda_.15} parent=11 // pred_check
        %p272 = pneg %p198
      $region30: #{_lambda_.15} parent=11 // pred_check_branch
        %274 = sbr.rel (%p272) target = $region32
      $region31: #{_lambda_.15} parent=11 // pred_region
        _
      $region32: #{_lambda_.15} parent=11 // pred_fallthru
        _
      // Predicated region
      $region33: #{_lambda_.15} parent=11 // pred_check
        %p275 = pneg %p219
      $region34: #{_lambda_.15} parent=11 // pred_check_branch
        %277 = sbr.rel (%p275) target = $region36
      $region35: #{_lambda_.15} parent=11 // pred_region
        _
      $region36: #{_lambda_.15} parent=11 // pred_fallthru
        _
    $region12: #{_lambda_.15} parent=5 // pred_fallthru
      _
    %p278 = scmp.lt.s32.totalorder %s15, 2
    // Predicated region
    $region37: #{_lambda_.15} parent=5 // pred_check
      %p279 = pneg %p278
    $region38: #{_lambda_.15} parent=5 // pred_check_branch
      %281 = sbr.rel (%p279) target = $region40
    $region39: #{_lambda_.15} parent=5 // pred_region
      // Predicated region
      $region41: #{_lambda_.15} parent=39 // pred_check
        %p282 = pneg %p35
      $region42: #{_lambda_.15} parent=39 // pred_check_branch
        %284 = sbr.rel (%p282) target = $region44
      $region43: #{_lambda_.15} parent=39 // pred_region
        %p285 = scmp.lt.s32.totalorder %s15, 1
        %s286 = scalar_select %p285, %s15, 1
        %s287 = smul.addr %s286, 8
        %s288 = scalar_lea.vmem %s0, %s287
      $region44: #{_lambda_.15} parent=39 // pred_fallthru
        _
      // Predicated region
      $region45: #{_lambda_.15} parent=39 // pred_check
        %p289 = pneg %p61
      $region46: #{_lambda_.15} parent=39 // pred_check_branch
        %291 = sbr.rel (%p289) target = $region48
      $region47: #{_lambda_.15} parent=39 // pred_region
        %p292 = scmp.lt.s32.totalorder %s15, 1
        %s293 = scalar_select %p292, %s15, 1
        %s294 = smul.addr %s293, 8
        %s295 = scalar_lea.vmem %s1, %s294
      $region48: #{_lambda_.15} parent=39 // pred_fallthru
        _
      // Predicated region
      $region49: #{_lambda_.15} parent=39 // pred_check
        %p296 = pneg %p87
      $region50: #{_lambda_.15} parent=39 // pred_check_branch
        %298 = sbr.rel (%p296) target = $region52
      $region51: #{_lambda_.15} parent=39 // pred_region
        %p299 = scmp.lt.s32.totalorder %s15, 1
        %s300 = scalar_select %p299, %s15, 1
        %s301 = scalar_lea.vmem %s2, %s300
      $region52: #{_lambda_.15} parent=39 // pred_fallthru
        _
    $region40: #{_lambda_.15} parent=5 // pred_fallthru
      _
    %p302 = scmp.le.s32.totalorder 1, %s15
    %p303 = scmp.lt.s32.totalorder %s15, 3
    %p304 = pnand %p302, %p303
    %p305 = pneg %p304
    // Predicated region
    $region53: #{_lambda_.15} parent=5 // pred_check
      _
    $region54: #{_lambda_.15} parent=5 // pred_check_branch
      %307 = sbr.rel (%p304) target = $region56
    $region55: #{_lambda_.15} parent=5 // pred_region
      %s308 = ssub.s32 %s15, 1
      %p309 = scmp.lt.s32.totalorder %s20, 1
      %s310 = scalar_select %p309, %s20, 1
      %s311 = smul.addr %s310, 8
      %s312 = scalar_lea.vmem %s0, %s311
      %p313 = pneg %p41
      %p314 = pneg %p38
      %p315 = scmp.lt.s32.totalorder %s20, 1
      %s316 = scalar_select %p315, %s20, 1
      %s317 = smul.addr %s316, 8
      %s318 = scalar_lea.vmem %s1, %s317
      %p319 = pneg %p67
      %p320 = pneg %p64
      %p321 = scmp.lt.s32.totalorder %s20, 1
      %s322 = scalar_select %p321, %s20, 1
      %s323 = scalar_lea.vmem %s2, %s322
      %p324 = pneg %p93
      %p325 = pneg %p90
      %p326 = pneg %p114
      %p327 = pneg %p111
      %p328 = pneg %p135
      %p329 = pneg %p132
      %p330 = pneg %p156
      %p331 = pneg %p153
      %p332 = pneg %p177
      %p333 = pneg %p174
      %p334 = pneg %p198
      %p335 = pneg %p195
      %p336 = pneg %p219
      %p337 = pneg %p216
      %p338 = pneg %p245
      %p339 = pneg %p242
      %p340 = scmp.lt.s32.totalorder %s20, 1
      %s341 = scalar_select %p340, %s20, 1
      %s342 = smul.addr %s341, 8
      %s343 = scalar_lea.vmem %s9, %s342
      %p344 = scmp.lt.s32.totalorder %s20, 1
      %s345 = scalar_select %p344, %s20, 1
      %s346 = smul.addr %s345, 8
      %s347 = scalar_lea.vmem %s0, %s346
      %p348 = scmp.lt.s32.totalorder %s20, 1
      %s349 = scalar_select %p348, %s20, 1
      %s350 = smul.addr %s349, 8
      %s351 = scalar_lea.vmem %s1, %s350
      %p352 = scmp.lt.s32.totalorder %s20, 1
      %s353 = scalar_select %p352, %s20, 1
      %s354 = scalar_lea.vmem %s2, %s353
      %p355 = scmp.lt.s32.totalorder %s20, 1
      %s356 = scalar_select %p355, %s20, 1
      %s357 = smul.addr %s356, 8
      %s358 = scalar_lea.vmem %s9, %s357
      %v360 = vld [vmem:[%s347] sm:$0xff]
      %v361 = vld [vmem:[%s351] sm:$0xff]
      %v362 = vld [vmem:[%s3] sm:$0xff]
      %v363 = vld [vmem:[%s3 + $0x8] sm:$0xff]
      %v364 = vld [vmem:[%s3 + $0x10] sm:$0xff]
      %v365 = vld [vmem:[%s3 + $0x18] sm:$0xff]
      %v366 = vld [vmem:[%s4] sm:$0x1]
      %v367 = vpack.c.bf16 %v360, %v360
      %v368 = vpack.c.bf16 %v361, %v361
      %v369 = vpack.c.bf16 %v363, %v362
      %v370 = vpack.c.bf16 %v365, %v364
      %v372 = vlaneseq
      %v373 = vshrl.u32 %v372, 7
      %v374 = vsub.s32 0, %v373
      %v375 = vrot.slane %v366, %v374
      %vm377 = vcmask 261120
      %v379 = vsel %vm377, %v367, 0
      %381 = vmatprep.subr.bf16.mxu0 0
      %382 = vmatpush1.bf16.msra.mxu0 0
      %383 = vmatprep.subr.bf16.mxu0 0
      %384 = vmatpush1.bf16.msra.mxu0 0
      %385 = vmatprep.subr.bf16.mxu0 0
      %386 = vmatpush1.bf16.msra.mxu0 0
      %387 = vmatprep.subr.bf16.mxu0 0
      %388 = vmatpush1.bf16.msra.mxu0 0
      %389 = vmatprep.subr.bf16.mxu0 0
      %390 = vmatpush1.bf16.msra.mxu0 0
      %391 = vmatprep.subr.bf16.mxu0 0
      %392 = vmatpush1.bf16.msra.mxu0 0
      %393 = vmatprep.subr.bf16.mxu0 0
      %394 = vmatpush1.bf16.msra.mxu0 %v370
      %395 = vmatprep.subr.bf16.mxu0 0
      %396 = vmatpush1.bf16.msra.mxu0 %v369
      %397 = vmatprep.subr.bf16.mxu0 0
      %398 = vmatpush2.bf16.msra.mxu0 0
      %399 = vmatprep.subr.bf16.mxu0 0
      %400 = vmatpush2.bf16.msra.mxu0 0
      %401 = vmatprep.subr.bf16.mxu0 0
      %402 = vmatpush2.bf16.msra.mxu0 0
      %403 = vmatprep.subr.bf16.mxu0 0
      %404 = vmatpush2.bf16.msra.mxu0 0
      %405 = vmatprep.subr.bf16.mxu0 0
      %406 = vmatpush2.bf16.msra.mxu0 0
      %407 = vmatprep.subr.bf16.mxu0 0
      %408 = vmatpush2.bf16.msra.mxu0 0
      %409 = vmatprep.subr.bf16.mxu0 0
      %410 = vmatpush2.bf16.msra.mxu0 0
      %411 = vmatprep.subr.bf16.mxu0 0
      %412 = vmatpush2.bf16.msra.mxu0 0
      %413 = vmatprep.mubr.bf16.mxu0 0
      %414 = vmatmul.mubr.bf16.gmra.mxu0 %v379
      %v415 = vpop.f32.mrf.mxu0
      %v416 = vadd.f32 %v375, %v415
      %v417 = vpop.f32.mrf.mxu0
      %v418 = vpop.f32.mrf.mxu0
      %v419 = vpop.f32.mrf.mxu0
      %420 = vdwg.mxu0
      %423 = vrot.lane.b32.xlu0 %v369, 96
      %v424 = vpop.permute.xlu0 %423
      %425 = vrot.lane.b32.xlu0 %v370, 96
      %v426 = vpop.permute.xlu0 %425
      %429 = vrot.lane.b32.xlu0 %v375, 96
      %v430 = vpop.permute.xlu0 %429
      %v433 = vsel %vm377, %v368, 0
      %435 = vmatprep.subr.bf16.mxu0 0
      %436 = vmatpush1.bf16.msra.mxu0 0
      %437 = vmatprep.subr.bf16.mxu0 0
      %438 = vmatpush1.bf16.msra.mxu0 0
      %439 = vmatprep.subr.bf16.mxu0 0
      %440 = vmatpush1.bf16.msra.mxu0 0
      %441 = vmatprep.subr.bf16.mxu0 0
      %442 = vmatpush1.bf16.msra.mxu0 0
      %443 = vmatprep.subr.bf16.mxu0 0
      %444 = vmatpush1.bf16.msra.mxu0 0
      %445 = vmatprep.subr.bf16.mxu0 0
      %446 = vmatpush1.bf16.msra.mxu0 0
      %447 = vmatprep.subr.bf16.mxu0 0
      %448 = vmatpush1.bf16.msra.mxu0 %v426
      %449 = vmatprep.subr.bf16.mxu0 0
      %450 = vmatpush1.bf16.msra.mxu0 %v424
      %451 = vmatprep.subr.bf16.mxu0 0
      %452 = vmatpush2.bf16.msra.mxu0 0
      %453 = vmatprep.subr.bf16.mxu0 0
      %454 = vmatpush2.bf16.msra.mxu0 0
      %455 = vmatprep.subr.bf16.mxu0 0
      %456 = vmatpush2.bf16.msra.mxu0 0
      %457 = vmatprep.subr.bf16.mxu0 0
      %458 = vmatpush2.bf16.msra.mxu0 0
      %459 = vmatprep.subr.bf16.mxu0 0
      %460 = vmatpush2.bf16.msra.mxu0 0
      %461 = vmatprep.subr.bf16.mxu0 0
      %462 = vmatpush2.bf16.msra.mxu0 0
      %463 = vmatprep.subr.bf16.mxu0 0
      %464 = vmatpush2.bf16.msra.mxu0 0
      %465 = vmatprep.subr.bf16.mxu0 0
      %466 = vmatpush2.bf16.msra.mxu0 0
      %467 = vmatprep.mubr.bf16.mxu0 0
      %468 = vmatmul.mubr.bf16.gmra.mxu0 %v433
      %v469 = vpop.f32.mrf.mxu0
      %v470 = vadd.f32 %v430, %v469
      %v471 = vpop.f32.mrf.mxu0
      %v472 = vpop.f32.mrf.mxu0
      %v473 = vpop.f32.mrf.mxu0
      %474 = vdwg.mxu0
      %475 = vrot.lane.b32.xlu0 %v369, 64
      %v476 = vpop.permute.xlu0 %475
      %477 = vrot.lane.b32.xlu0 %v370, 64
      %v478 = vpop.permute.xlu0 %477
      %481 = vrot.lane.b32.xlu0 %v375, 64
      %v482 = vpop.permute.xlu0 %481
      %484 = vmatprep.subr.bf16.mxu0 0
      %485 = vmatpush1.bf16.msra.mxu0 0
      %486 = vmatprep.subr.bf16.mxu0 0
      %487 = vmatpush1.bf16.msra.mxu0 0
      %488 = vmatprep.subr.bf16.mxu0 0
      %489 = vmatpush1.bf16.msra.mxu0 0
      %490 = vmatprep.subr.bf16.mxu0 0
      %491 = vmatpush1.bf16.msra.mxu0 0
      %492 = vmatprep.subr.bf16.mxu0 0
      %493 = vmatpush1.bf16.msra.mxu0 0
      %494 = vmatprep.subr.bf16.mxu0 0
      %495 = vmatpush1.bf16.msra.mxu0 0
      %496 = vmatprep.subr.bf16.mxu0 0
      %497 = vmatpush1.bf16.msra.mxu0 %v478
      %498 = vmatprep.subr.bf16.mxu0 0
      %499 = vmatpush1.bf16.msra.mxu0 %v476
      %500 = vmatprep.subr.bf16.mxu0 0
      %501 = vmatpush2.bf16.msra.mxu0 0
      %502 = vmatprep.subr.bf16.mxu0 0
      %503 = vmatpush2.bf16.msra.mxu0 0
      %504 = vmatprep.subr.bf16.mxu0 0
      %505 = vmatpush2.bf16.msra.mxu0 0
      %506 = vmatprep.subr.bf16.mxu0 0
      %507 = vmatpush2.bf16.msra.mxu0 0
      %508 = vmatprep.subr.bf16.mxu0 0
      %509 = vmatpush2.bf16.msra.mxu0 0
      %510 = vmatprep.subr.bf16.mxu0 0
      %511 = vmatpush2.bf16.msra.mxu0 0
      %512 = vmatprep.subr.bf16.mxu0 0
      %513 = vmatpush2.bf16.msra.mxu0 0
      %514 = vmatprep.subr.bf16.mxu0 0
      %515 = vmatpush2.bf16.msra.mxu0 0
      %516 = vmatprep.mubr.bf16.mxu0 0
      %517 = vmatmul.mubr.bf16.gmra.mxu0 %v433
      %v518 = vpop.f32.mrf.mxu0
      %v519 = vadd.f32 %v482, %v518
      %v520 = vpop.f32.mrf.mxu0
      %v521 = vpop.f32.mrf.mxu0
      %v522 = vpop.f32.mrf.mxu0
      %523 = vdwg.mxu0
      %v524 = vmul.f32 %v416, 0.35355338
      %v525 = vld [vmem:[%s354] sm:$0x1]
      %vm526 = vcmp.ne.s32.totalorder %v525, 0
      %v527 = vsel %vm526, 1, 0
      %v528 = vlaneseq
      %v529 = vshrl.u32 %v528, 7
      %v530 = vsub.s32 0, %v529
      %v531 = vrot.slane %v527, %v530
      %vm532 = vcmp.eq.s32.totalorder %v531, 1
      %v533 = vlaneseq
      %v534 = vshrl.u32 %v533, 7
      %v535 = vlaneseq
      %v536 = vand.u32 %v535, 127
      %vm537 = vcmp.gt.s32.totalorder %v536, %v534
      %vm538 = vmor %vm532, %vm537
      %v539 = vpack.c.bf16 %v524, %v524
      %v540 = vpack.c.bf16 %v470, %v470
      %v541 = vpack.c.bf16 %v519, %v519
      %vm542 = vcmask 64512
      %v544 = vsel %vm542, %v539, 0
      %v547 = vsel %vm542, %v540, 0
      %549 = vmatprep.subr.bf16.mxu0 0
      %550 = vmatpush1.bf16.xpose.msra.mxu0 0
      %551 = vmatprep.subr.bf16.mxu0 0
      %552 = vmatpush1.bf16.xpose.msra.mxu0 0
      %553 = vmatprep.subr.bf16.mxu0 0
      %554 = vmatpush1.bf16.xpose.msra.mxu0 0
      %555 = vmatprep.subr.bf16.mxu0 0
      %556 = vmatpush1.bf16.xpose.msra.mxu0 0
      %557 = vmatprep.subr.bf16.mxu0 0
      %558 = vmatpush1.bf16.xpose.msra.mxu0 0
      %559 = vmatprep.subr.bf16.mxu0 0
      %560 = vmatpush1.bf16.xpose.msra.mxu0 0
      %561 = vmatprep.subr.bf16.mxu0 0
      %562 = vmatpush1.bf16.xpose.msra.mxu0 0
      %563 = vmatprep.subr.bf16.mxu0 0
      %564 = vmatpush1.bf16.xpose.msra.mxu0 %v547
      %565 = vmatprep.subr.bf16.mxu0 0
      %566 = vmatpush2.bf16.xpose.msra.mxu0 0
      %567 = vmatprep.subr.bf16.mxu0 0
      %568 = vmatpush2.bf16.xpose.msra.mxu0 0
      %569 = vmatprep.subr.bf16.mxu0 0
      %570 = vmatpush2.bf16.xpose.msra.mxu0 0
      %571 = vmatprep.subr.bf16.mxu0 0
      %572 = vmatpush2.bf16.xpose.msra.mxu0 0
      %573 = vmatprep.subr.bf16.mxu0 0
      %574 = vmatpush2.bf16.xpose.msra.mxu0 0
      %575 = vmatprep.subr.bf16.mxu0 0
      %576 = vmatpush2.bf16.xpose.msra.mxu0 0
      %577 = vmatprep.subr.bf16.mxu0 0
      %578 = vmatpush2.bf16.xpose.msra.mxu0 0
      %579 = vmatprep.subr.bf16.mxu0 0
      %580 = vmatpush2.bf16.xpose.msra.mxu0 0
      %581 = vmatprep.mubr.bf16.mxu0 0
      %582 = vmatmul.mubr.bf16.gmra.mxu0 %v544
      %v583 = vpop.f32.mrf.mxu0
      %v584 = vadd.f32 0.0, %v583
      %v585 = vpop.f32.mrf.mxu0
      %v586 = vpop.f32.mrf.mxu0
      %v587 = vpop.f32.mrf.mxu0
      %588 = vdwg.mxu0
      %v589 = vsel %vm538, -1e+09, %v584
      %v590 = vsel %vm542, %v589, -inf
      %591 = vmax.xlane.f32.xlu0 %v590
      %v592 = vpop.xlane.xlu0 %591
      %v593 = vsub.f32 %v589, %v592
      %v594 = vmul.f32 %v593, 1.442695
      %v595 = vpow.pop %v594
      %v596 = vsel %vm542, %v595, 0.0
      %597 = vadd.xlane.f32.xlu0 %v596
      %v598 = vpop.xlane.xlu0 %597
      %v599 = vrcp.pop %v598
      %v600 = vmul.f32 %v595, %v599
      %v601 = vpack.c.bf16 %v600, %v600
      %v603 = vsel %vm542, %v601, 0
      %vm605 = vcmask 1043456
      %v607 = vsel %vm605, %v541, 0
      %609 = vmatprep.subr.bf16.mxu0 0
      %610 = vmatpush1.bf16.msra.mxu0 0
      %611 = vmatprep.subr.bf16.mxu0 0
      %612 = vmatpush1.bf16.msra.mxu0 0
      %613 = vmatprep.subr.bf16.mxu0 0
      %614 = vmatpush1.bf16.msra.mxu0 0
      %615 = vmatprep.subr.bf16.mxu0 0
      %616 = vmatpush1.bf16.msra.mxu0 0
      %617 = vmatprep.subr.bf16.mxu0 0
      %618 = vmatpush1.bf16.msra.mxu0 0
      %619 = vmatprep.subr.bf16.mxu0 0
      %620 = vmatpush1.bf16.msra.mxu0 0
      %621 = vmatprep.subr.bf16.mxu0 0
      %622 = vmatpush1.bf16.msra.mxu0 0
      %623 = vmatprep.subr.bf16.mxu0 0
      %624 = vmatpush1.bf16.msra.mxu0 %v607
      %625 = vmatprep.subr.bf16.mxu0 0
      %626 = vmatpush2.bf16.msra.mxu0 0
      %627 = vmatprep.subr.bf16.mxu0 0
      %628 = vmatpush2.bf16.msra.mxu0 0
      %629 = vmatprep.subr.bf16.mxu0 0
      %630 = vmatpush2.bf16.msra.mxu0 0
      %631 = vmatprep.subr.bf16.mxu0 0
      %632 = vmatpush2.bf16.msra.mxu0 0
      %633 = vmatprep.subr.bf16.mxu0 0
      %634 = vmatpush2.bf16.msra.mxu0 0
      %635 = vmatprep.subr.bf16.mxu0 0
      %636 = vmatpush2.bf16.msra.mxu0 0
      %637 = vmatprep.subr.bf16.mxu0 0
      %638 = vmatpush2.bf16.msra.mxu0 0
      %639 = vmatprep.subr.bf16.mxu0 0
      %640 = vmatpush2.bf16.msra.mxu0 0
      %641 = vmatprep.mubr.bf16.mxu0 0
      %642 = vmatmul.mubr.bf16.gmra.mxu0 %v603
      %v643 = vpop.f32.mrf.mxu0
      %v644 = vadd.f32 0.0, %v643
      %v645 = vpop.f32.mrf.mxu0
      %v646 = vpop.f32.mrf.mxu0
      %v647 = vpop.f32.mrf.mxu0
      %648 = vdwg.mxu0
      %650 = vrot.lane.b32.xlu0 %v539, 120
      %v651 = vpop.permute.xlu0 %650
      %653 = vrot.lane.b32.xlu0 %v540, 120
      %v654 = vpop.permute.xlu0 %653
      %v656 = vsel %vm542, %v651, 0
      %v659 = vsel %vm542, %v654, 0
      %661 = vmatprep.subr.bf16.mxu0 0
      %662 = vmatpush1.bf16.xpose.msra.mxu0 0
      %663 = vmatprep.subr.bf16.mxu0 0
      %664 = vmatpush1.bf16.xpose.msra.mxu0 0
      %665 = vmatprep.subr.bf16.mxu0 0
      %666 = vmatpush1.bf16.xpose.msra.mxu0 0
      %667 = vmatprep.subr.bf16.mxu0 0
      %668 = vmatpush1.bf16.xpose.msra.mxu0 0
      %669 = vmatprep.subr.bf16.mxu0 0
      %670 = vmatpush1.bf16.xpose.msra.mxu0 0
      %671 = vmatprep.subr.bf16.mxu0 0
      %672 = vmatpush1.bf16.xpose.msra.mxu0 0
      %673 = vmatprep.subr.bf16.mxu0 0
      %674 = vmatpush1.bf16.xpose.msra.mxu0 0
      %675 = vmatprep.subr.bf16.mxu0 0
      %676 = vmatpush1.bf16.xpose.msra.mxu0 %v659
      %677 = vmatprep.subr.bf16.mxu0 0
      %678 = vmatpush2.bf16.xpose.msra.mxu0 0
      %679 = vmatprep.subr.bf16.mxu0 0
      %680 = vmatpush2.bf16.xpose.msra.mxu0 0
      %681 = vmatprep.subr.bf16.mxu0 0
      %682 = vmatpush2.bf16.xpose.msra.mxu0 0
      %683 = vmatprep.subr.bf16.mxu0 0
      %684 = vmatpush2.bf16.xpose.msra.mxu0 0
      %685 = vmatprep.subr.bf16.mxu0 0
      %686 = vmatpush2.bf16.xpose.msra.mxu0 0
      %687 = vmatprep.subr.bf16.mxu0 0
      %688 = vmatpush2.bf16.xpose.msra.mxu0 0
      %689 = vmatprep.subr.bf16.mxu0 0
      %690 = vmatpush2.bf16.xpose.msra.mxu0 0
      %691 = vmatprep.subr.bf16.mxu0 0
      %692 = vmatpush2.bf16.xpose.msra.mxu0 0
      %693 = vmatprep.mubr.bf16.mxu0 0
      %694 = vmatmul.mubr.bf16.gmra.mxu0 %v656
      %v695 = vpop.f32.mrf.mxu0
      %v696 = vadd.f32 0.0, %v695
      %v697 = vpop.f32.mrf.mxu0
      %v698 = vpop.f32.mrf.mxu0
      %v699 = vpop.f32.mrf.mxu0
      %700 = vdwg.mxu0
      %v701 = vsel %vm538, -1e+09, %v696
      %v702 = vsel %vm542, %v701, -inf
      %703 = vmax.xlane.f32.xlu0 %v702
      %v704 = vpop.xlane.xlu0 %703
      %v705 = vsub.f32 %v701, %v704
      %v706 = vmul.f32 %v705, 1.442695
      %v707 = vpow.pop %v706
      %v708 = vsel %vm542, %v707, 0.0
      %709 = vadd.xlane.f32.xlu0 %v708
      %v710 = vpop.xlane.xlu0 %709
      %v711 = vrcp.pop %v710
      %v712 = vmul.f32 %v707, %v711
      %v713 = vpack.c.bf16 %v712, %v712
      %715 = vrot.lane.b32.xlu0 %v541, 120
      %v716 = vpop.permute.xlu0 %715
      %v718 = vsel %vm542, %v713, 0
      %v721 = vsel %vm605, %v716, 0
      %723 = vmatprep.subr.bf16.mxu0 0
      %724 = vmatpush1.bf16.msra.mxu0 0
      %725 = vmatprep.subr.bf16.mxu0 0
      %726 = vmatpush1.bf16.msra.mxu0 0
      %727 = vmatprep.subr.bf16.mxu0 0
      %728 = vmatpush1.bf16.msra.mxu0 0
      %729 = vmatprep.subr.bf16.mxu0 0
      %730 = vmatpush1.bf16.msra.mxu0 0
      %731 = vmatprep.subr.bf16.mxu0 0
      %732 = vmatpush1.bf16.msra.mxu0 0
      %733 = vmatprep.subr.bf16.mxu0 0
      %734 = vmatpush1.bf16.msra.mxu0 0
      %735 = vmatprep.subr.bf16.mxu0 0
      %736 = vmatpush1.bf16.msra.mxu0 0
      %737 = vmatprep.subr.bf16.mxu0 0
      %738 = vmatpush1.bf16.msra.mxu0 %v721
      %739 = vmatprep.subr.bf16.mxu0 0
      %740 = vmatpush2.bf16.msra.mxu0 0
      %741 = vmatprep.subr.bf16.mxu0 0
      %742 = vmatpush2.bf16.msra.mxu0 0
      %743 = vmatprep.subr.bf16.mxu0 0
      %744 = vmatpush2.bf16.msra.mxu0 0
      %745 = vmatprep.subr.bf16.mxu0 0
      %746 = vmatpush2.bf16.msra.mxu0 0
      %747 = vmatprep.subr.bf16.mxu0 0
      %748 = vmatpush2.bf16.msra.mxu0 0
      %749 = vmatprep.subr.bf16.mxu0 0
      %750 = vmatpush2.bf16.msra.mxu0 0
      %751 = vmatprep.subr.bf16.mxu0 0
      %752 = vmatpush2.bf16.msra.mxu0 0
      %753 = vmatprep.subr.bf16.mxu0 0
      %754 = vmatpush2.bf16.msra.mxu0 0
      %755 = vmatprep.mubr.bf16.mxu0 0
      %756 = vmatmul.mubr.bf16.gmra.mxu0 %v718
      %v757 = vpop.f32.mrf.mxu0
      %v758 = vadd.f32 0.0, %v757
      %v759 = vpop.f32.mrf.mxu0
      %v760 = vpop.f32.mrf.mxu0
      %v761 = vpop.f32.mrf.mxu0
      %762 = vdwg.mxu0
      %763 = vrot.lane.b32.xlu0 %v539, 112
      %v764 = vpop.permute.xlu0 %763
      %765 = vrot.lane.b32.xlu0 %v540, 112
      %v766 = vpop.permute.xlu0 %765
      %v768 = vsel %vm542, %v764, 0
      %v771 = vsel %vm542, %v766, 0
      %773 = vmatprep.subr.bf16.mxu0 0
      %774 = vmatpush1.bf16.xpose.msra.mxu0 0
      %775 = vmatprep.subr.bf16.mxu0 0
      %776 = vmatpush1.bf16.xpose.msra.mxu0 0
      %777 = vmatprep.subr.bf16.mxu0 0
      %778 = vmatpush1.bf16.xpose.msra.mxu0 0
      %779 = vmatprep.subr.bf16.mxu0 0
      %780 = vmatpush1.bf16.xpose.msra.mxu0 0
      %781 = vmatprep.subr.bf16.mxu0 0
      %782 = vmatpush1.bf16.xpose.msra.mxu0 0
      %783 = vmatprep.subr.bf16.mxu0 0
      %784 = vmatpush1.bf16.xpose.msra.mxu0 0
      %785 = vmatprep.subr.bf16.mxu0 0
      %786 = vmatpush1.bf16.xpose.msra.mxu0 0
      %787 = vmatprep.subr.bf16.mxu0 0
      %788 = vmatpush1.bf16.xpose.msra.mxu0 %v771
      %789 = vmatprep.subr.bf16.mxu0 0
      %790 = vmatpush2.bf16.xpose.msra.mxu0 0
      %791 = vmatprep.subr.bf16.mxu0 0
      %792 = vmatpush2.bf16.xpose.msra.mxu0 0
      %793 = vmatprep.subr.bf16.mxu0 0
      %794 = vmatpush2.bf16.xpose.msra.mxu0 0
      %795 = vmatprep.subr.bf16.mxu0 0
      %796 = vmatpush2.bf16.xpose.msra.mxu0 0
      %797 = vmatprep.subr.bf16.mxu0 0
      %798 = vmatpush2.bf16.xpose.msra.mxu0 0
      %799 = vmatprep.subr.bf16.mxu0 0
      %800 = vmatpush2.bf16.xpose.msra.mxu0 0
      %801 = vmatprep.subr.bf16.mxu0 0
      %802 = vmatpush2.bf16.xpose.msra.mxu0 0
      %803 = vmatprep.subr.bf16.mxu0 0
      %804 = vmatpush2.bf16.xpose.msra.mxu0 0
      %805 = vmatprep.mubr.bf16.mxu0 0
      %806 = vmatmul.mubr.bf16.gmra.mxu0 %v768
      %v807 = vpop.f32.mrf.mxu0
      %v808 = vadd.f32 0.0, %v807
      %v809 = vpop.f32.mrf.mxu0
      %v810 = vpop.f32.mrf.mxu0
      %v811 = vpop.f32.mrf.mxu0
      %812 = vdwg.mxu0
      %v813 = vsel %vm538, -1e+09, %v808
      %v814 = vsel %vm542, %v813, -inf
      %815 = vmax.xlane.f32.xlu0 %v814
      %v816 = vpop.xlane.xlu0 %815
      %v817 = vsub.f32 %v813, %v816
      %v818 = vmul.f32 %v817, 1.442695
      %v819 = vpow.pop %v818
      %v820 = vsel %vm542, %v819, 0.0
      %821 = vadd.xlane.f32.xlu0 %v820
      %v822 = vpop.xlane.xlu0 %821
      %v823 = vrcp.pop %v822
      %v824 = vmul.f32 %v819, %v823
      %v825 = vpack.c.bf16 %v824, %v824
      %826 = vrot.lane.b32.xlu0 %v541, 112
      %v827 = vpop.permute.xlu0 %826
      %v829 = vsel %vm542, %v825, 0
      %v832 = vsel %vm605, %v827, 0
      %834 = vmatprep.subr.bf16.mxu0 0
      %835 = vmatpush1.bf16.msra.mxu0 0
      %836 = vmatprep.subr.bf16.mxu0 0
      %837 = vmatpush1.bf16.msra.mxu0 0
      %838 = vmatprep.subr.bf16.mxu0 0
      %839 = vmatpush1.bf16.msra.mxu0 0
      %840 = vmatprep.subr.bf16.mxu0 0
      %841 = vmatpush1.bf16.msra.mxu0 0
      %842 = vmatprep.subr.bf16.mxu0 0
      %843 = vmatpush1.bf16.msra.mxu0 0
      %844 = vmatprep.subr.bf16.mxu0 0
      %845 = vmatpush1.bf16.msra.mxu0 0
      %846 = vmatprep.subr.bf16.mxu0 0
      %847 = vmatpush1.bf16.msra.mxu0 0
      %848 = vmatprep.subr.bf16.mxu0 0
      %849 = vmatpush1.bf16.msra.mxu0 %v832
      %850 = vmatprep.subr.bf16.mxu0 0
      %851 = vmatpush2.bf16.msra.mxu0 0
      %852 = vmatprep.subr.bf16.mxu0 0
      %853 = vmatpush2.bf16.msra.mxu0 0
      %854 = vmatprep.subr.bf16.mxu0 0
      %855 = vmatpush2.bf16.msra.mxu0 0
      %856 = vmatprep.subr.bf16.mxu0 0
      %857 = vmatpush2.bf16.msra.mxu0 0
      %858 = vmatprep.subr.bf16.mxu0 0
      %859 = vmatpush2.bf16.msra.mxu0 0
      %860 = vmatprep.subr.bf16.mxu0 0
      %861 = vmatpush2.bf16.msra.mxu0 0
      %862 = vmatprep.subr.bf16.mxu0 0
      %863 = vmatpush2.bf16.msra.mxu0 0
      %864 = vmatprep.subr.bf16.mxu0 0
      %865 = vmatpush2.bf16.msra.mxu0 0
      %866 = vmatprep.mubr.bf16.mxu0 0
      %867 = vmatmul.mubr.bf16.gmra.mxu0 %v829
      %v868 = vpop.f32.mrf.mxu0
      %v869 = vadd.f32 0.0, %v868
      %v870 = vpop.f32.mrf.mxu0
      %v871 = vpop.f32.mrf.mxu0
      %v872 = vpop.f32.mrf.mxu0
      %873 = vdwg.mxu0
      %874 = vrot.lane.b32.xlu0 %v539, 104
      %v875 = vpop.permute.xlu0 %874
      %876 = vrot.lane.b32.xlu0 %v540, 104
      %v877 = vpop.permute.xlu0 %876
      %v879 = vsel %vm542, %v875, 0
      %v882 = vsel %vm542, %v877, 0
      %884 = vmatprep.subr.bf16.mxu0 0
      %885 = vmatpush1.bf16.xpose.msra.mxu0 0
      %886 = vmatprep.subr.bf16.mxu0 0
      %887 = vmatpush1.bf16.xpose.msra.mxu0 0
      %888 = vmatprep.subr.bf16.mxu0 0
      %889 = vmatpush1.bf16.xpose.msra.mxu0 0
      %890 = vmatprep.subr.bf16.mxu0 0
      %891 = vmatpush1.bf16.xpose.msra.mxu0 0
      %892 = vmatprep.subr.bf16.mxu0 0
      %893 = vmatpush1.bf16.xpose.msra.mxu0 0
      %894 = vmatprep.subr.bf16.mxu0 0
      %895 = vmatpush1.bf16.xpose.msra.mxu0 0
      %896 = vmatprep.subr.bf16.mxu0 0
      %897 = vmatpush1.bf16.xpose.msra.mxu0 0
      %898 = vmatprep.subr.bf16.mxu0 0
      %899 = vmatpush1.bf16.xpose.msra.mxu0 %v882
      %900 = vmatprep.subr.bf16.mxu0 0
      %901 = vmatpush2.bf16.xpose.msra.mxu0 0
      %902 = vmatprep.subr.bf16.mxu0 0
      %903 = vmatpush2.bf16.xpose.msra.mxu0 0
      %904 = vmatprep.subr.bf16.mxu0 0
      %905 = vmatpush2.bf16.xpose.msra.mxu0 0
      %906 = vmatprep.subr.bf16.mxu0 0
      %907 = vmatpush2.bf16.xpose.msra.mxu0 0
      %908 = vmatprep.subr.bf16.mxu0 0
      %909 = vmatpush2.bf16.xpose.msra.mxu0 0
      %910 = vmatprep.subr.bf16.mxu0 0
      %911 = vmatpush2.bf16.xpose.msra.mxu0 0
      %912 = vmatprep.subr.bf16.mxu0 0
      %913 = vmatpush2.bf16.xpose.msra.mxu0 0
      %914 = vmatprep.subr.bf16.mxu0 0
      %915 = vmatpush2.bf16.xpose.msra.mxu0 0
      %916 = vmatprep.mubr.bf16.mxu0 0
      %917 = vmatmul.mubr.bf16.gmra.mxu0 %v879
      %v918 = vpop.f32.mrf.mxu0
      %v919 = vadd.f32 0.0, %v918
      %v920 = vpop.f32.mrf.mxu0
      %v921 = vpop.f32.mrf.mxu0
      %v922 = vpop.f32.mrf.mxu0
      %923 = vdwg.mxu0
      %v924 = vsel %vm538, -1e+09, %v919
      %v925 = vsel %vm542, %v924, -inf
      %926 = vmax.xlane.f32.xlu0 %v925
      %v927 = vpop.xlane.xlu0 %926
      %v928 = vsub.f32 %v924, %v927
      %v929 = vmul.f32 %v928, 1.442695
      %v930 = vpow.pop %v929
      %v931 = vsel %vm542, %v930, 0.0
      %932 = vadd.xlane.f32.xlu0 %v931
      %v933 = vpop.xlane.xlu0 %932
      %v934 = vrcp.pop %v933
      %v935 = vmul.f32 %v930, %v934
      %v936 = vpack.c.bf16 %v935, %v935
      %937 = vrot.lane.b32.xlu0 %v541, 104
      %v938 = vpop.permute.xlu0 %937
      %v940 = vsel %vm542, %v936, 0
      %v943 = vsel %vm605, %v938, 0
      %945 = vmatprep.subr.bf16.mxu0 0
      %946 = vmatpush1.bf16.msra.mxu0 0
      %947 = vmatprep.subr.bf16.mxu0 0
      %948 = vmatpush1.bf16.msra.mxu0 0
      %949 = vmatprep.subr.bf16.mxu0 0
      %950 = vmatpush1.bf16.msra.mxu0 0
      %951 = vmatprep.subr.bf16.mxu0 0
      %952 = vmatpush1.bf16.msra.mxu0 0
      %953 = vmatprep.subr.bf16.mxu0 0
      %954 = vmatpush1.bf16.msra.mxu0 0
      %955 = vmatprep.subr.bf16.mxu0 0
      %956 = vmatpush1.bf16.msra.mxu0 0
      %957 = vmatprep.subr.bf16.mxu0 0
      %958 = vmatpush1.bf16.msra.mxu0 0
      %959 = vmatprep.subr.bf16.mxu0 0
      %960 = vmatpush1.bf16.msra.mxu0 %v943
      %961 = vmatprep.subr.bf16.mxu0 0
      %962 = vmatpush2.bf16.msra.mxu0 0
      %963 = vmatprep.subr.bf16.mxu0 0
      %964 = vmatpush2.bf16.msra.mxu0 0
      %965 = vmatprep.subr.bf16.mxu0 0
      %966 = vmatpush2.bf16.msra.mxu0 0
      %967 = vmatprep.subr.bf16.mxu0 0
      %968 = vmatpush2.bf16.msra.mxu0 0
      %969 = vmatprep.subr.bf16.mxu0 0
      %970 = vmatpush2.bf16.msra.mxu0 0
      %971 = vmatprep.subr.bf16.mxu0 0
      %972 = vmatpush2.bf16.msra.mxu0 0
      %973 = vmatprep.subr.bf16.mxu0 0
      %974 = vmatpush2.bf16.msra.mxu0 0
      %975 = vmatprep.subr.bf16.mxu0 0
      %976 = vmatpush2.bf16.msra.mxu0 0
      %977 = vmatprep.mubr.bf16.mxu0 0
      %978 = vmatmul.mubr.bf16.gmra.mxu0 %v940
      %v979 = vpop.f32.mrf.mxu0
      %v980 = vadd.f32 0.0, %v979
      %v981 = vpop.f32.mrf.mxu0
      %v982 = vpop.f32.mrf.mxu0
      %v983 = vpop.f32.mrf.mxu0
      %984 = vdwg.mxu0
      %986 = vrot.lane.b32.xlu0 %v758, 8
      %v987 = vpop.permute.xlu0 %986
      %990 = vrot.lane.b32.xlu0 %v869, 16
      %v991 = vpop.permute.xlu0 %990
      %994 = vrot.lane.b32.xlu0 %v980, 24
      %v995 = vpop.permute.xlu0 %994
      %v997 = vsel %vm542, %v644, %v987
      %vm998 = vcmask 130048
      %v999 = vsel %vm998, %v997, %v991
      %vm1000 = vcmask 195584
      %v1001 = vsel %vm1000, %v999, %v995
      %v1002 = vpack.c.bf16 %v1001, %v1001
      %v1003 = vld [vmem:[%s5] sm:$0xff]
      %v1004 = vld [vmem:[%s5 + $0x8] sm:$0xff]
      %v1005 = vld [vmem:[%s5 + $0x10] sm:$0xff]
      %v1006 = vld [vmem:[%s5 + $0x18] sm:$0xff]
      %v1007 = vpack.c.bf16 %v1004, %v1003
      %v1008 = vpack.c.bf16 %v1006, %v1005
      %v1009 = vld [vmem:[%s6] sm:$0x1]
      %v1011 = vlaneseq
      %v1012 = vshrl.u32 %v1011, 7
      %v1013 = vsub.s32 0, %v1012
      %v1014 = vrot.slane %v1009, %v1013
      %v1017 = vsel %vm377, %v1002, 0
      %1019 = vmatprep.subr.bf16.mxu0 0
      %1020 = vmatpush1.bf16.msra.mxu0 0
      %1021 = vmatprep.subr.bf16.mxu0 0
      %1022 = vmatpush1.bf16.msra.mxu0 0
      %1023 = vmatprep.subr.bf16.mxu0 0
      %1024 = vmatpush1.bf16.msra.mxu0 0
      %1025 = vmatprep.subr.bf16.mxu0 0
      %1026 = vmatpush1.bf16.msra.mxu0 0
      %1027 = vmatprep.subr.bf16.mxu0 0
      %1028 = vmatpush1.bf16.msra.mxu0 0
      %1029 = vmatprep.subr.bf16.mxu0 0
      %1030 = vmatpush1.bf16.msra.mxu0 0
      %1031 = vmatprep.subr.bf16.mxu0 0
      %1032 = vmatpush1.bf16.msra.mxu0 %v1008
      %1033 = vmatprep.subr.bf16.mxu0 0
      %1034 = vmatpush1.bf16.msra.mxu0 %v1007
      %1035 = vmatprep.subr.bf16.mxu0 0
      %1036 = vmatpush2.bf16.msra.mxu0 0
      %1037 = vmatprep.subr.bf16.mxu0 0
      %1038 = vmatpush2.bf16.msra.mxu0 0
      %1039 = vmatprep.subr.bf16.mxu0 0
      %1040 = vmatpush2.bf16.msra.mxu0 0
      %1041 = vmatprep.subr.bf16.mxu0 0
      %1042 = vmatpush2.bf16.msra.mxu0 0
      %1043 = vmatprep.subr.bf16.mxu0 0
      %1044 = vmatpush2.bf16.msra.mxu0 0
      %1045 = vmatprep.subr.bf16.mxu0 0
      %1046 = vmatpush2.bf16.msra.mxu0 0
      %1047 = vmatprep.subr.bf16.mxu0 0
      %1048 = vmatpush2.bf16.msra.mxu0 0
      %1049 = vmatprep.subr.bf16.mxu0 0
      %1050 = vmatpush2.bf16.msra.mxu0 0
      %1051 = vmatprep.mubr.bf16.mxu0 0
      %1052 = vmatmul.mubr.bf16.gmra.mxu0 %v1017
      %v1053 = vpop.f32.mrf.mxu0
      %v1054 = vadd.f32 %v1014, %v1053
      %v1055 = vpop.f32.mrf.mxu0
      %v1056 = vpop.f32.mrf.mxu0
      %v1057 = vpop.f32.mrf.mxu0
      %1058 = vdwg.mxu0
      %v1059 = vadd.f32 %v360, %v1054
      %v1060 = vsel %vm377, %v1059, 0.0
      %1061 = vadd.xlane.f32.xlu0 %v1060
      %v1062 = vpop.xlane.xlu0 %1061
      %v1063 = vrcp.pop 32.0
      %v1064 = vmul.f32 %v1062, %v1063
      %v1065 = vsub.f32 %v1059, %v1064
      %v1066 = vmul.f32 %v1065, %v1065
      %v1067 = vsel %vm377, %v1066, 0.0
      %1068 = vadd.xlane.f32.xlu0 %v1067
      %v1069 = vpop.xlane.xlu0 %1068
      %v1070 = vmul.f32 %v1069, %v1063
      %v1071 = vadd.f32 %v1070, 1e-05
      %v1072 = vrsqrt.pop %v1071
      %v1073 = vmul.f32 %v1065, %v1072
      %v1074 = vld [vmem:[%s7] sm:$0x1]
      %v1076 = vlaneseq
      %v1077 = vshrl.u32 %v1076, 7
      %v1078 = vsub.s32 0, %v1077
      %v1079 = vrot.slane %v1074, %v1078
      %v1081 = vmul.f32 %v1073, %v1079
      %v1082 = vld [vmem:[%s8] sm:$0x1]
      %v1084 = vlaneseq
      %v1085 = vshrl.u32 %v1084, 7
      %v1086 = vsub.s32 0, %v1085
      %v1087 = vrot.slane %v1082, %v1086
      %v1089 = vadd.f32 %v1081, %v1087
      %1090 = vst.msk [vmem:[%s358] sm:$0xff] %vm377, %v1089
      %p1091 = scmp.lt.s32.totalorder %s20, 1
      %s1092 = scalar_select %p1091, %s20, 1
      %s1093 = smul.addr %s1092, 8
      %s1094 = scalar_lea.vmem %s9, %s1093
      // Predicated region
      $region57: #{_lambda_.15} parent=55 // pred_check
        %p1095 = pneg %p242
      $region58: #{_lambda_.15} parent=55 // pred_check_branch
        %1097 = sbr.rel (%p1095) target = $region60
      $region59: #{_lambda_.15} parent=55 // pred_region
        _
      $region60: #{_lambda_.15} parent=55 // pred_fallthru
        _
    $region56: #{_lambda_.15} parent=5 // pred_fallthru
      _
    %p1098 = scmp.le.s32.totalorder 2, %s15
    // Predicated region
    $region61: #{_lambda_.15} parent=5 // pred_check
      %p1099 = pneg %p1098
    $region62: #{_lambda_.15} parent=5 // pred_check_branch
      %1101 = sbr.rel (%p1099) target = $region64
    $region63: #{_lambda_.15} parent=5 // pred_region
      %s1102 = ssub.s32 %s15, 2
      // Predicated region
      $region65: #{_lambda_.15} parent=63 // pred_check
        %p1103 = pneg %p248
      $region66: #{_lambda_.15} parent=63 // pred_check_branch
        %1105 = sbr.rel (%p1103) target = $region68
      $region67: #{_lambda_.15} parent=63 // pred_region
        %p1106 = scmp.lt.s32.totalorder %s21, 1
        %s1107 = scalar_select %p1106, %s21, 1
        %s1108 = smul.addr %s1107, 8
        %s1109 = scalar_lea.vmem %s9, %s1108
      $region68: #{_lambda_.15} parent=63 // pred_fallthru
        _
    $region64: #{_lambda_.15} parent=5 // pred_fallthru
      _
  $region6: #{_lambda_.15} parent=0 // loop_footer
    %s19 = sadd.s32 1, %s15
  $region7: #{_lambda_.15} parent=0 // loop_footer_branch
    %14 = sbr.rel target = $region3
  $region8: #{_lambda_.15} parent=0 // loop_exit
    _

</llo_original>
